<compile_context>
chip_gen: v5e
topology: v5e:2x2
jax: 0.10.0
libtpu: 0.0.40
codegen_flags: <defaults>
</compile_context>

<pallas_src>
import jax
import jax.numpy as jnp
from jax import lax
from jax.experimental import pallas as pl
from jax.experimental.pallas import tpu as pltpu


def _round_up(v, m):
    return (v + m - 1) // m * m


def _cdiv(a, b):
    return (a + b - 1) // b


def _multitask_head_kernel(x_ref, w1_ref, b1_ref, w2_ref, b2_ref, o_ref):
    # x_ref : (1, TR+2, Wp+2, Cin) bf16  halo'd NHWC row chunk of one image
    # w1_ref: (9, Cin, N1pad)      bf16  3x3 taps of all heads, stacked
    # b1_ref: (1, N1pad)           f32
    # w2_ref: (N2pad, N1pad)       bf16  block-diagonal 1x1 weights (transposed)
    # b2_ref: (N2pad, 1)           f32
    # o_ref : (1, N2pad, TR*Wp)    f32   channels-first tile output
    tr = x_ref.shape[1] - 2
    wp = x_ref.shape[2] - 2
    cin = x_ref.shape[3]
    px = tr * wp
    n1p = w1_ref.shape[2]

    # Fused 3x3 convs of all heads: 9 shifted-window matmuls, f32 MXU accumulation.
    acc = jnp.zeros((px, n1p), jnp.float32)
    for t in range(9):                              # static, fully unrolled
        kh, kw = t // 3, t % 3
        win = x_ref[0, kh:kh + tr, kw:kw + wp, :].reshape(px, cin)
        acc = acc + jnp.dot(win, w1_ref[t], preferred_element_type=jnp.float32)
    feat = jnp.maximum(acc + b1_ref[...], 0.0).astype(jnp.bfloat16)   # (px, N1pad)

    # Fused 1x1 convs (block-diagonal) + bias, emitted channels-first (N2pad, px)
    # so the 5->8 channel pad lands on sublanes and the HBM writeback stays small.
    out_t = lax.dot_general(
        w2_ref[...], feat,
        dimension_numbers=(((1,), (1,)), ((), ())),
        preferred_element_type=jnp.float32)                           # (N2pad, px)
    o_ref[0] = out_t + b2_ref[...]


def multitask_head(x, head_params, head_channels=(2, 1, 2)):
    """x: (B, Cin, H, W) float32 NCHW.
    head_params: list of (w1 (m,Cin,3,3), b1 (m,), w2 (oc,m,1,1), b2 (oc,)).
    Returns (B, sum(head_channels), H, W) float32."""
    B, Cin, H, W = x.shape
    m = Cin // 4
    n_heads = len(head_params)
    N1 = n_heads * m
    N2 = int(sum(head_channels))
    N1pad = _round_up(max(N1, 128), 128)   # hidden features stay lane-dense (no extra inflation)
    N2pad = _round_up(max(N2, 8), 8)       # channel pad rides the sublane axis

    # ---- Tiling: TR rows per grid step, ~2048 px/step, grid kept >= 2 -------
    Wp = _round_up(W, 8)                   # keeps in-kernel window reshapes 8-aligned
    PIX_TARGET = 2048
    TR = max(1, min(H, PIX_TARGET // Wp))
    if B * _cdiv(H, TR) < 2:               # both v7x TensorCores need work
        TR = max(1, _cdiv(H, 2))
    HT = _cdiv(H, TR)
    Hpad = HT * TR
    PX = TR * Wp
    G = B * HT

    # ---- JAX glue (one ~1.1x pass): NHWC bf16 + halo pad + halo'd row chunks
    xh = jnp.transpose(x, (0, 2, 3, 1)).astype(jnp.bfloat16)          # (B,H,W,Cin)
    xp = jnp.pad(xh, ((0, 0), (1, 1 + Hpad - H), (1, 1 + Wp - W), (0, 0)))
    chunks = [xp[:, r * TR:r * TR + TR + 2] for r in range(HT)]       # overlap = halo only
    xin = jnp.stack(chunks, axis=1).reshape(G, TR + 2, Wp + 2, Cin)

    # ---- Fused / padded weights ---------------------------------------------
    w1_all = jnp.concatenate([p[0] for p in head_params], axis=0)     # (N1,Cin,3,3)
    w1_taps = jnp.transpose(w1_all, (2, 3, 1, 0)).reshape(9, Cin, N1)
    w1_taps = jnp.pad(w1_taps, ((0, 0), (0, 0), (0, N1pad - N1))
                      ).astype(jnp.bfloat16)                          # (9,Cin,N1pad)
    b1_all = jnp.concatenate([p[1] for p in head_params], axis=0)
    b1_mat = jnp.pad(b1_all, (0, N1pad - N1)).reshape(1, N1pad).astype(jnp.float32)

    # 1x1 convs of all heads as one block-diagonal matrix, stored transposed
    # (N2pad, N1pad) so the kernel can emit channels-first output directly.
    w2_bd = jnp.zeros((N2pad, N1pad), jnp.float32)
    off = 0
    for i, p in enumerate(head_params):
        oc = int(head_channels[i])
        w2_bd = w2_bd.at[off:off + oc, i * m:(i + 1) * m].set(p[2].reshape(oc, m))
        off += oc
    w2_mat = w2_bd.astype(jnp.bfloat16)                               # (N2pad, N1pad)
    b2_all = jnp.concatenate([p[3] for p in head_params], axis=0)
    b2_mat = jnp.pad(b2_all, (0, N2pad - N2)).reshape(N2pad, 1).astype(jnp.float32)

    # ---- VMEM sizing (v7x has only 64 MiB; leave headroom) -------------------
    in_bytes = (TR + 2) * (Wp + 2) * Cin * 2
    out_bytes = N2pad * PX * 4
    w_bytes = (9 * Cin * N1pad + N1pad * N2pad) * 2 + (N1pad + N2pad) * 4
    tmp_bytes = 3 * PX * N1pad * 4 + 2 * PX * Cin * 2
    vmem_est = 2 * (in_bytes + out_bytes + w_bytes) + tmp_bytes
    vmem_limit = int(min(max(32 * 1024 * 1024, 2 * vmem_est), 48 * 1024 * 1024))

    flops = G * (9 * 2 * PX * Cin * N1pad + 2 * PX * N1pad * N2pad)
    bytes_accessed = (xin.size * 2 + w1_taps.size * 2 + w2_mat.size * 2
                      + G * out_bytes + (N1pad + N2pad) * 4)

    out_flat = pl.pallas_call(
        _multitask_head_kernel,
        out_shape=jax.ShapeDtypeStruct((G, N2pad, PX), jnp.float32),
        grid_spec=pltpu.PrefetchScalarGridSpec(
            num_scalar_prefetch=0,
            grid=(G,),
            in_specs=[
                pl.BlockSpec((1, TR + 2, Wp + 2, Cin), lambda g: (g, 0, 0, 0)),
                # TODO(synk): constant-index weight/bias specs could take
                # pipeline_mode=pl.Buffered(1) to drop their redundant second
                # buffer; left at the default for portability (VMEM headroom
                # is large: ~vmem_est per step << 64 MiB).
                pl.BlockSpec((9, Cin, N1pad), lambda g: (0, 0, 0)),
                pl.BlockSpec((1, N1pad), lambda g: (0, 0)),
                pl.BlockSpec((N2pad, N1pad), lambda g: (0, 0)),
                pl.BlockSpec((N2pad, 1), lambda g: (0, 0)),
            ],
            out_specs=pl.BlockSpec((1, N2pad, PX), lambda g: (g, 0, 0)),
        ),
        compiler_params=pltpu.CompilerParams(
            dimension_semantics=("parallel",),
            vmem_limit_bytes=vmem_limit),
        cost_estimate=pl.CostEstimate(
            flops=int(flops), transcendentals=0,
            bytes_accessed=int(bytes_accessed)),
    )(xin, w1_taps, b1_mat, w2_mat, b2_mat)

    # ---- JAX glue: drop channel/row/col pads, back to NCHW (tiny output) ----
    out = out_flat.reshape(B, HT, N2pad, TR, Wp)[:, :, :N2, :, :W]
    out = out.transpose(0, 2, 1, 3, 4).reshape(B, N2, Hpad, W)[:, :, :H, :]
    return out


def _reference(x, head_params):
    """Pure-JAX reference mirroring the PyTorch forward (f32)."""
    outs = []
    for (w1, b1, w2, b2) in head_params:
        feat = lax.conv_general_dilated(
            x, w1, window_strides=(1, 1), padding=((1, 1), (1, 1)),
            dimension_numbers=("NCHW", "OIHW", "NCHW"))
        feat = jax.nn.relu(feat + b1[None, :, None, None])
        o = lax.conv_general_dilated(
            feat, w2, window_strides=(1, 1), padding=((0, 0), (0, 0)),
            dimension_numbers=("NCHW", "OIHW", "NCHW"))
        outs.append(o + b2[None, :, None, None])
    return jnp.concatenate(outs, axis=1)


if __name__ == "__main__":
    # Small, deterministic configuration (input_channels must be div. by 4).
    B, Cin, H, W = 2, 32, 16, 16
    head_channels = (2, 1, 2)
    m = Cin // 4

    key = jax.random.PRNGKey(0)
    kx, *wkeys = jax.random.split(key, 1 + 4 * len(head_channels))
    x = jax.random.normal(kx, (B, Cin, H, W), dtype=jnp.float32)

    head_params = []
    for i, oc in enumerate(head_channels):
        k1, k2, k3, k4 = wkeys[4 * i:4 * i + 4]
        w1 = 0.05 * jax.random.normal(k1, (m, Cin, 3, 3), dtype=jnp.float32)
        b1 = 0.05 * jax.random.normal(k2, (m,), dtype=jnp.float32)
        w2 = 0.05 * jax.random.normal(k3, (oc, m, 1, 1), dtype=jnp.float32)
        b2 = 0.05 * jax.random.normal(k4, (oc,), dtype=jnp.float32)
        head_params.append((w1, b1, w2, b2))

    fn = jax.jit(lambda xx, pp: multitask_head(xx, pp, head_channels))
    out = jax.block_until_ready(fn(x, head_params))

    ref = jax.block_until_ready(_reference(x, head_params))
    assert out.shape == (B, sum(head_channels), H, W), out.shape
    max_err = float(jnp.max(jnp.abs(out - ref)))
    # bf16 matmul operands with f32 accumulation -> tolerance accordingly.
    assert jnp.allclose(out, ref, rtol=2e-2, atol=2e-2), max_err

    print("KERNEL_OK")
</pallas_src>

<mosaic_0001>
module attributes {stable_mosaic.version = 11 : i64} {
  func.func @_multitask_head_kernel(%arg0: i32, %arg1: memref<1x18x18x32xbf16, #tpu.memory_space<vmem>>, %arg2: memref<9x32x128xbf16, #tpu.memory_space<vmem>>, %arg3: memref<1x128xf32, #tpu.memory_space<vmem>>, %arg4: memref<8x128xbf16, #tpu.memory_space<vmem>>, %arg5: memref<8x1xf32, #tpu.memory_space<vmem>>, %arg6: memref<1x8x256xf32, #tpu.memory_space<vmem>>) attributes {dimension_semantics = [#tpu.dimension_semantics<parallel>], iteration_bounds = array<i64: 2>, scalar_prefetch = 0 : i64, scratch_operands = 0 : i64, tpu.core_type = #tpu.core_type<tc>, window_params = [{transform_indices = @transform_0, window_bounds = array<i64: 1, 18, 18, 32>}, {pipeline_mode = #tpu.pipeline_mode<synchronous>, transform_indices = @transform_1, window_bounds = array<i64: 9, 32, 128>}, {pipeline_mode = #tpu.pipeline_mode<synchronous>, transform_indices = @transform_2, window_bounds = array<i64: 1, 128>}, {pipeline_mode = #tpu.pipeline_mode<synchronous>, transform_indices = @transform_3, window_bounds = array<i64: 8, 128>}, {pipeline_mode = #tpu.pipeline_mode<synchronous>, transform_indices = @transform_4, window_bounds = array<i64: 8, 1>}, {transform_indices = @transform_5, window_bounds = array<i64: 1, 8, 256>}]} {
    %cst = arith.constant 0.000000e+00 : f32
    %0 = vector.broadcast %cst : f32 to vector<256x128xf32>
    %c0 = arith.constant 0 : index
    %c0_0 = arith.constant 0 : index
    %c0_1 = arith.constant 0 : index
    %c0_2 = arith.constant 0 : index
    %1 = vector.load %arg1[%c0, %c0_0, %c0_1, %c0_2] : memref<1x18x18x32xbf16, #tpu.memory_space<vmem>>, vector<1x16x16x32xbf16>
    %2 = vector.shape_cast %1 : vector<1x16x16x32xbf16> to vector<16x16x32xbf16>
    %3 = vector.shape_cast %2 : vector<16x16x32xbf16> to vector<256x32xbf16>
    %c0_3 = arith.constant 0 : index
    %c0_4 = arith.constant 0 : index
    %c0_5 = arith.constant 0 : index
    %4 = vector.load %arg2[%c0_3, %c0_4, %c0_5] : memref<9x32x128xbf16, #tpu.memory_space<vmem>>, vector<1x32x128xbf16>
    %5 = vector.shape_cast %4 : vector<1x32x128xbf16> to vector<32x128xbf16>
    %cst_6 = arith.constant dense<0.000000e+00> : vector<256x128xf32>
    %6 = tpu.matmul %3, %5, %cst_6 {dimension_numbers = #tpu.dot_dimension_numbers<[1], [0], [0], [1], [0, 0, 1, 1], [], []>} : vector<256x32xbf16>, vector<32x128xbf16>, vector<256x128xf32> -> vector<256x128xf32>
    %7 = arith.addf %0, %6 : vector<256x128xf32>
    %c0_7 = arith.constant 0 : index
    %c0_8 = arith.constant 0 : index
    %c1 = arith.constant 1 : index
    %c0_9 = arith.constant 0 : index
    %8 = vector.load %arg1[%c0_7, %c0_8, %c1, %c0_9] : memref<1x18x18x32xbf16, #tpu.memory_space<vmem>>, vector<1x16x16x32xbf16>
    %9 = vector.shape_cast %8 : vector<1x16x16x32xbf16> to vector<16x16x32xbf16>
    %10 = vector.shape_cast %9 : vector<16x16x32xbf16> to vector<256x32xbf16>
    %c1_10 = arith.constant 1 : index
    %c0_11 = arith.constant 0 : index
    %c0_12 = arith.constant 0 : index
    %11 = vector.load %arg2[%c1_10, %c0_11, %c0_12] : memref<9x32x128xbf16, #tpu.memory_space<vmem>>, vector<1x32x128xbf16>
    %12 = vector.shape_cast %11 : vector<1x32x128xbf16> to vector<32x128xbf16>
    %cst_13 = arith.constant dense<0.000000e+00> : vector<256x128xf32>
    %13 = tpu.matmul %10, %12, %cst_13 {dimension_numbers = #tpu.dot_dimension_numbers<[1], [0], [0], [1], [0, 0, 1, 1], [], []>} : vector<256x32xbf16>, vector<32x128xbf16>, vector<256x128xf32> -> vector<256x128xf32>
    %14 = arith.addf %7, %13 : vector<256x128xf32>
    %c0_14 = arith.constant 0 : index
    %c0_15 = arith.constant 0 : index
    %c2 = arith.constant 2 : index
    %c0_16 = arith.constant 0 : index
    %15 = vector.load %arg1[%c0_14, %c0_15, %c2, %c0_16] : memref<1x18x18x32xbf16, #tpu.memory_space<vmem>>, vector<1x16x16x32xbf16>
    %16 = vector.shape_cast %15 : vector<1x16x16x32xbf16> to vector<16x16x32xbf16>
    %17 = vector.shape_cast %16 : vector<16x16x32xbf16> to vector<256x32xbf16>
    %c2_17 = arith.constant 2 : index
    %c0_18 = arith.constant 0 : index
    %c0_19 = arith.constant 0 : index
    %18 = vector.load %arg2[%c2_17, %c0_18, %c0_19] : memref<9x32x128xbf16, #tpu.memory_space<vmem>>, vector<1x32x128xbf16>
    %19 = vector.shape_cast %18 : vector<1x32x128xbf16> to vector<32x128xbf16>
    %cst_20 = arith.constant dense<0.000000e+00> : vector<256x128xf32>
    %20 = tpu.matmul %17, %19, %cst_20 {dimension_numbers = #tpu.dot_dimension_numbers<[1], [0], [0], [1], [0, 0, 1, 1], [], []>} : vector<256x32xbf16>, vector<32x128xbf16>, vector<256x128xf32> -> vector<256x128xf32>
    %21 = arith.addf %14, %20 : vector<256x128xf32>
    %c0_21 = arith.constant 0 : index
    %c1_22 = arith.constant 1 : index
    %c0_23 = arith.constant 0 : index
    %c0_24 = arith.constant 0 : index
    %22 = vector.load %arg1[%c0_21, %c1_22, %c0_23, %c0_24] : memref<1x18x18x32xbf16, #tpu.memory_space<vmem>>, vector<1x16x16x32xbf16>
    %23 = vector.shape_cast %22 : vector<1x16x16x32xbf16> to vector<16x16x32xbf16>
    %24 = vector.shape_cast %23 : vector<16x16x32xbf16> to vector<256x32xbf16>
    %c3 = arith.constant 3 : index
    %c0_25 = arith.constant 0 : index
    %c0_26 = arith.constant 0 : index
    %25 = vector.load %arg2[%c3, %c0_25, %c0_26] : memref<9x32x128xbf16, #tpu.memory_space<vmem>>, vector<1x32x128xbf16>
    %26 = vector.shape_cast %25 : vector<1x32x128xbf16> to vector<32x128xbf16>
    %cst_27 = arith.constant dense<0.000000e+00> : vector<256x128xf32>
    %27 = tpu.matmul %24, %26, %cst_27 {dimension_numbers = #tpu.dot_dimension_numbers<[1], [0], [0], [1], [0, 0, 1, 1], [], []>} : vector<256x32xbf16>, vector<32x128xbf16>, vector<256x128xf32> -> vector<256x128xf32>
    %28 = arith.addf %21, %27 : vector<256x128xf32>
    %c0_28 = arith.constant 0 : index
    %c1_29 = arith.constant 1 : index
    %c1_30 = arith.constant 1 : index
    %c0_31 = arith.constant 0 : index
    %29 = vector.load %arg1[%c0_28, %c1_29, %c1_30, %c0_31] : memref<1x18x18x32xbf16, #tpu.memory_space<vmem>>, vector<1x16x16x32xbf16>
    %30 = vector.shape_cast %29 : vector<1x16x16x32xbf16> to vector<16x16x32xbf16>
    %31 = vector.shape_cast %30 : vector<16x16x32xbf16> to vector<256x32xbf16>
    %c4 = arith.constant 4 : index
    %c0_32 = arith.constant 0 : index
    %c0_33 = arith.constant 0 : index
    %32 = vector.load %arg2[%c4, %c0_32, %c0_33] : memref<9x32x128xbf16, #tpu.memory_space<vmem>>, vector<1x32x128xbf16>
    %33 = vector.shape_cast %32 : vector<1x32x128xbf16> to vector<32x128xbf16>
    %cst_34 = arith.constant dense<0.000000e+00> : vector<256x128xf32>
    %34 = tpu.matmul %31, %33, %cst_34 {dimension_numbers = #tpu.dot_dimension_numbers<[1], [0], [0], [1], [0, 0, 1, 1], [], []>} : vector<256x32xbf16>, vector<32x128xbf16>, vector<256x128xf32> -> vector<256x128xf32>
    %35 = arith.addf %28, %34 : vector<256x128xf32>
    %c0_35 = arith.constant 0 : index
    %c1_36 = arith.constant 1 : index
    %c2_37 = arith.constant 2 : index
    %c0_38 = arith.constant 0 : index
    %36 = vector.load %arg1[%c0_35, %c1_36, %c2_37, %c0_38] : memref<1x18x18x32xbf16, #tpu.memory_space<vmem>>, vector<1x16x16x32xbf16>
    %37 = vector.shape_cast %36 : vector<1x16x16x32xbf16> to vector<16x16x32xbf16>
    %38 = vector.shape_cast %37 : vector<16x16x32xbf16> to vector<256x32xbf16>
    %c5 = arith.constant 5 : index
    %c0_39 = arith.constant 0 : index
    %c0_40 = arith.constant 0 : index
    %39 = vector.load %arg2[%c5, %c0_39, %c0_40] : memref<9x32x128xbf16, #tpu.memory_space<vmem>>, vector<1x32x128xbf16>
    %40 = vector.shape_cast %39 : vector<1x32x128xbf16> to vector<32x128xbf16>
    %cst_41 = arith.constant dense<0.000000e+00> : vector<256x128xf32>
    %41 = tpu.matmul %38, %40, %cst_41 {dimension_numbers = #tpu.dot_dimension_numbers<[1], [0], [0], [1], [0, 0, 1, 1], [], []>} : vector<256x32xbf16>, vector<32x128xbf16>, vector<256x128xf32> -> vector<256x128xf32>
    %42 = arith.addf %35, %41 : vector<256x128xf32>
    %c0_42 = arith.constant 0 : index
    %c2_43 = arith.constant 2 : index
    %c0_44 = arith.constant 0 : index
    %c0_45 = arith.constant 0 : index
    %43 = vector.load %arg1[%c0_42, %c2_43, %c0_44, %c0_45] : memref<1x18x18x32xbf16, #tpu.memory_space<vmem>>, vector<1x16x16x32xbf16>
    %44 = vector.shape_cast %43 : vector<1x16x16x32xbf16> to vector<16x16x32xbf16>
    %45 = vector.shape_cast %44 : vector<16x16x32xbf16> to vector<256x32xbf16>
    %c6 = arith.constant 6 : index
    %c0_46 = arith.constant 0 : index
    %c0_47 = arith.constant 0 : index
    %46 = vector.load %arg2[%c6, %c0_46, %c0_47] : memref<9x32x128xbf16, #tpu.memory_space<vmem>>, vector<1x32x128xbf16>
    %47 = vector.shape_cast %46 : vector<1x32x128xbf16> to vector<32x128xbf16>
    %cst_48 = arith.constant dense<0.000000e+00> : vector<256x128xf32>
    %48 = tpu.matmul %45, %47, %cst_48 {dimension_numbers = #tpu.dot_dimension_numbers<[1], [0], [0], [1], [0, 0, 1, 1], [], []>} : vector<256x32xbf16>, vector<32x128xbf16>, vector<256x128xf32> -> vector<256x128xf32>
    %49 = arith.addf %42, %48 : vector<256x128xf32>
    %c0_49 = arith.constant 0 : index
    %c2_50 = arith.constant 2 : index
    %c1_51 = arith.constant 1 : index
    %c0_52 = arith.constant 0 : index
    %50 = vector.load %arg1[%c0_49, %c2_50, %c1_51, %c0_52] : memref<1x18x18x32xbf16, #tpu.memory_space<vmem>>, vector<1x16x16x32xbf16>
    %51 = vector.shape_cast %50 : vector<1x16x16x32xbf16> to vector<16x16x32xbf16>
    %52 = vector.shape_cast %51 : vector<16x16x32xbf16> to vector<256x32xbf16>
    %c7 = arith.constant 7 : index
    %c0_53 = arith.constant 0 : index
    %c0_54 = arith.constant 0 : index
    %53 = vector.load %arg2[%c7, %c0_53, %c0_54] : memref<9x32x128xbf16, #tpu.memory_space<vmem>>, vector<1x32x128xbf16>
    %54 = vector.shape_cast %53 : vector<1x32x128xbf16> to vector<32x128xbf16>
    %cst_55 = arith.constant dense<0.000000e+00> : vector<256x128xf32>
    %55 = tpu.matmul %52, %54, %cst_55 {dimension_numbers = #tpu.dot_dimension_numbers<[1], [0], [0], [1], [0, 0, 1, 1], [], []>} : vector<256x32xbf16>, vector<32x128xbf16>, vector<256x128xf32> -> vector<256x128xf32>
    %56 = arith.addf %49, %55 : vector<256x128xf32>
    %c0_56 = arith.constant 0 : index
    %c2_57 = arith.constant 2 : index
    %c2_58 = arith.constant 2 : index
    %c0_59 = arith.constant 0 : index
    %57 = vector.load %arg1[%c0_56, %c2_57, %c2_58, %c0_59] : memref<1x18x18x32xbf16, #tpu.memory_space<vmem>>, vector<1x16x16x32xbf16>
    %58 = vector.shape_cast %57 : vector<1x16x16x32xbf16> to vector<16x16x32xbf16>
    %59 = vector.shape_cast %58 : vector<16x16x32xbf16> to vector<256x32xbf16>
    %c8 = arith.constant 8 : index
    %c0_60 = arith.constant 0 : index
    %c0_61 = arith.constant 0 : index
    %60 = vector.load %arg2[%c8, %c0_60, %c0_61] : memref<9x32x128xbf16, #tpu.memory_space<vmem>>, vector<1x32x128xbf16>
    %61 = vector.shape_cast %60 : vector<1x32x128xbf16> to vector<32x128xbf16>
    %cst_62 = arith.constant dense<0.000000e+00> : vector<256x128xf32>
    %62 = tpu.matmul %59, %61, %cst_62 {dimension_numbers = #tpu.dot_dimension_numbers<[1], [0], [0], [1], [0, 0, 1, 1], [], []>} : vector<256x32xbf16>, vector<32x128xbf16>, vector<256x128xf32> -> vector<256x128xf32>
    %63 = arith.addf %56, %62 : vector<256x128xf32>
    %c0_63 = arith.constant 0 : index
    %c0_64 = arith.constant 0 : index
    %64 = vector.load %arg3[%c0_63, %c0_64] : memref<1x128xf32, #tpu.memory_space<vmem>>, vector<1x128xf32>
    %65 = vector.broadcast %64 : vector<1x128xf32> to vector<256x128xf32>
    %66 = arith.addf %63, %65 : vector<256x128xf32>
    %cst_65 = arith.constant 0.000000e+00 : f32
    %67 = vector.broadcast %cst_65 : f32 to vector<256x128xf32>
    %68 = arith.maximumf %66, %67 : vector<256x128xf32>
    %69 = arith.truncf %68 : vector<256x128xf32> to vector<256x128xbf16>
    %c0_66 = arith.constant 0 : index
    %c0_67 = arith.constant 0 : index
    %70 = vector.load %arg4[%c0_66, %c0_67] : memref<8x128xbf16, #tpu.memory_space<vmem>>, vector<8x128xbf16>
    %cst_68 = arith.constant dense<0.000000e+00> : vector<8x256xf32>
    %71 = tpu.matmul %70, %69, %cst_68 {dimension_numbers = #tpu.dot_dimension_numbers<[1], [1], [0], [0], [0, 0, 1, 0], [], []>} : vector<8x128xbf16>, vector<256x128xbf16>, vector<8x256xf32> -> vector<8x256xf32>
    %c0_69 = arith.constant 0 : index
    %c0_70 = arith.constant 0 : index
    %72 = vector.load %arg5[%c0_69, %c0_70] : memref<8x1xf32, #tpu.memory_space<vmem>>, vector<8x1xf32>
    %73 = vector.broadcast %72 : vector<8x1xf32> to vector<8x256xf32>
    %74 = arith.addf %71, %73 : vector<8x256xf32>
    %c0_71 = arith.constant 0 : index
    %c0_72 = arith.constant 0 : index
    %c0_73 = arith.constant 0 : index
    %75 = vector.load %arg6[%c0_71, %c0_72, %c0_73] : memref<1x8x256xf32, #tpu.memory_space<vmem>>, vector<1x8x256xf32>
    %76 = vector.shape_cast %75 : vector<1x8x256xf32> to vector<8x256xf32>
    %77 = vector.shape_cast %74 : vector<8x256xf32> to vector<1x8x256xf32>
    tpu.vector_store %arg6[%c0_71, %c0_72, %c0_73], %77 {strides = array<i32>} : memref<1x8x256xf32, #tpu.memory_space<vmem>>, vector<1x8x256xf32>,
    return
  }
  func.func @transform_0(%arg0: i32) -> (i32, i32, i32, i32) {
    %c0_i32 = arith.constant 0 : i32
    %c0_i32_0 = arith.constant 0 : i32
    %c0_i32_1 = arith.constant 0 : i32
    %c0_i32_2 = arith.constant 0 : i32
    return %arg0, %c0_i32, %c0_i32_0, %c0_i32_1 : i32, i32, i32, i32
  }
  func.func @transform_1(%arg0: i32) -> (i32, i32, i32) {
    %c0_i32 = arith.constant 0 : i32
    %c0_i32_0 = arith.constant 0 : i32
    %c0_i32_1 = arith.constant 0 : i32
    %c0_i32_2 = arith.constant 0 : i32
    return %c0_i32, %c0_i32_0, %c0_i32_1 : i32, i32, i32
  }
  func.func @transform_2(%arg0: i32) -> (i32, i32) {
    %c0_i32 = arith.constant 0 : i32
    %c0_i32_0 = arith.constant 0 : i32
    %c0_i32_1 = arith.constant 0 : i32
    return %c0_i32, %c0_i32_0 : i32, i32
  }
  func.func @transform_3(%arg0: i32) -> (i32, i32) {
    %c0_i32 = arith.constant 0 : i32
    %c0_i32_0 = arith.constant 0 : i32
    %c0_i32_1 = arith.constant 0 : i32
    return %c0_i32, %c0_i32_0 : i32, i32
  }
  func.func @transform_4(%arg0: i32) -> (i32, i32) {
    %c0_i32 = arith.constant 0 : i32
    %c0_i32_0 = arith.constant 0 : i32
    %c0_i32_1 = arith.constant 0 : i32
    return %c0_i32, %c0_i32_0 : i32, i32
  }
  func.func @transform_5(%arg0: i32) -> (i32, i32, i32) {
    %c0_i32 = arith.constant 0 : i32
    %c0_i32_0 = arith.constant 0 : i32
    %c0_i32_1 = arith.constant 0 : i32
    return %arg0, %c0_i32, %c0_i32_0 : i32, i32, i32
  }
}

</mosaic_0001>

<llo_original>
// kernel: _lambda_.1
$region0: #{_lambda_.1}
  #allocation0 [shape = 'u32[]', space=smem, size = 0x4, offset = 0x4, fixed_abs, tag = 'smem constant byte address 0x4 - core index']
  #allocation1 [shape = 'u32[72,128]{1,0:T(1,128)}', space=vmem, size = 0x9000, scoped, tag = 'internal scratch']
  %s0 = inlined_call_operand.vmem [shape: bf16[2,18,18,32], index: 0, kind: input, shape index: {}]
  %s1 = inlined_call_operand.vmem [shape: bf16[9,32,128], index: 1, kind: input, shape index: {}]
  %s2 = inlined_call_operand.vmem [shape: f32[1,128], index: 2, kind: input, shape index: {}]
  %s3 = inlined_call_operand.vmem [shape: bf16[8,128], index: 3, kind: input, shape index: {}]
  %s4 = inlined_call_operand.vmem [shape: f32[8,1], index: 4, kind: input, shape index: {}]
  %s5 = inlined_call_operand.vmem [shape: f32[2,8,256], index: 5, kind: output, shape index: {}]
  %s6 = sld [smem:[#allocation0]]
  $region53: #{_lambda_.1} parent=0
    _
  %s8 = ssub.s32 1, %s6
  %s9 = scalar_select 0, %s8, %s6
  loop: start=0, step=1, limit=4
  $region2: #{_lambda_.1} parent=0 // loop_pre_header
    _
  $region3: #{_lambda_.1} parent=0 // loop_header
    %s11 = sphi 0, %s15
    %p12 = scmp.ge.s32.totalorder %s11, 4
    %s21 = sphi 0, %s23
    %s24 = sphi 0, %s21
    %s25 = sphi 0, %s24
    %s41 = sphi 0, %s25
    %s45 = sphi 0, %s45
    %s47 = sphi 0, %s45
    %s48 = sphi 0, %s47
    %s62 = sphi 0, %s48
    %s66 = sphi 0, %s66
    %s68 = sphi 0, %s66
    %s69 = sphi 0, %s68
    %s83 = sphi 0, %s69
    %s87 = sphi 0, %s87
    %s89 = sphi 0, %s87
    %s90 = sphi 0, %s89
    %s104 = sphi 0, %s90
    %s108 = sphi 0, %s108
    %s110 = sphi 0, %s108
    %s111 = sphi 0, %s110
    %s125 = sphi 0, %s111
    %s131 = sphi 0, %s133
    %s134 = sphi 0, %s131
    %s135 = sphi 0, %s134
    %s151 = sphi 0, %s135
  $region4: #{_lambda_.1} parent=0 // loop_header_branch
    %14 = sbr.rel (%p12) target = $region8
  $region5: #{_lambda_.1} parent=0 // loop_body
    %s16 = ssub.s32 %s11, 1
    %s17 = ssub.s32 %s11, 2
    %s18 = sadd.s32 %s11, 1
    %s19 = ssub.s32 %s11, %s18
    %p20 = scmp.eq.s32.totalorder %s19, 0
    %s22 = sadd.s32 %s21, 1
    %s23 = scalar_select %p20, %s21, %s22
    %p26 = pneg %p20
    %p27 = scmp.eq.s32.totalorder %s11, 1
    %p28 = por %p26, %p27
    %p29 = scmp.ne.s32.totalorder %s21, %s24
    %p30 = scmp.eq.s32.totalorder %s11, 0
    %p31 = por %p29, %p30
    %p32 = scmp.ne.s32.totalorder %s21, %s24
    %p33 = scmp.eq.s32.totalorder %s16, 1
    %p34 = por %p32, %p33
    %p35 = scmp.ne.s32.totalorder %s24, %s25
    %p36 = scmp.eq.s32.totalorder %s16, 0
    %p37 = por %p35, %p36
    %p38 = scmp.ne.s32.totalorder %s24, %s25
    %p39 = scmp.eq.s32.totalorder %s17, 1
    %p40 = por %p38, %p39
    %p42 = scmp.ne.s32.totalorder %s25, %s41
    %p43 = scmp.eq.s32.totalorder %s17, 0
    %p44 = por %p42, %p43
    %s46 = sadd.s32 %s45, 1
    %p49 = scmp.eq.s32.totalorder %s11, 1
    %p50 = scmp.ne.s32.totalorder %s45, %s47
    %p51 = scmp.eq.s32.totalorder %s11, 0
    %p52 = por %p50, %p51
    %p53 = scmp.ne.s32.totalorder %s45, %s47
    %p54 = scmp.eq.s32.totalorder %s16, 1
    %p55 = por %p53, %p54
    %p56 = scmp.ne.s32.totalorder %s47, %s48
    %p57 = scmp.eq.s32.totalorder %s16, 0
    %p58 = por %p56, %p57
    %p59 = scmp.ne.s32.totalorder %s47, %s48
    %p60 = scmp.eq.s32.totalorder %s17, 1
    %p61 = por %p59, %p60
    %p63 = scmp.ne.s32.totalorder %s48, %s62
    %p64 = scmp.eq.s32.totalorder %s17, 0
    %p65 = por %p63, %p64
    %s67 = sadd.s32 %s66, 1
    %p70 = scmp.eq.s32.totalorder %s11, 1
    %p71 = scmp.ne.s32.totalorder %s66, %s68
    %p72 = scmp.eq.s32.totalorder %s11, 0
    %p73 = por %p71, %p72
    %p74 = scmp.ne.s32.totalorder %s66, %s68
    %p75 = scmp.eq.s32.totalorder %s16, 1
    %p76 = por %p74, %p75
    %p77 = scmp.ne.s32.totalorder %s68, %s69
    %p78 = scmp.eq.s32.totalorder %s16, 0
    %p79 = por %p77, %p78
    %p80 = scmp.ne.s32.totalorder %s68, %s69
    %p81 = scmp.eq.s32.totalorder %s17, 1
    %p82 = por %p80, %p81
    %p84 = scmp.ne.s32.totalorder %s69, %s83
    %p85 = scmp.eq.s32.totalorder %s17, 0
    %p86 = por %p84, %p85
    %s88 = sadd.s32 %s87, 1
    %p91 = scmp.eq.s32.totalorder %s11, 1
    %p92 = scmp.ne.s32.totalorder %s87, %s89
    %p93 = scmp.eq.s32.totalorder %s11, 0
    %p94 = por %p92, %p93
    %p95 = scmp.ne.s32.totalorder %s87, %s89
    %p96 = scmp.eq.s32.totalorder %s16, 1
    %p97 = por %p95, %p96
    %p98 = scmp.ne.s32.totalorder %s89, %s90
    %p99 = scmp.eq.s32.totalorder %s16, 0
    %p100 = por %p98, %p99
    %p101 = scmp.ne.s32.totalorder %s89, %s90
    %p102 = scmp.eq.s32.totalorder %s17, 1
    %p103 = por %p101, %p102
    %p105 = scmp.ne.s32.totalorder %s90, %s104
    %p106 = scmp.eq.s32.totalorder %s17, 0
    %p107 = por %p105, %p106
    %s109 = sadd.s32 %s108, 1
    %p112 = scmp.eq.s32.totalorder %s11, 1
    %p113 = scmp.ne.s32.totalorder %s108, %s110
    %p114 = scmp.eq.s32.totalorder %s11, 0
    %p115 = por %p113, %p114
    %p116 = scmp.ne.s32.totalorder %s108, %s110
    %p117 = scmp.eq.s32.totalorder %s16, 1
    %p118 = por %p116, %p117
    %p119 = scmp.ne.s32.totalorder %s110, %s111
    %p120 = scmp.eq.s32.totalorder %s16, 0
    %p121 = por %p119, %p120
    %p122 = scmp.ne.s32.totalorder %s110, %s111
    %p123 = scmp.eq.s32.totalorder %s17, 1
    %p124 = por %p122, %p123
    %p126 = scmp.ne.s32.totalorder %s111, %s125
    %p127 = scmp.eq.s32.totalorder %s17, 0
    %p128 = por %p126, %p127
    %s129 = ssub.s32 %s11, %s18
    %p130 = scmp.eq.s32.totalorder %s129, 0
    %s132 = sadd.s32 %s131, 1
    %s133 = scalar_select %p130, %s131, %s132
    %p136 = pneg %p130
    %p137 = scmp.eq.s32.totalorder %s11, 1
    %p138 = por %p136, %p137
    %p139 = scmp.ne.s32.totalorder %s131, %s134
    %p140 = scmp.eq.s32.totalorder %s11, 0
    %p141 = por %p139, %p140
    %p142 = scmp.ne.s32.totalorder %s131, %s134
    %p143 = scmp.eq.s32.totalorder %s16, 1
    %p144 = por %p142, %p143
    %p145 = scmp.ne.s32.totalorder %s134, %s135
    %p146 = scmp.eq.s32.totalorder %s16, 0
    %p147 = por %p145, %p146
    %p148 = scmp.ne.s32.totalorder %s134, %s135
    %p149 = scmp.eq.s32.totalorder %s17, 1
    %p150 = por %p148, %p149
    %p152 = scmp.ne.s32.totalorder %s135, %s151
    %p153 = scmp.eq.s32.totalorder %s17, 0
    %p154 = por %p152, %p153
    %p155 = scmp.le.s32.totalorder 1, %s11
    %p156 = scmp.lt.s32.totalorder %s11, 3
    %p157 = pnand %p155, %p156
    %p158 = pneg %p157
    // Predicated region
    $region9: #{_lambda_.1} parent=5 // pred_check
      _
    $region10: #{_lambda_.1} parent=5 // pred_check_branch
      %160 = sbr.rel (%p157) target = $region12
    $region11: #{_lambda_.1} parent=5 // pred_region
      %s161 = ssub.s32 %s11, 1
      // Predicated region
      $region13: #{_lambda_.1} parent=11 // pred_check
        %p162 = pneg %p58
      $region14: #{_lambda_.1} parent=11 // pred_check_branch
        %164 = sbr.rel (%p162) target = $region16
      $region15: #{_lambda_.1} parent=11 // pred_region
        _
      $region16: #{_lambda_.1} parent=11 // pred_fallthru
        _
      // Predicated region
      $region17: #{_lambda_.1} parent=11 // pred_check
        %p165 = pneg %p79
      $region18: #{_lambda_.1} parent=11 // pred_check_branch
        %167 = sbr.rel (%p165) target = $region20
      $region19: #{_lambda_.1} parent=11 // pred_region
        _
      $region20: #{_lambda_.1} parent=11 // pred_fallthru
        _
      // Predicated region
      $region21: #{_lambda_.1} parent=11 // pred_check
        %p168 = pneg %p100
      $region22: #{_lambda_.1} parent=11 // pred_check_branch
        %170 = sbr.rel (%p168) target = $region24
      $region23: #{_lambda_.1} parent=11 // pred_region
        _
      $region24: #{_lambda_.1} parent=11 // pred_fallthru
        _
      // Predicated region
      $region25: #{_lambda_.1} parent=11 // pred_check
        %p171 = pneg %p121
      $region26: #{_lambda_.1} parent=11 // pred_check_branch
        %173 = sbr.rel (%p171) target = $region28
      $region27: #{_lambda_.1} parent=11 // pred_region
        _
      $region28: #{_lambda_.1} parent=11 // pred_fallthru
        _
    $region12: #{_lambda_.1} parent=5 // pred_fallthru
      _
    %p174 = scmp.lt.s32.totalorder %s11, 2
    // Predicated region
    $region29: #{_lambda_.1} parent=5 // pred_check
      %p175 = pneg %p174
    $region30: #{_lambda_.1} parent=5 // pred_check_branch
      %177 = sbr.rel (%p175) target = $region32
    $region31: #{_lambda_.1} parent=5 // pred_region
      // Predicated region
      $region33: #{_lambda_.1} parent=31 // pred_check
        %p178 = pneg %p31
      $region34: #{_lambda_.1} parent=31 // pred_check_branch
        %180 = sbr.rel (%p178) target = $region36
      $region35: #{_lambda_.1} parent=31 // pred_region
        %p181 = scmp.lt.s32.totalorder %s11, 1
        %s182 = scalar_select %p181, %s11, 1
        %s183 = smul.addr %s182, 54
        %s184 = smul.addr %s183, 4
        %s185 = scalar_lea.vmem %s0, %s184
      $region36: #{_lambda_.1} parent=31 // pred_fallthru
        _
    $region32: #{_lambda_.1} parent=5 // pred_fallthru
      _
    %p186 = scmp.le.s32.totalorder 1, %s11
    %p187 = scmp.lt.s32.totalorder %s11, 3
    %p188 = pnand %p186, %p187
    %p189 = pneg %p188
    // Predicated region
    $region37: #{_lambda_.1} parent=5 // pred_check
      _
    $region38: #{_lambda_.1} parent=5 // pred_check_branch
      %191 = sbr.rel (%p188) target = $region40
    $region39: #{_lambda_.1} parent=5 // pred_region
      %s192 = ssub.s32 %s11, 1
      %p193 = scmp.lt.s32.totalorder %s16, 1
      %s194 = scalar_select %p193, %s16, 1
      %s195 = smul.addr %s194, 54
      %s196 = smul.addr %s195, 4
      %s197 = scalar_lea.vmem %s0, %s196
      %p198 = pneg %p37
      %p199 = pneg %p34
      %p200 = pneg %p58
      %p201 = pneg %p55
      %p202 = pneg %p79
      %p203 = pneg %p76
      %p204 = pneg %p100
      %p205 = pneg %p97
      %p206 = pneg %p121
      %p207 = pneg %p118
      %p208 = pneg %p147
      %p209 = pneg %p144
      %p210 = scmp.lt.s32.totalorder %s16, 1
      %s211 = scalar_select %p210, %s16, 1
      %s212 = smul.addr %s211, 2
      %s213 = smul.addr %s212, 8
      %s214 = scalar_lea.vmem %s5, %s213
      %p215 = scmp.lt.s32.totalorder %s16, 1
      %s216 = scalar_select %p215, %s16, 1
      %s217 = smul.addr %s216, 54
      %s218 = smul.addr %s217, 4
      %s219 = scalar_lea.vmem %s0, %s218
      %p220 = scmp.lt.s32.totalorder %s16, 1
      %s221 = scalar_select %p220, %s16, 1
      %s222 = smul.addr %s221, 2
      %s223 = smul.addr %s222, 8
      %s224 = scalar_lea.vmem %s5, %s223
      %v226 = vld [vmem:[%s219] sm:$0xf]
      %v227 = vld [vmem:[%s219 + $0x4] sm:$0xf]
      %v228 = vld [vmem:[%s219 + $0xc] sm:$0xf]
      %v229 = vld [vmem:[%s219 + $0x10] sm:$0xf]
      %v230 = vld [vmem:[%s219 + $0x18] sm:$0xf]
      %v231 = vld [vmem:[%s219 + $0x1c] sm:$0xf]
      %v232 = vld [vmem:[%s219 + $0x24] sm:$0xf]
      %v233 = vld [vmem:[%s219 + $0x28] sm:$0xf]
      %v234 = vld [vmem:[%s219 + $0x30] sm:$0xf]
      %v235 = vld [vmem:[%s219 + $0x34] sm:$0xf]
      %v236 = vld [vmem:[%s219 + $0x3c] sm:$0xf]
      %v237 = vld [vmem:[%s219 + $0x40] sm:$0xf]
      %v238 = vld [vmem:[%s219 + $0x48] sm:$0xf]
      %v239 = vld [vmem:[%s219 + $0x4c] sm:$0xf]
      %v240 = vld [vmem:[%s219 + $0x54] sm:$0xf]
      %v241 = vld [vmem:[%s219 + $0x58] sm:$0xf]
      %v242 = vld [vmem:[%s219 + $0x60] sm:$0xf]
      %v243 = vld [vmem:[%s219 + $0x64] sm:$0xf]
      %v244 = vld [vmem:[%s219 + $0x6c] sm:$0xf]
      %v245 = vld [vmem:[%s219 + $0x70] sm:$0xf]
      %v246 = vld [vmem:[%s219 + $0x78] sm:$0xf]
      %v247 = vld [vmem:[%s219 + $0x7c] sm:$0xf]
      %v248 = vld [vmem:[%s219 + $0x84] sm:$0xf]
      %v249 = vld [vmem:[%s219 + $0x88] sm:$0xf]
      %v250 = vld [vmem:[%s219 + $0x90] sm:$0xf]
      %v251 = vld [vmem:[%s219 + $0x94] sm:$0xf]
      %v252 = vld [vmem:[%s219 + $0x9c] sm:$0xf]
      %v253 = vld [vmem:[%s219 + $0xa0] sm:$0xf]
      %v254 = vld [vmem:[%s219 + $0xa8] sm:$0xf]
      %v255 = vld [vmem:[%s219 + $0xac] sm:$0xf]
      %v256 = vld [vmem:[%s219 + $0xb4] sm:$0xf]
      %v257 = vld [vmem:[%s219 + $0xb8] sm:$0xf]
      %v258 = vld [vmem:[%s1] sm:$0xf]
      %v259 = vld [vmem:[%s1 + $0x4] sm:$0xf]
      %v260 = vld [vmem:[%s1 + $0x8] sm:$0xf]
      %v261 = vld [vmem:[%s1 + $0xc] sm:$0xf]
      %v262 = vld [vmem:[%s219 + $0x8] sm:$0x1]
      %v263 = vld [vmem:[%s219 + $0x14] sm:$0x1]
      %v264 = vld [vmem:[%s219 + $0x20] sm:$0x1]
      %v265 = vld [vmem:[%s219 + $0x2c] sm:$0x1]
      %v266 = vld [vmem:[%s219 + $0x38] sm:$0x1]
      %v267 = vld [vmem:[%s219 + $0x44] sm:$0x1]
      %v268 = vld [vmem:[%s219 + $0x50] sm:$0x1]
      %v269 = vld [vmem:[%s219 + $0x5c] sm:$0x1]
      %v270 = vld [vmem:[%s219 + $0x68] sm:$0x1]
      %v271 = vld [vmem:[%s219 + $0x74] sm:$0x1]
      %v272 = vld [vmem:[%s219 + $0x80] sm:$0x1]
      %v273 = vld [vmem:[%s219 + $0x8c] sm:$0x1]
      %v274 = vld [vmem:[%s219 + $0x98] sm:$0x1]
      %v275 = vld [vmem:[%s219 + $0xa4] sm:$0x1]
      %v276 = vld [vmem:[%s219 + $0xb0] sm:$0x1]
      %v277 = vld [vmem:[%s219 + $0xbc] sm:$0x1]
      %vm278 = vsmask.f32 3328
      %vm279 = vsmask.f32 7440
      %vm280 = vmor %vm278, %vm279
      %v282 = vshrl.u32 %v226, 16
      %v284 = vrot.slane %v282, 4
      %v285 = vshll.u32 %v226, 16
      %v287 = vrot.slane %v285, 5
      %v288 = vor.u32 %v284, %v287
      %v289 = vrot.slane %v288, 4
      %v291 = vshll.u32 %v227, 16
      %v293 = vrot.slane %v291, 5
      %v294 = vsel %vm280, %v289, %v293
      %v295 = vshrl.u32 %v227, 16
      %v297 = vrot.slane %v295, 4
      %v298 = vor.u32 %v297, %v293
      %v299 = vrot.slane %v298, 4
      %v301 = vshll.u32 %v262, 16
      %v303 = vrot.slane %v301, 5
      %v304 = vsel %vm280, %v299, %v303
      %v306 = vshrl.u32 %v228, 16
      %v308 = vrot.slane %v306, 4
      %v309 = vshll.u32 %v228, 16
      %v311 = vrot.slane %v309, 5
      %v312 = vor.u32 %v308, %v311
      %v313 = vrot.slane %v312, 4
      %v315 = vshll.u32 %v229, 16
      %v317 = vrot.slane %v315, 5
      %v318 = vsel %vm280, %v313, %v317
      %v319 = vshrl.u32 %v229, 16
      %v321 = vrot.slane %v319, 4
      %v322 = vor.u32 %v321, %v317
      %v323 = vrot.slane %v322, 4
      %v325 = vshll.u32 %v263, 16
      %v327 = vrot.slane %v325, 5
      %v328 = vsel %vm280, %v323, %v327
      %v330 = vshrl.u32 %v230, 16
      %v332 = vrot.slane %v330, 4
      %v333 = vshll.u32 %v230, 16
      %v335 = vrot.slane %v333, 5
      %v336 = vor.u32 %v332, %v335
      %v337 = vrot.slane %v336, 4
      %v339 = vshll.u32 %v231, 16
      %v341 = vrot.slane %v339, 5
      %v342 = vsel %vm280, %v337, %v341
      %v343 = vshrl.u32 %v231, 16
      %v345 = vrot.slane %v343, 4
      %v346 = vor.u32 %v345, %v341
      %v347 = vrot.slane %v346, 4
      %v349 = vshll.u32 %v264, 16
      %v351 = vrot.slane %v349, 5
      %v352 = vsel %vm280, %v347, %v351
      %v354 = vshrl.u32 %v232, 16
      %v356 = vrot.slane %v354, 4
      %v357 = vshll.u32 %v232, 16
      %v359 = vrot.slane %v357, 5
      %v360 = vor.u32 %v356, %v359
      %v361 = vrot.slane %v360, 4
      %v363 = vshll.u32 %v233, 16
      %v365 = vrot.slane %v363, 5
      %v366 = vsel %vm280, %v361, %v365
      %v367 = vshrl.u32 %v233, 16
      %v369 = vrot.slane %v367, 4
      %v370 = vor.u32 %v369, %v365
      %v371 = vrot.slane %v370, 4
      %v373 = vshll.u32 %v265, 16
      %v375 = vrot.slane %v373, 5
      %v376 = vsel %vm280, %v371, %v375
      %v378 = vshrl.u32 %v234, 16
      %v380 = vrot.slane %v378, 4
      %v381 = vshll.u32 %v234, 16
      %v383 = vrot.slane %v381, 5
      %v384 = vor.u32 %v380, %v383
      %v385 = vrot.slane %v384, 4
      %v387 = vshll.u32 %v235, 16
      %v389 = vrot.slane %v387, 5
      %v390 = vsel %vm280, %v385, %v389
      %v391 = vshrl.u32 %v235, 16
      %v393 = vrot.slane %v391, 4
      %v394 = vor.u32 %v393, %v389
      %v395 = vrot.slane %v394, 4
      %v397 = vshll.u32 %v266, 16
      %v399 = vrot.slane %v397, 5
      %v400 = vsel %vm280, %v395, %v399
      %v402 = vshrl.u32 %v236, 16
      %v404 = vrot.slane %v402, 4
      %v405 = vshll.u32 %v236, 16
      %v407 = vrot.slane %v405, 5
      %v408 = vor.u32 %v404, %v407
      %v409 = vrot.slane %v408, 4
      %v411 = vshll.u32 %v237, 16
      %v413 = vrot.slane %v411, 5
      %v414 = vsel %vm280, %v409, %v413
      %v415 = vshrl.u32 %v237, 16
      %v417 = vrot.slane %v415, 4
      %v418 = vor.u32 %v417, %v413
      %v419 = vrot.slane %v418, 4
      %v421 = vshll.u32 %v267, 16
      %v423 = vrot.slane %v421, 5
      %v424 = vsel %vm280, %v419, %v423
      %v426 = vshrl.u32 %v238, 16
      %v428 = vrot.slane %v426, 4
      %v429 = vshll.u32 %v238, 16
      %v431 = vrot.slane %v429, 5
      %v432 = vor.u32 %v428, %v431
      %v433 = vrot.slane %v432, 4
      %v435 = vshll.u32 %v239, 16
      %v437 = vrot.slane %v435, 5
      %v438 = vsel %vm280, %v433, %v437
      %v439 = vshrl.u32 %v239, 16
      %v441 = vrot.slane %v439, 4
      %v442 = vor.u32 %v441, %v437
      %v443 = vrot.slane %v442, 4
      %v445 = vshll.u32 %v268, 16
      %v447 = vrot.slane %v445, 5
      %v448 = vsel %vm280, %v443, %v447
      %v450 = vshrl.u32 %v240, 16
      %v452 = vrot.slane %v450, 4
      %v453 = vshll.u32 %v240, 16
      %v455 = vrot.slane %v453, 5
      %v456 = vor.u32 %v452, %v455
      %v457 = vrot.slane %v456, 4
      %v459 = vshll.u32 %v241, 16
      %v461 = vrot.slane %v459, 5
      %v462 = vsel %vm280, %v457, %v461
      %v463 = vshrl.u32 %v241, 16
      %v465 = vrot.slane %v463, 4
      %v466 = vor.u32 %v465, %v461
      %v467 = vrot.slane %v466, 4
      %v469 = vshll.u32 %v269, 16
      %v471 = vrot.slane %v469, 5
      %v472 = vsel %vm280, %v467, %v471
      %v474 = vshrl.u32 %v242, 16
      %v476 = vrot.slane %v474, 4
      %v477 = vshll.u32 %v242, 16
      %v479 = vrot.slane %v477, 5
      %v480 = vor.u32 %v476, %v479
      %v481 = vrot.slane %v480, 4
      %v483 = vshll.u32 %v243, 16
      %v485 = vrot.slane %v483, 5
      %v486 = vsel %vm280, %v481, %v485
      %v487 = vshrl.u32 %v243, 16
      %v489 = vrot.slane %v487, 4
      %v490 = vor.u32 %v489, %v485
      %v491 = vrot.slane %v490, 4
      %v493 = vshll.u32 %v270, 16
      %v495 = vrot.slane %v493, 5
      %v496 = vsel %vm280, %v491, %v495
      %v498 = vshrl.u32 %v244, 16
      %v500 = vrot.slane %v498, 4
      %v501 = vshll.u32 %v244, 16
      %v503 = vrot.slane %v501, 5
      %v504 = vor.u32 %v500, %v503
      %v505 = vrot.slane %v504, 4
      %v507 = vshll.u32 %v245, 16
      %v509 = vrot.slane %v507, 5
      %v510 = vsel %vm280, %v505, %v509
      %v511 = vshrl.u32 %v245, 16
      %v513 = vrot.slane %v511, 4
      %v514 = vor.u32 %v513, %v509
      %v515 = vrot.slane %v514, 4
      %v517 = vshll.u32 %v271, 16
      %v519 = vrot.slane %v517, 5
      %v520 = vsel %vm280, %v515, %v519
      %v522 = vshrl.u32 %v246, 16
      %v524 = vrot.slane %v522, 4
      %v525 = vshll.u32 %v246, 16
      %v527 = vrot.slane %v525, 5
      %v528 = vor.u32 %v524, %v527
      %v529 = vrot.slane %v528, 4
      %v531 = vshll.u32 %v247, 16
      %v533 = vrot.slane %v531, 5
      %v534 = vsel %vm280, %v529, %v533
      %v535 = vshrl.u32 %v247, 16
      %v537 = vrot.slane %v535, 4
      %v538 = vor.u32 %v537, %v533
      %v539 = vrot.slane %v538, 4
      %v541 = vshll.u32 %v272, 16
      %v543 = vrot.slane %v541, 5
      %v544 = vsel %vm280, %v539, %v543
      %v546 = vshrl.u32 %v248, 16
      %v548 = vrot.slane %v546, 4
      %v549 = vshll.u32 %v248, 16
      %v551 = vrot.slane %v549, 5
      %v552 = vor.u32 %v548, %v551
      %v553 = vrot.slane %v552, 4
      %v555 = vshll.u32 %v249, 16
      %v557 = vrot.slane %v555, 5
      %v558 = vsel %vm280, %v553, %v557
      %v559 = vshrl.u32 %v249, 16
      %v561 = vrot.slane %v559, 4
      %v562 = vor.u32 %v561, %v557
      %v563 = vrot.slane %v562, 4
      %v565 = vshll.u32 %v273, 16
      %v567 = vrot.slane %v565, 5
      %v568 = vsel %vm280, %v563, %v567
      %v570 = vshrl.u32 %v250, 16
      %v572 = vrot.slane %v570, 4
      %v573 = vshll.u32 %v250, 16
      %v575 = vrot.slane %v573, 5
      %v576 = vor.u32 %v572, %v575
      %v577 = vrot.slane %v576, 4
      %v579 = vshll.u32 %v251, 16
      %v581 = vrot.slane %v579, 5
      %v582 = vsel %vm280, %v577, %v581
      %v583 = vshrl.u32 %v251, 16
      %v585 = vrot.slane %v583, 4
      %v586 = vor.u32 %v585, %v581
      %v587 = vrot.slane %v586, 4
      %v589 = vshll.u32 %v274, 16
      %v591 = vrot.slane %v589, 5
      %v592 = vsel %vm280, %v587, %v591
      %v594 = vshrl.u32 %v252, 16
      %v596 = vrot.slane %v594, 4
      %v597 = vshll.u32 %v252, 16
      %v599 = vrot.slane %v597, 5
      %v600 = vor.u32 %v596, %v599
      %v601 = vrot.slane %v600, 4
      %v603 = vshll.u32 %v253, 16
      %v605 = vrot.slane %v603, 5
      %v606 = vsel %vm280, %v601, %v605
      %v607 = vshrl.u32 %v253, 16
      %v609 = vrot.slane %v607, 4
      %v610 = vor.u32 %v609, %v605
      %v611 = vrot.slane %v610, 4
      %v613 = vshll.u32 %v275, 16
      %v615 = vrot.slane %v613, 5
      %v616 = vsel %vm280, %v611, %v615
      %v618 = vshrl.u32 %v254, 16
      %v620 = vrot.slane %v618, 4
      %v621 = vshll.u32 %v254, 16
      %v623 = vrot.slane %v621, 5
      %v624 = vor.u32 %v620, %v623
      %v625 = vrot.slane %v624, 4
      %v627 = vshll.u32 %v255, 16
      %v629 = vrot.slane %v627, 5
      %v630 = vsel %vm280, %v625, %v629
      %v631 = vshrl.u32 %v255, 16
      %v633 = vrot.slane %v631, 4
      %v634 = vor.u32 %v633, %v629
      %v635 = vrot.slane %v634, 4
      %v637 = vshll.u32 %v276, 16
      %v639 = vrot.slane %v637, 5
      %v640 = vsel %vm280, %v635, %v639
      %v642 = vshrl.u32 %v256, 16
      %v644 = vrot.slane %v642, 4
      %v645 = vshll.u32 %v256, 16
      %v647 = vrot.slane %v645, 5
      %v648 = vor.u32 %v644, %v647
      %v649 = vrot.slane %v648, 4
      %v651 = vshll.u32 %v257, 16
      %v653 = vrot.slane %v651, 5
      %v654 = vsel %vm280, %v649, %v653
      %v655 = vshrl.u32 %v257, 16
      %v657 = vrot.slane %v655, 4
      %v658 = vor.u32 %v657, %v653
      %v659 = vrot.slane %v658, 4
      %v661 = vshll.u32 %v277, 16
      %v663 = vrot.slane %v661, 5
      %v664 = vsel %vm280, %v659, %v663
      %s665 = scalar_lea.vmem %s1, 16
      %v666 = vld [vmem:[%s665] sm:$0xf]
      %v667 = vld [vmem:[%s665 + $0x4] sm:$0xf]
      %v668 = vld [vmem:[%s665 + $0x8] sm:$0xf]
      %v669 = vld [vmem:[%s665 + $0xc] sm:$0xf]
      %v670 = vunpack.c.l.b16 %v294
      %v671 = vunpack.c.l.b16 %v304
      %v672 = vunpack.c.l.b16 %v318
      %v673 = vunpack.c.l.b16 %v328
      %v674 = vunpack.c.l.b16 %v342
      %v675 = vunpack.c.l.b16 %v352
      %v676 = vunpack.c.l.b16 %v366
      %v677 = vunpack.c.l.b16 %v376
      %v678 = vunpack.c.l.b16 %v390
      %v679 = vunpack.c.l.b16 %v400
      %v680 = vunpack.c.l.b16 %v414
      %v681 = vunpack.c.l.b16 %v424
      %v682 = vunpack.c.l.b16 %v438
      %v683 = vunpack.c.l.b16 %v448
      %v684 = vunpack.c.l.b16 %v462
      %v685 = vunpack.c.l.b16 %v472
      %v686 = vunpack.c.l.b16 %v486
      %v687 = vunpack.c.l.b16 %v496
      %v688 = vunpack.c.l.b16 %v510
      %v689 = vunpack.c.l.b16 %v520
      %v690 = vunpack.c.l.b16 %v534
      %v691 = vunpack.c.l.b16 %v544
      %v692 = vunpack.c.l.b16 %v558
      %v693 = vunpack.c.l.b16 %v568
      %v694 = vunpack.c.l.b16 %v582
      %v695 = vunpack.c.l.b16 %v592
      %v696 = vunpack.c.l.b16 %v606
      %v697 = vunpack.c.l.b16 %v616
      %v698 = vunpack.c.l.b16 %v630
      %v699 = vunpack.c.l.b16 %v640
      %v700 = vunpack.c.l.b16 %v654
      %v701 = vunpack.c.l.b16 %v664
      %v702 = vpack.c.b16 %v671, %v670
      %v703 = vpack.c.b16 %v673, %v672
      %v704 = vpack.c.b16 %v675, %v674
      %v705 = vpack.c.b16 %v677, %v676
      %v706 = vpack.c.b16 %v679, %v678
      %v707 = vpack.c.b16 %v681, %v680
      %v708 = vpack.c.b16 %v683, %v682
      %v709 = vpack.c.b16 %v685, %v684
      %v710 = vpack.c.b16 %v687, %v686
      %v711 = vpack.c.b16 %v689, %v688
      %v712 = vpack.c.b16 %v691, %v690
      %v713 = vpack.c.b16 %v693, %v692
      %v714 = vpack.c.b16 %v695, %v694
      %v715 = vpack.c.b16 %v697, %v696
      %v716 = vpack.c.b16 %v699, %v698
      %v717 = vpack.c.b16 %v701, %v700
      %v722 = vunpack.c.l.b16 %v666
      %v723 = vunpack.c.l.b16 %v667
      %v724 = vunpack.c.l.b16 %v668
      %v725 = vunpack.c.l.b16 %v669
      %v726 = vpack.c.b16 %v723, %v722
      %v727 = vpack.c.b16 %v725, %v724
      %vm730 = vcmask 261120
      %v732 = vsel %vm730, %v702, 0
      %v735 = vsel %vm730, %v703, 0
      %v738 = vsel %vm730, %v704, 0
      %v741 = vsel %vm730, %v705, 0
      %v744 = vsel %vm730, %v706, 0
      %v747 = vsel %vm730, %v707, 0
      %v750 = vsel %vm730, %v708, 0
      %v753 = vsel %vm730, %v709, 0
      %v756 = vsel %vm730, %v710, 0
      %v759 = vsel %vm730, %v711, 0
      %v762 = vsel %vm730, %v712, 0
      %v765 = vsel %vm730, %v713, 0
      %v768 = vsel %vm730, %v714, 0
      %v771 = vsel %vm730, %v715, 0
      %v774 = vsel %vm730, %v716, 0
      %v777 = vsel %vm730, %v717, 0
      %779 = vmatpush.bf16.msra.mxu0 0
      %780 = vmatpush.bf16.msra.mxu0 0
      %781 = vmatpush.bf16.msra.mxu0 0
      %782 = vmatpush.bf16.msra.mxu0 0
      %783 = vmatpush.bf16.msra.mxu0 0
      %784 = vmatpush.bf16.msra.mxu0 0
      %785 = vmatpush.bf16.msra.mxu0 %v727
      %786 = vmatpush.bf16.msra.mxu0 %v726
      %787 = vmatmul.bf16.gmra.mxu0 %v732
      %v788 = vpop.f32.mrf.mxu0
      %v789 = vadd.f32 0.0, %v788
      %v790 = vpop.f32.mrf.mxu0
      %v791 = vadd.f32 0.0, %v790
      %792 = vmatmul.bf16.gmra.mxu0 %v735
      %v793 = vpop.f32.mrf.mxu0
      %v794 = vadd.f32 0.0, %v793
      %v795 = vpop.f32.mrf.mxu0
      %v796 = vadd.f32 0.0, %v795
      %797 = vmatmul.bf16.gmra.mxu0 %v738
      %v798 = vpop.f32.mrf.mxu0
      %v799 = vadd.f32 0.0, %v798
      %v800 = vpop.f32.mrf.mxu0
      %v801 = vadd.f32 0.0, %v800
      %802 = vmatmul.bf16.gmra.mxu0 %v741
      %v803 = vpop.f32.mrf.mxu0
      %v804 = vadd.f32 0.0, %v803
      %v805 = vpop.f32.mrf.mxu0
      %v806 = vadd.f32 0.0, %v805
      %807 = vmatmul.bf16.gmra.mxu0 %v744
      %v808 = vpop.f32.mrf.mxu0
      %v809 = vadd.f32 0.0, %v808
      %v810 = vpop.f32.mrf.mxu0
      %v811 = vadd.f32 0.0, %v810
      %812 = vmatmul.bf16.gmra.mxu0 %v747
      %v813 = vpop.f32.mrf.mxu0
      %v814 = vadd.f32 0.0, %v813
      %v815 = vpop.f32.mrf.mxu0
      %v816 = vadd.f32 0.0, %v815
      %817 = vmatmul.bf16.gmra.mxu0 %v750
      %v818 = vpop.f32.mrf.mxu0
      %v819 = vadd.f32 0.0, %v818
      %v820 = vpop.f32.mrf.mxu0
      %v821 = vadd.f32 0.0, %v820
      %822 = vmatmul.bf16.gmra.mxu0 %v753
      %v823 = vpop.f32.mrf.mxu0
      %v824 = vadd.f32 0.0, %v823
      %v825 = vpop.f32.mrf.mxu0
      %v826 = vadd.f32 0.0, %v825
      %827 = vmatmul.bf16.gmra.mxu0 %v756
      %v828 = vpop.f32.mrf.mxu0
      %v829 = vadd.f32 0.0, %v828
      %v830 = vpop.f32.mrf.mxu0
      %v831 = vadd.f32 0.0, %v830
      %832 = vmatmul.bf16.gmra.mxu0 %v759
      %v833 = vpop.f32.mrf.mxu0
      %v834 = vadd.f32 0.0, %v833
      %v835 = vpop.f32.mrf.mxu0
      %v836 = vadd.f32 0.0, %v835
      %837 = vmatmul.bf16.gmra.mxu0 %v762
      %v838 = vpop.f32.mrf.mxu0
      %v839 = vadd.f32 0.0, %v838
      %v840 = vpop.f32.mrf.mxu0
      %v841 = vadd.f32 0.0, %v840
      %842 = vmatmul.bf16.gmra.mxu0 %v765
      %v843 = vpop.f32.mrf.mxu0
      %v844 = vadd.f32 0.0, %v843
      %v845 = vpop.f32.mrf.mxu0
      %v846 = vadd.f32 0.0, %v845
      %847 = vmatmul.bf16.gmra.mxu0 %v768
      %v848 = vpop.f32.mrf.mxu0
      %v849 = vadd.f32 0.0, %v848
      %v850 = vpop.f32.mrf.mxu0
      %v851 = vadd.f32 0.0, %v850
      %852 = vmatmul.bf16.gmra.mxu0 %v771
      %v853 = vpop.f32.mrf.mxu0
      %v854 = vadd.f32 0.0, %v853
      %v855 = vpop.f32.mrf.mxu0
      %v856 = vadd.f32 0.0, %v855
      %857 = vmatmul.bf16.gmra.mxu0 %v774
      %v858 = vpop.f32.mrf.mxu0
      %v859 = vadd.f32 0.0, %v858
      %v860 = vpop.f32.mrf.mxu0
      %v861 = vadd.f32 0.0, %v860
      %862 = vmatmul.bf16.gmra.mxu0 %v777
      %v863 = vpop.f32.mrf.mxu0
      %v864 = vadd.f32 0.0, %v863
      %v865 = vpop.f32.mrf.mxu0
      %v866 = vadd.f32 0.0, %v865
      %867 = vdwg.mxu0
      %v900 = vunpack.c.l.b16 %v226
      %v901 = vunpack.c.l.b16 %v227
      %v902 = vunpack.c.l.b16 %v228
      %v903 = vunpack.c.l.b16 %v229
      %v904 = vunpack.c.l.b16 %v230
      %v905 = vunpack.c.l.b16 %v231
      %v906 = vunpack.c.l.b16 %v232
      %v907 = vunpack.c.l.b16 %v233
      %v908 = vunpack.c.l.b16 %v234
      %v909 = vunpack.c.l.b16 %v235
      %v910 = vunpack.c.l.b16 %v236
      %v911 = vunpack.c.l.b16 %v237
      %v912 = vunpack.c.l.b16 %v238
      %v913 = vunpack.c.l.b16 %v239
      %v914 = vunpack.c.l.b16 %v240
      %v915 = vunpack.c.l.b16 %v241
      %v916 = vunpack.c.l.b16 %v242
      %v917 = vunpack.c.l.b16 %v243
      %v918 = vunpack.c.l.b16 %v244
      %v919 = vunpack.c.l.b16 %v245
      %v920 = vunpack.c.l.b16 %v246
      %v921 = vunpack.c.l.b16 %v247
      %v922 = vunpack.c.l.b16 %v248
      %v923 = vunpack.c.l.b16 %v249
      %v924 = vunpack.c.l.b16 %v250
      %v925 = vunpack.c.l.b16 %v251
      %v926 = vunpack.c.l.b16 %v252
      %v927 = vunpack.c.l.b16 %v253
      %v928 = vunpack.c.l.b16 %v254
      %v929 = vunpack.c.l.b16 %v255
      %v930 = vunpack.c.l.b16 %v256
      %v931 = vunpack.c.l.b16 %v257
      %v932 = vpack.c.b16 %v901, %v900
      %v933 = vpack.c.b16 %v903, %v902
      %v934 = vpack.c.b16 %v905, %v904
      %v935 = vpack.c.b16 %v907, %v906
      %v936 = vpack.c.b16 %v909, %v908
      %v937 = vpack.c.b16 %v911, %v910
      %v938 = vpack.c.b16 %v913, %v912
      %v939 = vpack.c.b16 %v915, %v914
      %v940 = vpack.c.b16 %v917, %v916
      %v941 = vpack.c.b16 %v919, %v918
      %v942 = vpack.c.b16 %v921, %v920
      %v943 = vpack.c.b16 %v923, %v922
      %v944 = vpack.c.b16 %v925, %v924
      %v945 = vpack.c.b16 %v927, %v926
      %v946 = vpack.c.b16 %v929, %v928
      %v947 = vpack.c.b16 %v931, %v930
      %v952 = vunpack.c.l.b16 %v258
      %v953 = vunpack.c.l.b16 %v259
      %v954 = vunpack.c.l.b16 %v260
      %v955 = vunpack.c.l.b16 %v261
      %v956 = vpack.c.b16 %v953, %v952
      %v957 = vpack.c.b16 %v955, %v954
      %v961 = vsel %vm730, %v932, 0
      %v964 = vsel %vm730, %v933, 0
      %v967 = vsel %vm730, %v934, 0
      %v970 = vsel %vm730, %v935, 0
      %v973 = vsel %vm730, %v936, 0
      %v976 = vsel %vm730, %v937, 0
      %v979 = vsel %vm730, %v938, 0
      %v982 = vsel %vm730, %v939, 0
      %v985 = vsel %vm730, %v940, 0
      %v988 = vsel %vm730, %v941, 0
      %v991 = vsel %vm730, %v942, 0
      %v994 = vsel %vm730, %v943, 0
      %v997 = vsel %vm730, %v944, 0
      %v1000 = vsel %vm730, %v945, 0
      %v1003 = vsel %vm730, %v946, 0
      %v1006 = vsel %vm730, %v947, 0
      %1008 = vmatpush.bf16.msra.mxu0 0
      %1009 = vmatpush.bf16.msra.mxu0 0
      %1010 = vmatpush.bf16.msra.mxu0 0
      %1011 = vmatpush.bf16.msra.mxu0 0
      %1012 = vmatpush.bf16.msra.mxu0 0
      %1013 = vmatpush.bf16.msra.mxu0 0
      %1014 = vmatpush.bf16.msra.mxu0 %v957
      %1015 = vmatpush.bf16.msra.mxu0 %v956
      %1016 = vmatmul.bf16.gmra.mxu0 %v961
      %v1017 = vpop.f32.mrf.mxu0
      %v1018 = vadd.f32 %v789, %v1017
      %v1019 = vpop.f32.mrf.mxu0
      %v1020 = vadd.f32 %v791, %v1019
      %1021 = vmatmul.bf16.gmra.mxu0 %v964
      %v1022 = vpop.f32.mrf.mxu0
      %v1023 = vadd.f32 %v794, %v1022
      %v1024 = vpop.f32.mrf.mxu0
      %v1025 = vadd.f32 %v796, %v1024
      %1026 = vmatmul.bf16.gmra.mxu0 %v967
      %v1027 = vpop.f32.mrf.mxu0
      %v1028 = vadd.f32 %v799, %v1027
      %v1029 = vpop.f32.mrf.mxu0
      %v1030 = vadd.f32 %v801, %v1029
      %1031 = vmatmul.bf16.gmra.mxu0 %v970
      %v1032 = vpop.f32.mrf.mxu0
      %v1033 = vadd.f32 %v804, %v1032
      %v1034 = vpop.f32.mrf.mxu0
      %v1035 = vadd.f32 %v806, %v1034
      %1036 = vmatmul.bf16.gmra.mxu0 %v973
      %v1037 = vpop.f32.mrf.mxu0
      %v1038 = vadd.f32 %v809, %v1037
      %v1039 = vpop.f32.mrf.mxu0
      %v1040 = vadd.f32 %v811, %v1039
      %1041 = vmatmul.bf16.gmra.mxu0 %v976
      %v1042 = vpop.f32.mrf.mxu0
      %v1043 = vadd.f32 %v814, %v1042
      %v1044 = vpop.f32.mrf.mxu0
      %v1045 = vadd.f32 %v816, %v1044
      %1046 = vmatmul.bf16.gmra.mxu0 %v979
      %v1047 = vpop.f32.mrf.mxu0
      %v1048 = vadd.f32 %v819, %v1047
      %v1049 = vpop.f32.mrf.mxu0
      %v1050 = vadd.f32 %v821, %v1049
      %1051 = vmatmul.bf16.gmra.mxu0 %v982
      %v1052 = vpop.f32.mrf.mxu0
      %v1053 = vadd.f32 %v824, %v1052
      %v1054 = vpop.f32.mrf.mxu0
      %v1055 = vadd.f32 %v826, %v1054
      %1056 = vmatmul.bf16.gmra.mxu0 %v985
      %v1057 = vpop.f32.mrf.mxu0
      %v1058 = vadd.f32 %v829, %v1057
      %v1059 = vpop.f32.mrf.mxu0
      %v1060 = vadd.f32 %v831, %v1059
      %1061 = vmatmul.bf16.gmra.mxu0 %v988
      %v1062 = vpop.f32.mrf.mxu0
      %v1063 = vadd.f32 %v834, %v1062
      %v1064 = vpop.f32.mrf.mxu0
      %v1065 = vadd.f32 %v836, %v1064
      %1066 = vmatmul.bf16.gmra.mxu0 %v991
      %v1067 = vpop.f32.mrf.mxu0
      %v1068 = vadd.f32 %v839, %v1067
      %v1069 = vpop.f32.mrf.mxu0
      %v1070 = vadd.f32 %v841, %v1069
      %1071 = vmatmul.bf16.gmra.mxu0 %v994
      %v1072 = vpop.f32.mrf.mxu0
      %v1073 = vadd.f32 %v844, %v1072
      %v1074 = vpop.f32.mrf.mxu0
      %v1075 = vadd.f32 %v846, %v1074
      %1076 = vmatmul.bf16.gmra.mxu0 %v997
      %v1077 = vpop.f32.mrf.mxu0
      %v1078 = vadd.f32 %v849, %v1077
      %v1079 = vpop.f32.mrf.mxu0
      %v1080 = vadd.f32 %v851, %v1079
      %1081 = vmatmul.bf16.gmra.mxu0 %v1000
      %v1082 = vpop.f32.mrf.mxu0
      %v1083 = vadd.f32 %v854, %v1082
      %v1084 = vpop.f32.mrf.mxu0
      %v1085 = vadd.f32 %v856, %v1084
      %1086 = vmatmul.bf16.gmra.mxu0 %v1003
      %v1087 = vpop.f32.mrf.mxu0
      %v1088 = vadd.f32 %v859, %v1087
      %v1089 = vpop.f32.mrf.mxu0
      %v1090 = vadd.f32 %v861, %v1089
      %1091 = vmatmul.bf16.gmra.mxu0 %v1006
      %v1092 = vpop.f32.mrf.mxu0
      %v1093 = vadd.f32 %v864, %v1092
      %v1094 = vpop.f32.mrf.mxu0
      %v1095 = vadd.f32 %v866, %v1094
      %1096 = vdwg.mxu0
      %v1097 = vld [vmem:[%s219] sm:$0xe]
      %v1098 = vld [vmem:[%s219 + $0xc] sm:$0xe]
      %v1099 = vld [vmem:[%s219 + $0x18] sm:$0xe]
      %v1100 = vld [vmem:[%s219 + $0x24] sm:$0xe]
      %v1101 = vld [vmem:[%s219 + $0x30] sm:$0xe]
      %v1102 = vld [vmem:[%s219 + $0x3c] sm:$0xe]
      %v1103 = vld [vmem:[%s219 + $0x48] sm:$0xe]
      %v1104 = vld [vmem:[%s219 + $0x54] sm:$0xe]
      %v1105 = vld [vmem:[%s219 + $0x60] sm:$0xe]
      %v1106 = vld [vmem:[%s219 + $0x6c] sm:$0xe]
      %v1107 = vld [vmem:[%s219 + $0x78] sm:$0xe]
      %v1108 = vld [vmem:[%s219 + $0x84] sm:$0xe]
      %v1109 = vld [vmem:[%s219 + $0x90] sm:$0xe]
      %v1110 = vld [vmem:[%s219 + $0x9c] sm:$0xe]
      %v1111 = vld [vmem:[%s219 + $0xa8] sm:$0xe]
      %v1112 = vld [vmem:[%s219 + $0xb4] sm:$0xe]
      %vm1145 = vcmask 1042432
      %vm1146 = vcmask 1046532
      %vm1147 = vmor %vm1145, %vm1146
      %v1148 = vrot.slane %v1097, 5
      %v1149 = vrot.slane %v1148, 4
      %v1150 = vrot.slane %v227, 5
      %v1151 = vsel %vm1147, %v1149, %v1150
      %v1152 = vrot.slane %v1150, 4
      %v1153 = vrot.slane %v262, 5
      %v1154 = vsel %vm1147, %v1152, %v1153
      %v1155 = vrot.slane %v1098, 5
      %v1156 = vrot.slane %v1155, 4
      %v1157 = vrot.slane %v229, 5
      %v1158 = vsel %vm1147, %v1156, %v1157
      %v1159 = vrot.slane %v1157, 4
      %v1160 = vrot.slane %v263, 5
      %v1161 = vsel %vm1147, %v1159, %v1160
      %v1162 = vrot.slane %v1099, 5
      %v1163 = vrot.slane %v1162, 4
      %v1164 = vrot.slane %v231, 5
      %v1165 = vsel %vm1147, %v1163, %v1164
      %v1166 = vrot.slane %v1164, 4
      %v1167 = vrot.slane %v264, 5
      %v1168 = vsel %vm1147, %v1166, %v1167
      %v1169 = vrot.slane %v1100, 5
      %v1170 = vrot.slane %v1169, 4
      %v1171 = vrot.slane %v233, 5
      %v1172 = vsel %vm1147, %v1170, %v1171
      %v1173 = vrot.slane %v1171, 4
      %v1174 = vrot.slane %v265, 5
      %v1175 = vsel %vm1147, %v1173, %v1174
      %v1176 = vrot.slane %v1101, 5
      %v1177 = vrot.slane %v1176, 4
      %v1178 = vrot.slane %v235, 5
      %v1179 = vsel %vm1147, %v1177, %v1178
      %v1180 = vrot.slane %v1178, 4
      %v1181 = vrot.slane %v266, 5
      %v1182 = vsel %vm1147, %v1180, %v1181
      %v1183 = vrot.slane %v1102, 5
      %v1184 = vrot.slane %v1183, 4
      %v1185 = vrot.slane %v237, 5
      %v1186 = vsel %vm1147, %v1184, %v1185
      %v1187 = vrot.slane %v1185, 4
      %v1188 = vrot.slane %v267, 5
      %v1189 = vsel %vm1147, %v1187, %v1188
      %v1190 = vrot.slane %v1103, 5
      %v1191 = vrot.slane %v1190, 4
      %v1192 = vrot.slane %v239, 5
      %v1193 = vsel %vm1147, %v1191, %v1192
      %v1194 = vrot.slane %v1192, 4
      %v1195 = vrot.slane %v268, 5
      %v1196 = vsel %vm1147, %v1194, %v1195
      %v1197 = vrot.slane %v1104, 5
      %v1198 = vrot.slane %v1197, 4
      %v1199 = vrot.slane %v241, 5
      %v1200 = vsel %vm1147, %v1198, %v1199
      %v1201 = vrot.slane %v1199, 4
      %v1202 = vrot.slane %v269, 5
      %v1203 = vsel %vm1147, %v1201, %v1202
      %v1204 = vrot.slane %v1105, 5
      %v1205 = vrot.slane %v1204, 4
      %v1206 = vrot.slane %v243, 5
      %v1207 = vsel %vm1147, %v1205, %v1206
      %v1208 = vrot.slane %v1206, 4
      %v1209 = vrot.slane %v270, 5
      %v1210 = vsel %vm1147, %v1208, %v1209
      %v1211 = vrot.slane %v1106, 5
      %v1212 = vrot.slane %v1211, 4
      %v1213 = vrot.slane %v245, 5
      %v1214 = vsel %vm1147, %v1212, %v1213
      %v1215 = vrot.slane %v1213, 4
      %v1216 = vrot.slane %v271, 5
      %v1217 = vsel %vm1147, %v1215, %v1216
      %v1218 = vrot.slane %v1107, 5
      %v1219 = vrot.slane %v1218, 4
      %v1220 = vrot.slane %v247, 5
      %v1221 = vsel %vm1147, %v1219, %v1220
      %v1222 = vrot.slane %v1220, 4
      %v1223 = vrot.slane %v272, 5
      %v1224 = vsel %vm1147, %v1222, %v1223
      %v1225 = vrot.slane %v1108, 5
      %v1226 = vrot.slane %v1225, 4
      %v1227 = vrot.slane %v249, 5
      %v1228 = vsel %vm1147, %v1226, %v1227
      %v1229 = vrot.slane %v1227, 4
      %v1230 = vrot.slane %v273, 5
      %v1231 = vsel %vm1147, %v1229, %v1230
      %v1232 = vrot.slane %v1109, 5
      %v1233 = vrot.slane %v1232, 4
      %v1234 = vrot.slane %v251, 5
      %v1235 = vsel %vm1147, %v1233, %v1234
      %v1236 = vrot.slane %v1234, 4
      %v1237 = vrot.slane %v274, 5
      %v1238 = vsel %vm1147, %v1236, %v1237
      %v1239 = vrot.slane %v1110, 5
      %v1240 = vrot.slane %v1239, 4
      %v1241 = vrot.slane %v253, 5
      %v1242 = vsel %vm1147, %v1240, %v1241
      %v1243 = vrot.slane %v1241, 4
      %v1244 = vrot.slane %v275, 5
      %v1245 = vsel %vm1147, %v1243, %v1244
      %v1246 = vrot.slane %v1111, 5
      %v1247 = vrot.slane %v1246, 4
      %v1248 = vrot.slane %v255, 5
      %v1249 = vsel %vm1147, %v1247, %v1248
      %v1250 = vrot.slane %v1248, 4
      %v1251 = vrot.slane %v276, 5
      %v1252 = vsel %vm1147, %v1250, %v1251
      %v1253 = vrot.slane %v1112, 5
      %v1254 = vrot.slane %v1253, 4
      %v1255 = vrot.slane %v257, 5
      %v1256 = vsel %vm1147, %v1254, %v1255
      %v1257 = vrot.slane %v1255, 4
      %v1258 = vrot.slane %v277, 5
      %v1259 = vsel %vm1147, %v1257, %v1258
      %s1260 = scalar_lea.vmem %s1, 32
      %v1261 = vld [vmem:[%s1260] sm:$0xf]
      %v1262 = vld [vmem:[%s1260 + $0x4] sm:$0xf]
      %v1263 = vld [vmem:[%s1260 + $0x8] sm:$0xf]
      %v1264 = vld [vmem:[%s1260 + $0xc] sm:$0xf]
      %v1265 = vunpack.c.l.b16 %v1151
      %v1266 = vunpack.c.l.b16 %v1154
      %v1267 = vunpack.c.l.b16 %v1158
      %v1268 = vunpack.c.l.b16 %v1161
      %v1269 = vunpack.c.l.b16 %v1165
      %v1270 = vunpack.c.l.b16 %v1168
      %v1271 = vunpack.c.l.b16 %v1172
      %v1272 = vunpack.c.l.b16 %v1175
      %v1273 = vunpack.c.l.b16 %v1179
      %v1274 = vunpack.c.l.b16 %v1182
      %v1275 = vunpack.c.l.b16 %v1186
      %v1276 = vunpack.c.l.b16 %v1189
      %v1277 = vunpack.c.l.b16 %v1193
      %v1278 = vunpack.c.l.b16 %v1196
      %v1279 = vunpack.c.l.b16 %v1200
      %v1280 = vunpack.c.l.b16 %v1203
      %v1281 = vunpack.c.l.b16 %v1207
      %v1282 = vunpack.c.l.b16 %v1210
      %v1283 = vunpack.c.l.b16 %v1214
      %v1284 = vunpack.c.l.b16 %v1217
      %v1285 = vunpack.c.l.b16 %v1221
      %v1286 = vunpack.c.l.b16 %v1224
      %v1287 = vunpack.c.l.b16 %v1228
      %v1288 = vunpack.c.l.b16 %v1231
      %v1289 = vunpack.c.l.b16 %v1235
      %v1290 = vunpack.c.l.b16 %v1238
      %v1291 = vunpack.c.l.b16 %v1242
      %v1292 = vunpack.c.l.b16 %v1245
      %v1293 = vunpack.c.l.b16 %v1249
      %v1294 = vunpack.c.l.b16 %v1252
      %v1295 = vunpack.c.l.b16 %v1256
      %v1296 = vunpack.c.l.b16 %v1259
      %v1297 = vpack.c.b16 %v1266, %v1265
      %v1298 = vpack.c.b16 %v1268, %v1267
      %v1299 = vpack.c.b16 %v1270, %v1269
      %v1300 = vpack.c.b16 %v1272, %v1271
      %v1301 = vpack.c.b16 %v1274, %v1273
      %v1302 = vpack.c.b16 %v1276, %v1275
      %v1303 = vpack.c.b16 %v1278, %v1277
      %v1304 = vpack.c.b16 %v1280, %v1279
      %v1305 = vpack.c.b16 %v1282, %v1281
      %v1306 = vpack.c.b16 %v1284, %v1283
      %v1307 = vpack.c.b16 %v1286, %v1285
      %v1308 = vpack.c.b16 %v1288, %v1287
      %v1309 = vpack.c.b16 %v1290, %v1289
      %v1310 = vpack.c.b16 %v1292, %v1291
      %v1311 = vpack.c.b16 %v1294, %v1293
      %v1312 = vpack.c.b16 %v1296, %v1295
      %v1317 = vunpack.c.l.b16 %v1261
      %v1318 = vunpack.c.l.b16 %v1262
      %v1319 = vunpack.c.l.b16 %v1263
      %v1320 = vunpack.c.l.b16 %v1264
      %v1321 = vpack.c.b16 %v1318, %v1317
      %v1322 = vpack.c.b16 %v1320, %v1319
      %v1326 = vsel %vm730, %v1297, 0
      %v1329 = vsel %vm730, %v1298, 0
      %v1332 = vsel %vm730, %v1299, 0
      %v1335 = vsel %vm730, %v1300, 0
      %v1338 = vsel %vm730, %v1301, 0
      %v1341 = vsel %vm730, %v1302, 0
      %v1344 = vsel %vm730, %v1303, 0
      %v1347 = vsel %vm730, %v1304, 0
      %v1350 = vsel %vm730, %v1305, 0
      %v1353 = vsel %vm730, %v1306, 0
      %v1356 = vsel %vm730, %v1307, 0
      %v1359 = vsel %vm730, %v1308, 0
      %v1362 = vsel %vm730, %v1309, 0
      %v1365 = vsel %vm730, %v1310, 0
      %v1368 = vsel %vm730, %v1311, 0
      %v1371 = vsel %vm730, %v1312, 0
      %1373 = vmatpush.bf16.msra.mxu0 0
      %1374 = vmatpush.bf16.msra.mxu0 0
      %1375 = vmatpush.bf16.msra.mxu0 0
      %1376 = vmatpush.bf16.msra.mxu0 0
      %1377 = vmatpush.bf16.msra.mxu0 0
      %1378 = vmatpush.bf16.msra.mxu0 0
      %1379 = vmatpush.bf16.msra.mxu0 %v1322
      %1380 = vmatpush.bf16.msra.mxu0 %v1321
      %1381 = vmatmul.bf16.gmra.mxu0 %v1326
      %v1382 = vpop.f32.mrf.mxu0
      %v1383 = vadd.f32 0.0, %v1382
      %v1384 = vpop.f32.mrf.mxu0
      %v1385 = vadd.f32 0.0, %v1384
      %1386 = vmatmul.bf16.gmra.mxu0 %v1329
      %v1387 = vpop.f32.mrf.mxu0
      %v1388 = vadd.f32 0.0, %v1387
      %v1389 = vpop.f32.mrf.mxu0
      %v1390 = vadd.f32 0.0, %v1389
      %1391 = vmatmul.bf16.gmra.mxu0 %v1332
      %v1392 = vpop.f32.mrf.mxu0
      %v1393 = vadd.f32 0.0, %v1392
      %v1394 = vpop.f32.mrf.mxu0
      %v1395 = vadd.f32 0.0, %v1394
      %1396 = vmatmul.bf16.gmra.mxu0 %v1335
      %v1397 = vpop.f32.mrf.mxu0
      %v1398 = vadd.f32 0.0, %v1397
      %v1399 = vpop.f32.mrf.mxu0
      %v1400 = vadd.f32 0.0, %v1399
      %1401 = vmatmul.bf16.gmra.mxu0 %v1338
      %v1402 = vpop.f32.mrf.mxu0
      %v1403 = vadd.f32 0.0, %v1402
      %v1404 = vpop.f32.mrf.mxu0
      %v1405 = vadd.f32 0.0, %v1404
      %1406 = vmatmul.bf16.gmra.mxu0 %v1341
      %v1407 = vpop.f32.mrf.mxu0
      %v1408 = vadd.f32 0.0, %v1407
      %v1409 = vpop.f32.mrf.mxu0
      %v1410 = vadd.f32 0.0, %v1409
      %1411 = vmatmul.bf16.gmra.mxu0 %v1344
      %v1412 = vpop.f32.mrf.mxu0
      %v1413 = vadd.f32 0.0, %v1412
      %v1414 = vpop.f32.mrf.mxu0
      %v1415 = vadd.f32 0.0, %v1414
      %1416 = vmatmul.bf16.gmra.mxu0 %v1347
      %v1417 = vpop.f32.mrf.mxu0
      %v1418 = vadd.f32 0.0, %v1417
      %v1419 = vpop.f32.mrf.mxu0
      %v1420 = vadd.f32 0.0, %v1419
      %1421 = vmatmul.bf16.gmra.mxu0 %v1350
      %v1422 = vpop.f32.mrf.mxu0
      %v1423 = vadd.f32 0.0, %v1422
      %v1424 = vpop.f32.mrf.mxu0
      %v1425 = vadd.f32 0.0, %v1424
      %1426 = vmatmul.bf16.gmra.mxu0 %v1353
      %v1427 = vpop.f32.mrf.mxu0
      %v1428 = vadd.f32 0.0, %v1427
      %v1429 = vpop.f32.mrf.mxu0
      %v1430 = vadd.f32 0.0, %v1429
      %1431 = vmatmul.bf16.gmra.mxu0 %v1356
      %v1432 = vpop.f32.mrf.mxu0
      %v1433 = vadd.f32 0.0, %v1432
      %v1434 = vpop.f32.mrf.mxu0
      %v1435 = vadd.f32 0.0, %v1434
      %1436 = vmatmul.bf16.gmra.mxu0 %v1359
      %v1437 = vpop.f32.mrf.mxu0
      %v1438 = vadd.f32 0.0, %v1437
      %v1439 = vpop.f32.mrf.mxu0
      %v1440 = vadd.f32 0.0, %v1439
      %1441 = vmatmul.bf16.gmra.mxu0 %v1362
      %v1442 = vpop.f32.mrf.mxu0
      %v1443 = vadd.f32 0.0, %v1442
      %v1444 = vpop.f32.mrf.mxu0
      %v1445 = vadd.f32 0.0, %v1444
      %1446 = vmatmul.bf16.gmra.mxu0 %v1365
      %v1447 = vpop.f32.mrf.mxu0
      %v1448 = vadd.f32 0.0, %v1447
      %v1449 = vpop.f32.mrf.mxu0
      %v1450 = vadd.f32 0.0, %v1449
      %1451 = vmatmul.bf16.gmra.mxu0 %v1368
      %v1452 = vpop.f32.mrf.mxu0
      %v1453 = vadd.f32 0.0, %v1452
      %v1454 = vpop.f32.mrf.mxu0
      %v1455 = vadd.f32 0.0, %v1454
      %1456 = vmatmul.bf16.gmra.mxu0 %v1371
      %v1457 = vpop.f32.mrf.mxu0
      %v1458 = vadd.f32 0.0, %v1457
      %v1459 = vpop.f32.mrf.mxu0
      %v1460 = vadd.f32 0.0, %v1459
      %1461 = vdwg.mxu0
      %v1462 = vadd.f32 %v1018, %v1383
      %v1463 = vadd.f32 %v1020, %v1385
      %v1464 = vadd.f32 %v1023, %v1388
      %v1465 = vadd.f32 %v1025, %v1390
      %v1466 = vadd.f32 %v1028, %v1393
      %v1467 = vadd.f32 %v1030, %v1395
      %v1468 = vadd.f32 %v1033, %v1398
      %v1469 = vadd.f32 %v1035, %v1400
      %v1470 = vadd.f32 %v1038, %v1403
      %v1471 = vadd.f32 %v1040, %v1405
      %v1472 = vadd.f32 %v1043, %v1408
      %v1473 = vadd.f32 %v1045, %v1410
      %v1474 = vadd.f32 %v1048, %v1413
      %v1475 = vadd.f32 %v1050, %v1415
      %v1476 = vadd.f32 %v1053, %v1418
      %v1477 = vadd.f32 %v1055, %v1420
      %v1478 = vadd.f32 %v1058, %v1423
      %v1479 = vadd.f32 %v1060, %v1425
      %v1480 = vadd.f32 %v1063, %v1428
      %v1481 = vadd.f32 %v1065, %v1430
      %v1482 = vadd.f32 %v1068, %v1433
      %v1483 = vadd.f32 %v1070, %v1435
      %v1484 = vadd.f32 %v1073, %v1438
      %v1485 = vadd.f32 %v1075, %v1440
      %v1486 = vadd.f32 %v1078, %v1443
      %v1487 = vadd.f32 %v1080, %v1445
      %v1488 = vadd.f32 %v1083, %v1448
      %v1489 = vadd.f32 %v1085, %v1450
      %v1490 = vadd.f32 %v1088, %v1453
      %v1491 = vadd.f32 %v1090, %v1455
      %v1492 = vadd.f32 %v1093, %v1458
      %v1493 = vadd.f32 %v1095, %v1460
      %s1494 = scalar_lea.vmem %s219, 12
      %v1495 = vld [vmem:[%s1494] sm:$0xf]
      %v1496 = vld [vmem:[%s1494 + $0x4] sm:$0xf]
      %v1497 = vld [vmem:[%s1494 + $0xc] sm:$0xf]
      %v1498 = vld [vmem:[%s1494 + $0x10] sm:$0xf]
      %v1499 = vld [vmem:[%s1494 + $0x18] sm:$0xf]
      %v1500 = vld [vmem:[%s1494 + $0x1c] sm:$0xf]
      %v1501 = vld [vmem:[%s1494 + $0x24] sm:$0xf]
      %v1502 = vld [vmem:[%s1494 + $0x28] sm:$0xf]
      %v1503 = vld [vmem:[%s1494 + $0x30] sm:$0xf]
      %v1504 = vld [vmem:[%s1494 + $0x34] sm:$0xf]
      %v1505 = vld [vmem:[%s1494 + $0x3c] sm:$0xf]
      %v1506 = vld [vmem:[%s1494 + $0x40] sm:$0xf]
      %v1507 = vld [vmem:[%s1494 + $0x48] sm:$0xf]
      %v1508 = vld [vmem:[%s1494 + $0x4c] sm:$0xf]
      %v1509 = vld [vmem:[%s1494 + $0x54] sm:$0xf]
      %v1510 = vld [vmem:[%s1494 + $0x58] sm:$0xf]
      %v1511 = vld [vmem:[%s1494 + $0x60] sm:$0xf]
      %v1512 = vld [vmem:[%s1494 + $0x64] sm:$0xf]
      %v1513 = vld [vmem:[%s1494 + $0x6c] sm:$0xf]
      %v1514 = vld [vmem:[%s1494 + $0x70] sm:$0xf]
      %v1515 = vld [vmem:[%s1494 + $0x78] sm:$0xf]
      %v1516 = vld [vmem:[%s1494 + $0x7c] sm:$0xf]
      %v1517 = vld [vmem:[%s1494 + $0x84] sm:$0xf]
      %v1518 = vld [vmem:[%s1494 + $0x88] sm:$0xf]
      %v1519 = vld [vmem:[%s1494 + $0x90] sm:$0xf]
      %v1520 = vld [vmem:[%s1494 + $0x94] sm:$0xf]
      %v1521 = vld [vmem:[%s1494 + $0x9c] sm:$0xf]
      %v1522 = vld [vmem:[%s1494 + $0xa0] sm:$0xf]
      %v1523 = vld [vmem:[%s1494 + $0xa8] sm:$0xf]
      %v1524 = vld [vmem:[%s1494 + $0xac] sm:$0xf]
      %v1525 = vld [vmem:[%s1494 + $0xb4] sm:$0xf]
      %v1526 = vld [vmem:[%s1494 + $0xb8] sm:$0xf]
      %s1527 = scalar_lea.vmem %s1, 48
      %v1528 = vld [vmem:[%s1527] sm:$0xf]
      %v1529 = vld [vmem:[%s1527 + $0x4] sm:$0xf]
      %v1530 = vld [vmem:[%s1527 + $0x8] sm:$0xf]
      %v1531 = vld [vmem:[%s1527 + $0xc] sm:$0xf]
      %v1564 = vunpack.c.l.b16 %v1495
      %v1565 = vunpack.c.l.b16 %v1496
      %v1566 = vunpack.c.l.b16 %v1497
      %v1567 = vunpack.c.l.b16 %v1498
      %v1568 = vunpack.c.l.b16 %v1499
      %v1569 = vunpack.c.l.b16 %v1500
      %v1570 = vunpack.c.l.b16 %v1501
      %v1571 = vunpack.c.l.b16 %v1502
      %v1572 = vunpack.c.l.b16 %v1503
      %v1573 = vunpack.c.l.b16 %v1504
      %v1574 = vunpack.c.l.b16 %v1505
      %v1575 = vunpack.c.l.b16 %v1506
      %v1576 = vunpack.c.l.b16 %v1507
      %v1577 = vunpack.c.l.b16 %v1508
      %v1578 = vunpack.c.l.b16 %v1509
      %v1579 = vunpack.c.l.b16 %v1510
      %v1580 = vunpack.c.l.b16 %v1511
      %v1581 = vunpack.c.l.b16 %v1512
      %v1582 = vunpack.c.l.b16 %v1513
      %v1583 = vunpack.c.l.b16 %v1514
      %v1584 = vunpack.c.l.b16 %v1515
      %v1585 = vunpack.c.l.b16 %v1516
      %v1586 = vunpack.c.l.b16 %v1517
      %v1587 = vunpack.c.l.b16 %v1518
      %v1588 = vunpack.c.l.b16 %v1519
      %v1589 = vunpack.c.l.b16 %v1520
      %v1590 = vunpack.c.l.b16 %v1521
      %v1591 = vunpack.c.l.b16 %v1522
      %v1592 = vunpack.c.l.b16 %v1523
      %v1593 = vunpack.c.l.b16 %v1524
      %v1594 = vunpack.c.l.b16 %v1525
      %v1595 = vunpack.c.l.b16 %v1526
      %v1596 = vpack.c.b16 %v1565, %v1564
      %v1597 = vpack.c.b16 %v1567, %v1566
      %v1598 = vpack.c.b16 %v1569, %v1568
      %v1599 = vpack.c.b16 %v1571, %v1570
      %v1600 = vpack.c.b16 %v1573, %v1572
      %v1601 = vpack.c.b16 %v1575, %v1574
      %v1602 = vpack.c.b16 %v1577, %v1576
      %v1603 = vpack.c.b16 %v1579, %v1578
      %v1604 = vpack.c.b16 %v1581, %v1580
      %v1605 = vpack.c.b16 %v1583, %v1582
      %v1606 = vpack.c.b16 %v1585, %v1584
      %v1607 = vpack.c.b16 %v1587, %v1586
      %v1608 = vpack.c.b16 %v1589, %v1588
      %v1609 = vpack.c.b16 %v1591, %v1590
      %v1610 = vpack.c.b16 %v1593, %v1592
      %v1611 = vpack.c.b16 %v1595, %v1594
      %v1616 = vunpack.c.l.b16 %v1528
      %v1617 = vunpack.c.l.b16 %v1529
      %v1618 = vunpack.c.l.b16 %v1530
      %v1619 = vunpack.c.l.b16 %v1531
      %v1620 = vpack.c.b16 %v1617, %v1616
      %v1621 = vpack.c.b16 %v1619, %v1618
      %v1625 = vsel %vm730, %v1596, 0
      %v1628 = vsel %vm730, %v1597, 0
      %v1631 = vsel %vm730, %v1598, 0
      %v1634 = vsel %vm730, %v1599, 0
      %v1637 = vsel %vm730, %v1600, 0
      %v1640 = vsel %vm730, %v1601, 0
      %v1643 = vsel %vm730, %v1602, 0
      %v1646 = vsel %vm730, %v1603, 0
      %v1649 = vsel %vm730, %v1604, 0
      %v1652 = vsel %vm730, %v1605, 0
      %v1655 = vsel %vm730, %v1606, 0
      %v1658 = vsel %vm730, %v1607, 0
      %v1661 = vsel %vm730, %v1608, 0
      %v1664 = vsel %vm730, %v1609, 0
      %v1667 = vsel %vm730, %v1610, 0
      %v1670 = vsel %vm730, %v1611, 0
      %1672 = vmatpush.bf16.msra.mxu0 0
      %1673 = vmatpush.bf16.msra.mxu0 0
      %1674 = vmatpush.bf16.msra.mxu0 0
      %1675 = vmatpush.bf16.msra.mxu0 0
      %1676 = vmatpush.bf16.msra.mxu0 0
      %1677 = vmatpush.bf16.msra.mxu0 0
      %1678 = vmatpush.bf16.msra.mxu0 %v1621
      %1679 = vmatpush.bf16.msra.mxu0 %v1620
      %1680 = vmatmul.bf16.gmra.mxu0 %v1625
      %v1681 = vpop.f32.mrf.mxu0
      %v1682 = vadd.f32 0.0, %v1681
      %v1683 = vpop.f32.mrf.mxu0
      %v1684 = vadd.f32 0.0, %v1683
      %1685 = vmatmul.bf16.gmra.mxu0 %v1628
      %v1686 = vpop.f32.mrf.mxu0
      %v1687 = vadd.f32 0.0, %v1686
      %v1688 = vpop.f32.mrf.mxu0
      %v1689 = vadd.f32 0.0, %v1688
      %1690 = vmatmul.bf16.gmra.mxu0 %v1631
      %v1691 = vpop.f32.mrf.mxu0
      %v1692 = vadd.f32 0.0, %v1691
      %v1693 = vpop.f32.mrf.mxu0
      %v1694 = vadd.f32 0.0, %v1693
      %1695 = vmatmul.bf16.gmra.mxu0 %v1634
      %v1696 = vpop.f32.mrf.mxu0
      %v1697 = vadd.f32 0.0, %v1696
      %v1698 = vpop.f32.mrf.mxu0
      %v1699 = vadd.f32 0.0, %v1698
      %1700 = vmatmul.bf16.gmra.mxu0 %v1637
      %v1701 = vpop.f32.mrf.mxu0
      %v1702 = vadd.f32 0.0, %v1701
      %v1703 = vpop.f32.mrf.mxu0
      %v1704 = vadd.f32 0.0, %v1703
      %1705 = vmatmul.bf16.gmra.mxu0 %v1640
      %v1706 = vpop.f32.mrf.mxu0
      %v1707 = vadd.f32 0.0, %v1706
      %v1708 = vpop.f32.mrf.mxu0
      %v1709 = vadd.f32 0.0, %v1708
      %1710 = vmatmul.bf16.gmra.mxu0 %v1643
      %v1711 = vpop.f32.mrf.mxu0
      %v1712 = vadd.f32 0.0, %v1711
      %v1713 = vpop.f32.mrf.mxu0
      %v1714 = vadd.f32 0.0, %v1713
      %1715 = vmatmul.bf16.gmra.mxu0 %v1646
      %v1716 = vpop.f32.mrf.mxu0
      %v1717 = vadd.f32 0.0, %v1716
      %v1718 = vpop.f32.mrf.mxu0
      %v1719 = vadd.f32 0.0, %v1718
      %1720 = vmatmul.bf16.gmra.mxu0 %v1649
      %v1721 = vpop.f32.mrf.mxu0
      %v1722 = vadd.f32 0.0, %v1721
      %v1723 = vpop.f32.mrf.mxu0
      %v1724 = vadd.f32 0.0, %v1723
      %1725 = vmatmul.bf16.gmra.mxu0 %v1652
      %v1726 = vpop.f32.mrf.mxu0
      %v1727 = vadd.f32 0.0, %v1726
      %v1728 = vpop.f32.mrf.mxu0
      %v1729 = vadd.f32 0.0, %v1728
      %1730 = vmatmul.bf16.gmra.mxu0 %v1655
      %v1731 = vpop.f32.mrf.mxu0
      %v1732 = vadd.f32 0.0, %v1731
      %v1733 = vpop.f32.mrf.mxu0
      %v1734 = vadd.f32 0.0, %v1733
      %1735 = vmatmul.bf16.gmra.mxu0 %v1658
      %v1736 = vpop.f32.mrf.mxu0
      %v1737 = vadd.f32 0.0, %v1736
      %v1738 = vpop.f32.mrf.mxu0
      %v1739 = vadd.f32 0.0, %v1738
      %1740 = vmatmul.bf16.gmra.mxu0 %v1661
      %v1741 = vpop.f32.mrf.mxu0
      %v1742 = vadd.f32 0.0, %v1741
      %v1743 = vpop.f32.mrf.mxu0
      %v1744 = vadd.f32 0.0, %v1743
      %1745 = vmatmul.bf16.gmra.mxu0 %v1664
      %v1746 = vpop.f32.mrf.mxu0
      %v1747 = vadd.f32 0.0, %v1746
      %v1748 = vpop.f32.mrf.mxu0
      %v1749 = vadd.f32 0.0, %v1748
      %1750 = vmatmul.bf16.gmra.mxu0 %v1667
      %v1751 = vpop.f32.mrf.mxu0
      %v1752 = vadd.f32 0.0, %v1751
      %v1753 = vpop.f32.mrf.mxu0
      %v1754 = vadd.f32 0.0, %v1753
      %1755 = vmatmul.bf16.gmra.mxu0 %v1670
      %v1756 = vpop.f32.mrf.mxu0
      %v1757 = vadd.f32 0.0, %v1756
      %v1758 = vpop.f32.mrf.mxu0
      %v1759 = vadd.f32 0.0, %v1758
      %1760 = vdwg.mxu0
      %v1761 = vadd.f32 %v1462, %v1682
      %v1762 = vadd.f32 %v1463, %v1684
      %v1763 = vadd.f32 %v1464, %v1687
      %v1764 = vadd.f32 %v1465, %v1689
      %v1765 = vadd.f32 %v1466, %v1692
      %v1766 = vadd.f32 %v1467, %v1694
      %v1767 = vadd.f32 %v1468, %v1697
      %v1768 = vadd.f32 %v1469, %v1699
      %v1769 = vadd.f32 %v1470, %v1702
      %v1770 = vadd.f32 %v1471, %v1704
      %v1771 = vadd.f32 %v1472, %v1707
      %v1772 = vadd.f32 %v1473, %v1709
      %v1773 = vadd.f32 %v1474, %v1712
      %v1774 = vadd.f32 %v1475, %v1714
      %v1775 = vadd.f32 %v1476, %v1717
      %v1776 = vadd.f32 %v1477, %v1719
      %v1777 = vadd.f32 %v1478, %v1722
      %v1778 = vadd.f32 %v1479, %v1724
      %v1779 = vadd.f32 %v1480, %v1727
      %v1780 = vadd.f32 %v1481, %v1729
      %v1781 = vadd.f32 %v1482, %v1732
      %v1782 = vadd.f32 %v1483, %v1734
      %v1783 = vadd.f32 %v1484, %v1737
      %v1784 = vadd.f32 %v1485, %v1739
      %v1785 = vadd.f32 %v1486, %v1742
      %v1786 = vadd.f32 %v1487, %v1744
      %v1787 = vadd.f32 %v1488, %v1747
      %v1788 = vadd.f32 %v1489, %v1749
      %v1789 = vadd.f32 %v1490, %v1752
      %v1790 = vadd.f32 %v1491, %v1754
      %v1791 = vadd.f32 %v1492, %v1757
      %v1792 = vadd.f32 %v1493, %v1759
      %v1793 = vld [vmem:[%s1494] sm:$0xf]
      %v1794 = vld [vmem:[%s1494 + $0x4] sm:$0xf]
      %v1795 = vld [vmem:[%s1494 + $0x8] sm:$0x1]
      %v1796 = vld [vmem:[%s1494 + $0xc] sm:$0xf]
      %v1797 = vld [vmem:[%s1494 + $0x10] sm:$0xf]
      %v1798 = vld [vmem:[%s1494 + $0x14] sm:$0x1]
      %v1799 = vld [vmem:[%s1494 + $0x18] sm:$0xf]
      %v1800 = vld [vmem:[%s1494 + $0x1c] sm:$0xf]
      %v1801 = vld [vmem:[%s1494 + $0x20] sm:$0x1]
      %v1802 = vld [vmem:[%s1494 + $0x24] sm:$0xf]
      %v1803 = vld [vmem:[%s1494 + $0x28] sm:$0xf]
      %v1804 = vld [vmem:[%s1494 + $0x2c] sm:$0x1]
      %v1805 = vld [vmem:[%s1494 + $0x30] sm:$0xf]
      %v1806 = vld [vmem:[%s1494 + $0x34] sm:$0xf]
      %v1807 = vld [vmem:[%s1494 + $0x38] sm:$0x1]
      %v1808 = vld [vmem:[%s1494 + $0x3c] sm:$0xf]
      %v1809 = vld [vmem:[%s1494 + $0x40] sm:$0xf]
      %v1810 = vld [vmem:[%s1494 + $0x44] sm:$0x1]
      %v1811 = vld [vmem:[%s1494 + $0x48] sm:$0xf]
      %v1812 = vld [vmem:[%s1494 + $0x4c] sm:$0xf]
      %v1813 = vld [vmem:[%s1494 + $0x50] sm:$0x1]
      %v1814 = vld [vmem:[%s1494 + $0x54] sm:$0xf]
      %v1815 = vld [vmem:[%s1494 + $0x58] sm:$0xf]
      %v1816 = vld [vmem:[%s1494 + $0x5c] sm:$0x1]
      %v1817 = vld [vmem:[%s1494 + $0x60] sm:$0xf]
      %v1818 = vld [vmem:[%s1494 + $0x64] sm:$0xf]
      %v1819 = vld [vmem:[%s1494 + $0x68] sm:$0x1]
      %v1820 = vld [vmem:[%s1494 + $0x6c] sm:$0xf]
      %v1821 = vld [vmem:[%s1494 + $0x70] sm:$0xf]
      %v1822 = vld [vmem:[%s1494 + $0x74] sm:$0x1]
      %v1823 = vld [vmem:[%s1494 + $0x78] sm:$0xf]
      %v1824 = vld [vmem:[%s1494 + $0x7c] sm:$0xf]
      %v1825 = vld [vmem:[%s1494 + $0x80] sm:$0x1]
      %v1826 = vld [vmem:[%s1494 + $0x84] sm:$0xf]
      %v1827 = vld [vmem:[%s1494 + $0x88] sm:$0xf]
      %v1828 = vld [vmem:[%s1494 + $0x8c] sm:$0x1]
      %v1829 = vld [vmem:[%s1494 + $0x90] sm:$0xf]
      %v1830 = vld [vmem:[%s1494 + $0x94] sm:$0xf]
      %v1831 = vld [vmem:[%s1494 + $0x98] sm:$0x1]
      %v1832 = vld [vmem:[%s1494 + $0x9c] sm:$0xf]
      %v1833 = vld [vmem:[%s1494 + $0xa0] sm:$0xf]
      %v1834 = vld [vmem:[%s1494 + $0xa4] sm:$0x1]
      %v1835 = vld [vmem:[%s1494 + $0xa8] sm:$0xf]
      %v1836 = vld [vmem:[%s1494 + $0xac] sm:$0xf]
      %v1837 = vld [vmem:[%s1494 + $0xb0] sm:$0x1]
      %v1838 = vld [vmem:[%s1494 + $0xb4] sm:$0xf]
      %v1839 = vld [vmem:[%s1494 + $0xb8] sm:$0xf]
      %v1840 = vld [vmem:[%s1494 + $0xbc] sm:$0x1]
      %v1842 = vshrl.u32 %v1793, 16
      %v1844 = vrot.slane %v1842, 4
      %v1845 = vshll.u32 %v1793, 16
      %v1847 = vrot.slane %v1845, 5
      %v1848 = vor.u32 %v1844, %v1847
      %v1849 = vrot.slane %v1848, 4
      %v1851 = vshll.u32 %v1794, 16
      %v1853 = vrot.slane %v1851, 5
      %v1854 = vsel %vm280, %v1849, %v1853
      %v1855 = vshrl.u32 %v1794, 16
      %v1857 = vrot.slane %v1855, 4
      %v1858 = vor.u32 %v1857, %v1853
      %v1859 = vrot.slane %v1858, 4
      %v1861 = vshll.u32 %v1795, 16
      %v1863 = vrot.slane %v1861, 5
      %v1864 = vsel %vm280, %v1859, %v1863
      %v1866 = vshrl.u32 %v1796, 16
      %v1868 = vrot.slane %v1866, 4
      %v1869 = vshll.u32 %v1796, 16
      %v1871 = vrot.slane %v1869, 5
      %v1872 = vor.u32 %v1868, %v1871
      %v1873 = vrot.slane %v1872, 4
      %v1875 = vshll.u32 %v1797, 16
      %v1877 = vrot.slane %v1875, 5
      %v1878 = vsel %vm280, %v1873, %v1877
      %v1879 = vshrl.u32 %v1797, 16
      %v1881 = vrot.slane %v1879, 4
      %v1882 = vor.u32 %v1881, %v1877
      %v1883 = vrot.slane %v1882, 4
      %v1885 = vshll.u32 %v1798, 16
      %v1887 = vrot.slane %v1885, 5
      %v1888 = vsel %vm280, %v1883, %v1887
      %v1890 = vshrl.u32 %v1799, 16
      %v1892 = vrot.slane %v1890, 4
      %v1893 = vshll.u32 %v1799, 16
      %v1895 = vrot.slane %v1893, 5
      %v1896 = vor.u32 %v1892, %v1895
      %v1897 = vrot.slane %v1896, 4
      %v1899 = vshll.u32 %v1800, 16
      %v1901 = vrot.slane %v1899, 5
      %v1902 = vsel %vm280, %v1897, %v1901
      %v1903 = vshrl.u32 %v1800, 16
      %v1905 = vrot.slane %v1903, 4
      %v1906 = vor.u32 %v1905, %v1901
      %v1907 = vrot.slane %v1906, 4
      %v1909 = vshll.u32 %v1801, 16
      %v1911 = vrot.slane %v1909, 5
      %v1912 = vsel %vm280, %v1907, %v1911
      %v1914 = vshrl.u32 %v1802, 16
      %v1916 = vrot.slane %v1914, 4
      %v1917 = vshll.u32 %v1802, 16
      %v1919 = vrot.slane %v1917, 5
      %v1920 = vor.u32 %v1916, %v1919
      %v1921 = vrot.slane %v1920, 4
      %v1923 = vshll.u32 %v1803, 16
      %v1925 = vrot.slane %v1923, 5
      %v1926 = vsel %vm280, %v1921, %v1925
      %v1927 = vshrl.u32 %v1803, 16
      %v1929 = vrot.slane %v1927, 4
      %v1930 = vor.u32 %v1929, %v1925
      %v1931 = vrot.slane %v1930, 4
      %v1933 = vshll.u32 %v1804, 16
      %v1935 = vrot.slane %v1933, 5
      %v1936 = vsel %vm280, %v1931, %v1935
      %v1938 = vshrl.u32 %v1805, 16
      %v1940 = vrot.slane %v1938, 4
      %v1941 = vshll.u32 %v1805, 16
      %v1943 = vrot.slane %v1941, 5
      %v1944 = vor.u32 %v1940, %v1943
      %v1945 = vrot.slane %v1944, 4
      %v1947 = vshll.u32 %v1806, 16
      %v1949 = vrot.slane %v1947, 5
      %v1950 = vsel %vm280, %v1945, %v1949
      %v1951 = vshrl.u32 %v1806, 16
      %v1953 = vrot.slane %v1951, 4
      %v1954 = vor.u32 %v1953, %v1949
      %v1955 = vrot.slane %v1954, 4
      %v1957 = vshll.u32 %v1807, 16
      %v1959 = vrot.slane %v1957, 5
      %v1960 = vsel %vm280, %v1955, %v1959
      %v1962 = vshrl.u32 %v1808, 16
      %v1964 = vrot.slane %v1962, 4
      %v1965 = vshll.u32 %v1808, 16
      %v1967 = vrot.slane %v1965, 5
      %v1968 = vor.u32 %v1964, %v1967
      %v1969 = vrot.slane %v1968, 4
      %v1971 = vshll.u32 %v1809, 16
      %v1973 = vrot.slane %v1971, 5
      %v1974 = vsel %vm280, %v1969, %v1973
      %v1975 = vshrl.u32 %v1809, 16
      %v1977 = vrot.slane %v1975, 4
      %v1978 = vor.u32 %v1977, %v1973
      %v1979 = vrot.slane %v1978, 4
      %v1981 = vshll.u32 %v1810, 16
      %v1983 = vrot.slane %v1981, 5
      %v1984 = vsel %vm280, %v1979, %v1983
      %v1986 = vshrl.u32 %v1811, 16
      %v1988 = vrot.slane %v1986, 4
      %v1989 = vshll.u32 %v1811, 16
      %v1991 = vrot.slane %v1989, 5
      %v1992 = vor.u32 %v1988, %v1991
      %v1993 = vrot.slane %v1992, 4
      %v1995 = vshll.u32 %v1812, 16
      %v1997 = vrot.slane %v1995, 5
      %v1998 = vsel %vm280, %v1993, %v1997
      %v1999 = vshrl.u32 %v1812, 16
      %v2001 = vrot.slane %v1999, 4
      %v2002 = vor.u32 %v2001, %v1997
      %v2003 = vrot.slane %v2002, 4
      %v2005 = vshll.u32 %v1813, 16
      %v2007 = vrot.slane %v2005, 5
      %v2008 = vsel %vm280, %v2003, %v2007
      %v2010 = vshrl.u32 %v1814, 16
      %v2012 = vrot.slane %v2010, 4
      %v2013 = vshll.u32 %v1814, 16
      %v2015 = vrot.slane %v2013, 5
      %v2016 = vor.u32 %v2012, %v2015
      %v2017 = vrot.slane %v2016, 4
      %v2019 = vshll.u32 %v1815, 16
      %v2021 = vrot.slane %v2019, 5
      %v2022 = vsel %vm280, %v2017, %v2021
      %v2023 = vshrl.u32 %v1815, 16
      %v2025 = vrot.slane %v2023, 4
      %v2026 = vor.u32 %v2025, %v2021
      %v2027 = vrot.slane %v2026, 4
      %v2029 = vshll.u32 %v1816, 16
      %v2031 = vrot.slane %v2029, 5
      %v2032 = vsel %vm280, %v2027, %v2031
      %v2034 = vshrl.u32 %v1817, 16
      %v2036 = vrot.slane %v2034, 4
      %v2037 = vshll.u32 %v1817, 16
      %v2039 = vrot.slane %v2037, 5
      %v2040 = vor.u32 %v2036, %v2039
      %v2041 = vrot.slane %v2040, 4
      %v2043 = vshll.u32 %v1818, 16
      %v2045 = vrot.slane %v2043, 5
      %v2046 = vsel %vm280, %v2041, %v2045
      %v2047 = vshrl.u32 %v1818, 16
      %v2049 = vrot.slane %v2047, 4
      %v2050 = vor.u32 %v2049, %v2045
      %v2051 = vrot.slane %v2050, 4
      %v2053 = vshll.u32 %v1819, 16
      %v2055 = vrot.slane %v2053, 5
      %v2056 = vsel %vm280, %v2051, %v2055
      %v2058 = vshrl.u32 %v1820, 16
      %v2060 = vrot.slane %v2058, 4
      %v2061 = vshll.u32 %v1820, 16
      %v2063 = vrot.slane %v2061, 5
      %v2064 = vor.u32 %v2060, %v2063
      %v2065 = vrot.slane %v2064, 4
      %v2067 = vshll.u32 %v1821, 16
      %v2069 = vrot.slane %v2067, 5
      %v2070 = vsel %vm280, %v2065, %v2069
      %v2071 = vshrl.u32 %v1821, 16
      %v2073 = vrot.slane %v2071, 4
      %v2074 = vor.u32 %v2073, %v2069
      %v2075 = vrot.slane %v2074, 4
      %v2077 = vshll.u32 %v1822, 16
      %v2079 = vrot.slane %v2077, 5
      %v2080 = vsel %vm280, %v2075, %v2079
      %v2082 = vshrl.u32 %v1823, 16
      %v2084 = vrot.slane %v2082, 4
      %v2085 = vshll.u32 %v1823, 16
      %v2087 = vrot.slane %v2085, 5
      %v2088 = vor.u32 %v2084, %v2087
      %v2089 = vrot.slane %v2088, 4
      %v2091 = vshll.u32 %v1824, 16
      %v2093 = vrot.slane %v2091, 5
      %v2094 = vsel %vm280, %v2089, %v2093
      %v2095 = vshrl.u32 %v1824, 16
      %v2097 = vrot.slane %v2095, 4
      %v2098 = vor.u32 %v2097, %v2093
      %v2099 = vrot.slane %v2098, 4
      %v2101 = vshll.u32 %v1825, 16
      %v2103 = vrot.slane %v2101, 5
      %v2104 = vsel %vm280, %v2099, %v2103
      %v2106 = vshrl.u32 %v1826, 16
      %v2108 = vrot.slane %v2106, 4
      %v2109 = vshll.u32 %v1826, 16
      %v2111 = vrot.slane %v2109, 5
      %v2112 = vor.u32 %v2108, %v2111
      %v2113 = vrot.slane %v2112, 4
      %v2115 = vshll.u32 %v1827, 16
      %v2117 = vrot.slane %v2115, 5
      %v2118 = vsel %vm280, %v2113, %v2117
      %v2119 = vshrl.u32 %v1827, 16
      %v2121 = vrot.slane %v2119, 4
      %v2122 = vor.u32 %v2121, %v2117
      %v2123 = vrot.slane %v2122, 4
      %v2125 = vshll.u32 %v1828, 16
      %v2127 = vrot.slane %v2125, 5
      %v2128 = vsel %vm280, %v2123, %v2127
      %v2130 = vshrl.u32 %v1829, 16
      %v2132 = vrot.slane %v2130, 4
      %v2133 = vshll.u32 %v1829, 16
      %v2135 = vrot.slane %v2133, 5
      %v2136 = vor.u32 %v2132, %v2135
      %v2137 = vrot.slane %v2136, 4
      %v2139 = vshll.u32 %v1830, 16
      %v2141 = vrot.slane %v2139, 5
      %v2142 = vsel %vm280, %v2137, %v2141
      %v2143 = vshrl.u32 %v1830, 16
      %v2145 = vrot.slane %v2143, 4
      %v2146 = vor.u32 %v2145, %v2141
      %v2147 = vrot.slane %v2146, 4
      %v2149 = vshll.u32 %v1831, 16
      %v2151 = vrot.slane %v2149, 5
      %v2152 = vsel %vm280, %v2147, %v2151
      %v2154 = vshrl.u32 %v1832, 16
      %v2156 = vrot.slane %v2154, 4
      %v2157 = vshll.u32 %v1832, 16
      %v2159 = vrot.slane %v2157, 5
      %v2160 = vor.u32 %v2156, %v2159
      %v2161 = vrot.slane %v2160, 4
      %v2163 = vshll.u32 %v1833, 16
      %v2165 = vrot.slane %v2163, 5
      %v2166 = vsel %vm280, %v2161, %v2165
      %v2167 = vshrl.u32 %v1833, 16
      %v2169 = vrot.slane %v2167, 4
      %v2170 = vor.u32 %v2169, %v2165
      %v2171 = vrot.slane %v2170, 4
      %v2173 = vshll.u32 %v1834, 16
      %v2175 = vrot.slane %v2173, 5
      %v2176 = vsel %vm280, %v2171, %v2175
      %v2178 = vshrl.u32 %v1835, 16
      %v2180 = vrot.slane %v2178, 4
      %v2181 = vshll.u32 %v1835, 16
      %v2183 = vrot.slane %v2181, 5
      %v2184 = vor.u32 %v2180, %v2183
      %v2185 = vrot.slane %v2184, 4
      %v2187 = vshll.u32 %v1836, 16
      %v2189 = vrot.slane %v2187, 5
      %v2190 = vsel %vm280, %v2185, %v2189
      %v2191 = vshrl.u32 %v1836, 16
      %v2193 = vrot.slane %v2191, 4
      %v2194 = vor.u32 %v2193, %v2189
      %v2195 = vrot.slane %v2194, 4
      %v2197 = vshll.u32 %v1837, 16
      %v2199 = vrot.slane %v2197, 5
      %v2200 = vsel %vm280, %v2195, %v2199
      %v2202 = vshrl.u32 %v1838, 16
      %v2204 = vrot.slane %v2202, 4
      %v2205 = vshll.u32 %v1838, 16
      %v2207 = vrot.slane %v2205, 5
      %v2208 = vor.u32 %v2204, %v2207
      %v2209 = vrot.slane %v2208, 4
      %v2211 = vshll.u32 %v1839, 16
      %v2213 = vrot.slane %v2211, 5
      %v2214 = vsel %vm280, %v2209, %v2213
      %v2215 = vshrl.u32 %v1839, 16
      %v2217 = vrot.slane %v2215, 4
      %v2218 = vor.u32 %v2217, %v2213
      %v2219 = vrot.slane %v2218, 4
      %v2221 = vshll.u32 %v1840, 16
      %v2223 = vrot.slane %v2221, 5
      %v2224 = vsel %vm280, %v2219, %v2223
      %s2225 = scalar_lea.vmem %s1, 64
      %v2226 = vld [vmem:[%s2225] sm:$0xf]
      %v2227 = vld [vmem:[%s2225 + $0x4] sm:$0xf]
      %v2228 = vld [vmem:[%s2225 + $0x8] sm:$0xf]
      %v2229 = vld [vmem:[%s2225 + $0xc] sm:$0xf]
      %v2230 = vunpack.c.l.b16 %v1854
      %v2231 = vunpack.c.l.b16 %v1864
      %v2232 = vunpack.c.l.b16 %v1878
      %v2233 = vunpack.c.l.b16 %v1888
      %v2234 = vunpack.c.l.b16 %v1902
      %v2235 = vunpack.c.l.b16 %v1912
      %v2236 = vunpack.c.l.b16 %v1926
      %v2237 = vunpack.c.l.b16 %v1936
      %v2238 = vunpack.c.l.b16 %v1950
      %v2239 = vunpack.c.l.b16 %v1960
      %v2240 = vunpack.c.l.b16 %v1974
      %v2241 = vunpack.c.l.b16 %v1984
      %v2242 = vunpack.c.l.b16 %v1998
      %v2243 = vunpack.c.l.b16 %v2008
      %v2244 = vunpack.c.l.b16 %v2022
      %v2245 = vunpack.c.l.b16 %v2032
      %v2246 = vunpack.c.l.b16 %v2046
      %v2247 = vunpack.c.l.b16 %v2056
      %v2248 = vunpack.c.l.b16 %v2070
      %v2249 = vunpack.c.l.b16 %v2080
      %v2250 = vunpack.c.l.b16 %v2094
      %v2251 = vunpack.c.l.b16 %v2104
      %v2252 = vunpack.c.l.b16 %v2118
      %v2253 = vunpack.c.l.b16 %v2128
      %v2254 = vunpack.c.l.b16 %v2142
      %v2255 = vunpack.c.l.b16 %v2152
      %v2256 = vunpack.c.l.b16 %v2166
      %v2257 = vunpack.c.l.b16 %v2176
      %v2258 = vunpack.c.l.b16 %v2190
      %v2259 = vunpack.c.l.b16 %v2200
      %v2260 = vunpack.c.l.b16 %v2214
      %v2261 = vunpack.c.l.b16 %v2224
      %v2262 = vpack.c.b16 %v2231, %v2230
      %v2263 = vpack.c.b16 %v2233, %v2232
      %v2264 = vpack.c.b16 %v2235, %v2234
      %v2265 = vpack.c.b16 %v2237, %v2236
      %v2266 = vpack.c.b16 %v2239, %v2238
      %v2267 = vpack.c.b16 %v2241, %v2240
      %v2268 = vpack.c.b16 %v2243, %v2242
      %v2269 = vpack.c.b16 %v2245, %v2244
      %v2270 = vpack.c.b16 %v2247, %v2246
      %v2271 = vpack.c.b16 %v2249, %v2248
      %v2272 = vpack.c.b16 %v2251, %v2250
      %v2273 = vpack.c.b16 %v2253, %v2252
      %v2274 = vpack.c.b16 %v2255, %v2254
      %v2275 = vpack.c.b16 %v2257, %v2256
      %v2276 = vpack.c.b16 %v2259, %v2258
      %v2277 = vpack.c.b16 %v2261, %v2260
      %v2282 = vunpack.c.l.b16 %v2226
      %v2283 = vunpack.c.l.b16 %v2227
      %v2284 = vunpack.c.l.b16 %v2228
      %v2285 = vunpack.c.l.b16 %v2229
      %v2286 = vpack.c.b16 %v2283, %v2282
      %v2287 = vpack.c.b16 %v2285, %v2284
      %v2291 = vsel %vm730, %v2262, 0
      %v2294 = vsel %vm730, %v2263, 0
      %v2297 = vsel %vm730, %v2264, 0
      %v2300 = vsel %vm730, %v2265, 0
      %v2303 = vsel %vm730, %v2266, 0
      %v2306 = vsel %vm730, %v2267, 0
      %v2309 = vsel %vm730, %v2268, 0
      %v2312 = vsel %vm730, %v2269, 0
      %v2315 = vsel %vm730, %v2270, 0
      %v2318 = vsel %vm730, %v2271, 0
      %v2321 = vsel %vm730, %v2272, 0
      %v2324 = vsel %vm730, %v2273, 0
      %v2327 = vsel %vm730, %v2274, 0
      %v2330 = vsel %vm730, %v2275, 0
      %v2333 = vsel %vm730, %v2276, 0
      %v2336 = vsel %vm730, %v2277, 0
      %2338 = vmatpush.bf16.msra.mxu0 0
      %2339 = vmatpush.bf16.msra.mxu0 0
      %2340 = vmatpush.bf16.msra.mxu0 0
      %2341 = vmatpush.bf16.msra.mxu0 0
      %2342 = vmatpush.bf16.msra.mxu0 0
      %2343 = vmatpush.bf16.msra.mxu0 0
      %2344 = vmatpush.bf16.msra.mxu0 %v2287
      %2345 = vmatpush.bf16.msra.mxu0 %v2286
      %2346 = vmatmul.bf16.gmra.mxu0 %v2291
      %v2347 = vpop.f32.mrf.mxu0
      %v2348 = vadd.f32 0.0, %v2347
      %v2349 = vpop.f32.mrf.mxu0
      %v2350 = vadd.f32 0.0, %v2349
      %2351 = vmatmul.bf16.gmra.mxu0 %v2294
      %v2352 = vpop.f32.mrf.mxu0
      %v2353 = vadd.f32 0.0, %v2352
      %v2354 = vpop.f32.mrf.mxu0
      %v2355 = vadd.f32 0.0, %v2354
      %2356 = vmatmul.bf16.gmra.mxu0 %v2297
      %v2357 = vpop.f32.mrf.mxu0
      %v2358 = vadd.f32 0.0, %v2357
      %v2359 = vpop.f32.mrf.mxu0
      %v2360 = vadd.f32 0.0, %v2359
      %2361 = vmatmul.bf16.gmra.mxu0 %v2300
      %v2362 = vpop.f32.mrf.mxu0
      %v2363 = vadd.f32 0.0, %v2362
      %v2364 = vpop.f32.mrf.mxu0
      %v2365 = vadd.f32 0.0, %v2364
      %2366 = vmatmul.bf16.gmra.mxu0 %v2303
      %v2367 = vpop.f32.mrf.mxu0
      %v2368 = vadd.f32 0.0, %v2367
      %v2369 = vpop.f32.mrf.mxu0
      %v2370 = vadd.f32 0.0, %v2369
      %2371 = vmatmul.bf16.gmra.mxu0 %v2306
      %v2372 = vpop.f32.mrf.mxu0
      %v2373 = vadd.f32 0.0, %v2372
      %v2374 = vpop.f32.mrf.mxu0
      %v2375 = vadd.f32 0.0, %v2374
      %2376 = vmatmul.bf16.gmra.mxu0 %v2309
      %v2377 = vpop.f32.mrf.mxu0
      %v2378 = vadd.f32 0.0, %v2377
      %v2379 = vpop.f32.mrf.mxu0
      %v2380 = vadd.f32 0.0, %v2379
      %2381 = vmatmul.bf16.gmra.mxu0 %v2312
      %v2382 = vpop.f32.mrf.mxu0
      %v2383 = vadd.f32 0.0, %v2382
      %v2384 = vpop.f32.mrf.mxu0
      %v2385 = vadd.f32 0.0, %v2384
      %2386 = vmatmul.bf16.gmra.mxu0 %v2315
      %v2387 = vpop.f32.mrf.mxu0
      %v2388 = vadd.f32 0.0, %v2387
      %v2389 = vpop.f32.mrf.mxu0
      %v2390 = vadd.f32 0.0, %v2389
      %2391 = vmatmul.bf16.gmra.mxu0 %v2318
      %v2392 = vpop.f32.mrf.mxu0
      %v2393 = vadd.f32 0.0, %v2392
      %v2394 = vpop.f32.mrf.mxu0
      %v2395 = vadd.f32 0.0, %v2394
      %2396 = vmatmul.bf16.gmra.mxu0 %v2321
      %v2397 = vpop.f32.mrf.mxu0
      %v2398 = vadd.f32 0.0, %v2397
      %v2399 = vpop.f32.mrf.mxu0
      %v2400 = vadd.f32 0.0, %v2399
      %2401 = vmatmul.bf16.gmra.mxu0 %v2324
      %v2402 = vpop.f32.mrf.mxu0
      %v2403 = vadd.f32 0.0, %v2402
      %v2404 = vpop.f32.mrf.mxu0
      %v2405 = vadd.f32 0.0, %v2404
      %2406 = vmatmul.bf16.gmra.mxu0 %v2327
      %v2407 = vpop.f32.mrf.mxu0
      %v2408 = vadd.f32 0.0, %v2407
      %v2409 = vpop.f32.mrf.mxu0
      %v2410 = vadd.f32 0.0, %v2409
      %2411 = vmatmul.bf16.gmra.mxu0 %v2330
      %v2412 = vpop.f32.mrf.mxu0
      %v2413 = vadd.f32 0.0, %v2412
      %v2414 = vpop.f32.mrf.mxu0
      %v2415 = vadd.f32 0.0, %v2414
      %2416 = vmatmul.bf16.gmra.mxu0 %v2333
      %v2417 = vpop.f32.mrf.mxu0
      %v2418 = vadd.f32 0.0, %v2417
      %v2419 = vpop.f32.mrf.mxu0
      %v2420 = vadd.f32 0.0, %v2419
      %2421 = vmatmul.bf16.gmra.mxu0 %v2336
      %v2422 = vpop.f32.mrf.mxu0
      %v2423 = vadd.f32 0.0, %v2422
      %v2424 = vpop.f32.mrf.mxu0
      %v2425 = vadd.f32 0.0, %v2424
      %2426 = vdwg.mxu0
      %v2427 = vadd.f32 %v1761, %v2348
      %v2428 = vadd.f32 %v1762, %v2350
      %v2429 = vadd.f32 %v1763, %v2353
      %v2430 = vadd.f32 %v1764, %v2355
      %v2431 = vadd.f32 %v1765, %v2358
      %v2432 = vadd.f32 %v1766, %v2360
      %v2433 = vadd.f32 %v1767, %v2363
      %v2434 = vadd.f32 %v1768, %v2365
      %v2435 = vadd.f32 %v1769, %v2368
      %v2436 = vadd.f32 %v1770, %v2370
      %v2437 = vadd.f32 %v1771, %v2373
      %v2438 = vadd.f32 %v1772, %v2375
      %v2439 = vadd.f32 %v1773, %v2378
      %v2440 = vadd.f32 %v1774, %v2380
      %v2441 = vadd.f32 %v1775, %v2383
      %v2442 = vadd.f32 %v1776, %v2385
      %v2443 = vadd.f32 %v1777, %v2388
      %v2444 = vadd.f32 %v1778, %v2390
      %v2445 = vadd.f32 %v1779, %v2393
      %v2446 = vadd.f32 %v1780, %v2395
      %v2447 = vadd.f32 %v1781, %v2398
      %v2448 = vadd.f32 %v1782, %v2400
      %v2449 = vadd.f32 %v1783, %v2403
      %v2450 = vadd.f32 %v1784, %v2405
      %v2451 = vadd.f32 %v1785, %v2408
      %v2452 = vadd.f32 %v1786, %v2410
      %v2453 = vadd.f32 %v1787, %v2413
      %v2454 = vadd.f32 %v1788, %v2415
      %v2455 = vadd.f32 %v1789, %v2418
      %v2456 = vadd.f32 %v1790, %v2420
      %v2457 = vadd.f32 %v1791, %v2423
      %v2458 = vadd.f32 %v1792, %v2425
      %v2459 = vld [vmem:[%s1494] sm:$0xe]
      %v2460 = vld [vmem:[%s1494 + $0xc] sm:$0xe]
      %v2461 = vld [vmem:[%s1494 + $0x18] sm:$0xe]
      %v2462 = vld [vmem:[%s1494 + $0x24] sm:$0xe]
      %v2463 = vld [vmem:[%s1494 + $0x30] sm:$0xe]
      %v2464 = vld [vmem:[%s1494 + $0x3c] sm:$0xe]
      %v2465 = vld [vmem:[%s1494 + $0x48] sm:$0xe]
      %v2466 = vld [vmem:[%s1494 + $0x54] sm:$0xe]
      %v2467 = vld [vmem:[%s1494 + $0x60] sm:$0xe]
      %v2468 = vld [vmem:[%s1494 + $0x6c] sm:$0xe]
      %v2469 = vld [vmem:[%s1494 + $0x78] sm:$0xe]
      %v2470 = vld [vmem:[%s1494 + $0x84] sm:$0xe]
      %v2471 = vld [vmem:[%s1494 + $0x90] sm:$0xe]
      %v2472 = vld [vmem:[%s1494 + $0x9c] sm:$0xe]
      %v2473 = vld [vmem:[%s1494 + $0xa8] sm:$0xe]
      %v2474 = vld [vmem:[%s1494 + $0xb4] sm:$0xe]
      %v2523 = vrot.slane %v2459, 5
      %v2524 = vrot.slane %v2523, 4
      %v2525 = vrot.slane %v1794, 5
      %v2526 = vsel %vm1147, %v2524, %v2525
      %v2527 = vrot.slane %v2525, 4
      %v2528 = vrot.slane %v1795, 5
      %v2529 = vsel %vm1147, %v2527, %v2528
      %v2530 = vrot.slane %v2460, 5
      %v2531 = vrot.slane %v2530, 4
      %v2532 = vrot.slane %v1797, 5
      %v2533 = vsel %vm1147, %v2531, %v2532
      %v2534 = vrot.slane %v2532, 4
      %v2535 = vrot.slane %v1798, 5
      %v2536 = vsel %vm1147, %v2534, %v2535
      %v2537 = vrot.slane %v2461, 5
      %v2538 = vrot.slane %v2537, 4
      %v2539 = vrot.slane %v1800, 5
      %v2540 = vsel %vm1147, %v2538, %v2539
      %v2541 = vrot.slane %v2539, 4
      %v2542 = vrot.slane %v1801, 5
      %v2543 = vsel %vm1147, %v2541, %v2542
      %v2544 = vrot.slane %v2462, 5
      %v2545 = vrot.slane %v2544, 4
      %v2546 = vrot.slane %v1803, 5
      %v2547 = vsel %vm1147, %v2545, %v2546
      %v2548 = vrot.slane %v2546, 4
      %v2549 = vrot.slane %v1804, 5
      %v2550 = vsel %vm1147, %v2548, %v2549
      %v2551 = vrot.slane %v2463, 5
      %v2552 = vrot.slane %v2551, 4
      %v2553 = vrot.slane %v1806, 5
      %v2554 = vsel %vm1147, %v2552, %v2553
      %v2555 = vrot.slane %v2553, 4
      %v2556 = vrot.slane %v1807, 5
      %v2557 = vsel %vm1147, %v2555, %v2556
      %v2558 = vrot.slane %v2464, 5
      %v2559 = vrot.slane %v2558, 4
      %v2560 = vrot.slane %v1809, 5
      %v2561 = vsel %vm1147, %v2559, %v2560
      %v2562 = vrot.slane %v2560, 4
      %v2563 = vrot.slane %v1810, 5
      %v2564 = vsel %vm1147, %v2562, %v2563
      %v2565 = vrot.slane %v2465, 5
      %v2566 = vrot.slane %v2565, 4
      %v2567 = vrot.slane %v1812, 5
      %v2568 = vsel %vm1147, %v2566, %v2567
      %v2569 = vrot.slane %v2567, 4
      %v2570 = vrot.slane %v1813, 5
      %v2571 = vsel %vm1147, %v2569, %v2570
      %v2572 = vrot.slane %v2466, 5
      %v2573 = vrot.slane %v2572, 4
      %v2574 = vrot.slane %v1815, 5
      %v2575 = vsel %vm1147, %v2573, %v2574
      %v2576 = vrot.slane %v2574, 4
      %v2577 = vrot.slane %v1816, 5
      %v2578 = vsel %vm1147, %v2576, %v2577
      %v2579 = vrot.slane %v2467, 5
      %v2580 = vrot.slane %v2579, 4
      %v2581 = vrot.slane %v1818, 5
      %v2582 = vsel %vm1147, %v2580, %v2581
      %v2583 = vrot.slane %v2581, 4
      %v2584 = vrot.slane %v1819, 5
      %v2585 = vsel %vm1147, %v2583, %v2584
      %v2586 = vrot.slane %v2468, 5
      %v2587 = vrot.slane %v2586, 4
      %v2588 = vrot.slane %v1821, 5
      %v2589 = vsel %vm1147, %v2587, %v2588
      %v2590 = vrot.slane %v2588, 4
      %v2591 = vrot.slane %v1822, 5
      %v2592 = vsel %vm1147, %v2590, %v2591
      %v2593 = vrot.slane %v2469, 5
      %v2594 = vrot.slane %v2593, 4
      %v2595 = vrot.slane %v1824, 5
      %v2596 = vsel %vm1147, %v2594, %v2595
      %v2597 = vrot.slane %v2595, 4
      %v2598 = vrot.slane %v1825, 5
      %v2599 = vsel %vm1147, %v2597, %v2598
      %v2600 = vrot.slane %v2470, 5
      %v2601 = vrot.slane %v2600, 4
      %v2602 = vrot.slane %v1827, 5
      %v2603 = vsel %vm1147, %v2601, %v2602
      %v2604 = vrot.slane %v2602, 4
      %v2605 = vrot.slane %v1828, 5
      %v2606 = vsel %vm1147, %v2604, %v2605
      %v2607 = vrot.slane %v2471, 5
      %v2608 = vrot.slane %v2607, 4
      %v2609 = vrot.slane %v1830, 5
      %v2610 = vsel %vm1147, %v2608, %v2609
      %v2611 = vrot.slane %v2609, 4
      %v2612 = vrot.slane %v1831, 5
      %v2613 = vsel %vm1147, %v2611, %v2612
      %v2614 = vrot.slane %v2472, 5
      %v2615 = vrot.slane %v2614, 4
      %v2616 = vrot.slane %v1833, 5
      %v2617 = vsel %vm1147, %v2615, %v2616
      %v2618 = vrot.slane %v2616, 4
      %v2619 = vrot.slane %v1834, 5
      %v2620 = vsel %vm1147, %v2618, %v2619
      %v2621 = vrot.slane %v2473, 5
      %v2622 = vrot.slane %v2621, 4
      %v2623 = vrot.slane %v1836, 5
      %v2624 = vsel %vm1147, %v2622, %v2623
      %v2625 = vrot.slane %v2623, 4
      %v2626 = vrot.slane %v1837, 5
      %v2627 = vsel %vm1147, %v2625, %v2626
      %v2628 = vrot.slane %v2474, 5
      %v2629 = vrot.slane %v2628, 4
      %v2630 = vrot.slane %v1839, 5
      %v2631 = vsel %vm1147, %v2629, %v2630
      %v2632 = vrot.slane %v2630, 4
      %v2633 = vrot.slane %v1840, 5
      %v2634 = vsel %vm1147, %v2632, %v2633
      %s2635 = scalar_lea.vmem %s1, 80
      %v2636 = vld [vmem:[%s2635] sm:$0xf]
      %v2637 = vld [vmem:[%s2635 + $0x4] sm:$0xf]
      %v2638 = vld [vmem:[%s2635 + $0x8] sm:$0xf]
      %v2639 = vld [vmem:[%s2635 + $0xc] sm:$0xf]
      %v2640 = vunpack.c.l.b16 %v2526
      %v2641 = vunpack.c.l.b16 %v2529
      %v2642 = vunpack.c.l.b16 %v2533
      %v2643 = vunpack.c.l.b16 %v2536
      %v2644 = vunpack.c.l.b16 %v2540
      %v2645 = vunpack.c.l.b16 %v2543
      %v2646 = vunpack.c.l.b16 %v2547
      %v2647 = vunpack.c.l.b16 %v2550
      %v2648 = vunpack.c.l.b16 %v2554
      %v2649 = vunpack.c.l.b16 %v2557
      %v2650 = vunpack.c.l.b16 %v2561
      %v2651 = vunpack.c.l.b16 %v2564
      %v2652 = vunpack.c.l.b16 %v2568
      %v2653 = vunpack.c.l.b16 %v2571
      %v2654 = vunpack.c.l.b16 %v2575
      %v2655 = vunpack.c.l.b16 %v2578
      %v2656 = vunpack.c.l.b16 %v2582
      %v2657 = vunpack.c.l.b16 %v2585
      %v2658 = vunpack.c.l.b16 %v2589
      %v2659 = vunpack.c.l.b16 %v2592
      %v2660 = vunpack.c.l.b16 %v2596
      %v2661 = vunpack.c.l.b16 %v2599
      %v2662 = vunpack.c.l.b16 %v2603
      %v2663 = vunpack.c.l.b16 %v2606
      %v2664 = vunpack.c.l.b16 %v2610
      %v2665 = vunpack.c.l.b16 %v2613
      %v2666 = vunpack.c.l.b16 %v2617
      %v2667 = vunpack.c.l.b16 %v2620
      %v2668 = vunpack.c.l.b16 %v2624
      %v2669 = vunpack.c.l.b16 %v2627
      %v2670 = vunpack.c.l.b16 %v2631
      %v2671 = vunpack.c.l.b16 %v2634
      %v2672 = vpack.c.b16 %v2641, %v2640
      %v2673 = vpack.c.b16 %v2643, %v2642
      %v2674 = vpack.c.b16 %v2645, %v2644
      %v2675 = vpack.c.b16 %v2647, %v2646
      %v2676 = vpack.c.b16 %v2649, %v2648
      %v2677 = vpack.c.b16 %v2651, %v2650
      %v2678 = vpack.c.b16 %v2653, %v2652
      %v2679 = vpack.c.b16 %v2655, %v2654
      %v2680 = vpack.c.b16 %v2657, %v2656
      %v2681 = vpack.c.b16 %v2659, %v2658
      %v2682 = vpack.c.b16 %v2661, %v2660
      %v2683 = vpack.c.b16 %v2663, %v2662
      %v2684 = vpack.c.b16 %v2665, %v2664
      %v2685 = vpack.c.b16 %v2667, %v2666
      %v2686 = vpack.c.b16 %v2669, %v2668
      %v2687 = vpack.c.b16 %v2671, %v2670
      %v2692 = vunpack.c.l.b16 %v2636
      %v2693 = vunpack.c.l.b16 %v2637
      %v2694 = vunpack.c.l.b16 %v2638
      %v2695 = vunpack.c.l.b16 %v2639
      %v2696 = vpack.c.b16 %v2693, %v2692
      %v2697 = vpack.c.b16 %v2695, %v2694
      %v2701 = vsel %vm730, %v2672, 0
      %v2704 = vsel %vm730, %v2673, 0
      %v2707 = vsel %vm730, %v2674, 0
      %v2710 = vsel %vm730, %v2675, 0
      %v2713 = vsel %vm730, %v2676, 0
      %v2716 = vsel %vm730, %v2677, 0
      %v2719 = vsel %vm730, %v2678, 0
      %v2722 = vsel %vm730, %v2679, 0
      %v2725 = vsel %vm730, %v2680, 0
      %v2728 = vsel %vm730, %v2681, 0
      %v2731 = vsel %vm730, %v2682, 0
      %v2734 = vsel %vm730, %v2683, 0
      %v2737 = vsel %vm730, %v2684, 0
      %v2740 = vsel %vm730, %v2685, 0
      %v2743 = vsel %vm730, %v2686, 0
      %v2746 = vsel %vm730, %v2687, 0
      %2748 = vmatpush.bf16.msra.mxu0 0
      %2749 = vmatpush.bf16.msra.mxu0 0
      %2750 = vmatpush.bf16.msra.mxu0 0
      %2751 = vmatpush.bf16.msra.mxu0 0
      %2752 = vmatpush.bf16.msra.mxu0 0
      %2753 = vmatpush.bf16.msra.mxu0 0
      %2754 = vmatpush.bf16.msra.mxu0 %v2697
      %2755 = vmatpush.bf16.msra.mxu0 %v2696
      %2756 = vmatmul.bf16.gmra.mxu0 %v2701
      %v2757 = vpop.f32.mrf.mxu0
      %v2758 = vadd.f32 0.0, %v2757
      %v2759 = vpop.f32.mrf.mxu0
      %v2760 = vadd.f32 0.0, %v2759
      %2761 = vmatmul.bf16.gmra.mxu0 %v2704
      %v2762 = vpop.f32.mrf.mxu0
      %v2763 = vadd.f32 0.0, %v2762
      %v2764 = vpop.f32.mrf.mxu0
      %v2765 = vadd.f32 0.0, %v2764
      %2766 = vmatmul.bf16.gmra.mxu0 %v2707
      %v2767 = vpop.f32.mrf.mxu0
      %v2768 = vadd.f32 0.0, %v2767
      %v2769 = vpop.f32.mrf.mxu0
      %v2770 = vadd.f32 0.0, %v2769
      %2771 = vmatmul.bf16.gmra.mxu0 %v2710
      %v2772 = vpop.f32.mrf.mxu0
      %v2773 = vadd.f32 0.0, %v2772
      %v2774 = vpop.f32.mrf.mxu0
      %v2775 = vadd.f32 0.0, %v2774
      %2776 = vmatmul.bf16.gmra.mxu0 %v2713
      %v2777 = vpop.f32.mrf.mxu0
      %v2778 = vadd.f32 0.0, %v2777
      %v2779 = vpop.f32.mrf.mxu0
      %v2780 = vadd.f32 0.0, %v2779
      %2781 = vmatmul.bf16.gmra.mxu0 %v2716
      %v2782 = vpop.f32.mrf.mxu0
      %v2783 = vadd.f32 0.0, %v2782
      %v2784 = vpop.f32.mrf.mxu0
      %v2785 = vadd.f32 0.0, %v2784
      %2786 = vmatmul.bf16.gmra.mxu0 %v2719
      %v2787 = vpop.f32.mrf.mxu0
      %v2788 = vadd.f32 0.0, %v2787
      %v2789 = vpop.f32.mrf.mxu0
      %v2790 = vadd.f32 0.0, %v2789
      %2791 = vmatmul.bf16.gmra.mxu0 %v2722
      %v2792 = vpop.f32.mrf.mxu0
      %v2793 = vadd.f32 0.0, %v2792
      %v2794 = vpop.f32.mrf.mxu0
      %v2795 = vadd.f32 0.0, %v2794
      %2796 = vmatmul.bf16.gmra.mxu0 %v2725
      %v2797 = vpop.f32.mrf.mxu0
      %v2798 = vadd.f32 0.0, %v2797
      %v2799 = vpop.f32.mrf.mxu0
      %v2800 = vadd.f32 0.0, %v2799
      %2801 = vmatmul.bf16.gmra.mxu0 %v2728
      %v2802 = vpop.f32.mrf.mxu0
      %v2803 = vadd.f32 0.0, %v2802
      %v2804 = vpop.f32.mrf.mxu0
      %v2805 = vadd.f32 0.0, %v2804
      %2806 = vmatmul.bf16.gmra.mxu0 %v2731
      %v2807 = vpop.f32.mrf.mxu0
      %v2808 = vadd.f32 0.0, %v2807
      %v2809 = vpop.f32.mrf.mxu0
      %v2810 = vadd.f32 0.0, %v2809
      %2811 = vmatmul.bf16.gmra.mxu0 %v2734
      %v2812 = vpop.f32.mrf.mxu0
      %v2813 = vadd.f32 0.0, %v2812
      %v2814 = vpop.f32.mrf.mxu0
      %v2815 = vadd.f32 0.0, %v2814
      %2816 = vmatmul.bf16.gmra.mxu0 %v2737
      %v2817 = vpop.f32.mrf.mxu0
      %v2818 = vadd.f32 0.0, %v2817
      %v2819 = vpop.f32.mrf.mxu0
      %v2820 = vadd.f32 0.0, %v2819
      %2821 = vmatmul.bf16.gmra.mxu0 %v2740
      %v2822 = vpop.f32.mrf.mxu0
      %v2823 = vadd.f32 0.0, %v2822
      %v2824 = vpop.f32.mrf.mxu0
      %v2825 = vadd.f32 0.0, %v2824
      %2826 = vmatmul.bf16.gmra.mxu0 %v2743
      %v2827 = vpop.f32.mrf.mxu0
      %v2828 = vadd.f32 0.0, %v2827
      %v2829 = vpop.f32.mrf.mxu0
      %v2830 = vadd.f32 0.0, %v2829
      %2831 = vmatmul.bf16.gmra.mxu0 %v2746
      %v2832 = vpop.f32.mrf.mxu0
      %v2833 = vadd.f32 0.0, %v2832
      %v2834 = vpop.f32.mrf.mxu0
      %v2835 = vadd.f32 0.0, %v2834
      %2836 = vdwg.mxu0
      %v2837 = vadd.f32 %v2427, %v2758
      %v2838 = vadd.f32 %v2428, %v2760
      %v2839 = vadd.f32 %v2429, %v2763
      %v2840 = vadd.f32 %v2430, %v2765
      %v2841 = vadd.f32 %v2431, %v2768
      %v2842 = vadd.f32 %v2432, %v2770
      %v2843 = vadd.f32 %v2433, %v2773
      %v2844 = vadd.f32 %v2434, %v2775
      %v2845 = vadd.f32 %v2435, %v2778
      %v2846 = vadd.f32 %v2436, %v2780
      %v2847 = vadd.f32 %v2437, %v2783
      %v2848 = vadd.f32 %v2438, %v2785
      %v2849 = vadd.f32 %v2439, %v2788
      %v2850 = vadd.f32 %v2440, %v2790
      %v2851 = vadd.f32 %v2441, %v2793
      %v2852 = vadd.f32 %v2442, %v2795
      %v2853 = vadd.f32 %v2443, %v2798
      %v2854 = vadd.f32 %v2444, %v2800
      %v2855 = vadd.f32 %v2445, %v2803
      %v2856 = vadd.f32 %v2446, %v2805
      %v2857 = vadd.f32 %v2447, %v2808
      %v2858 = vadd.f32 %v2448, %v2810
      %v2859 = vadd.f32 %v2449, %v2813
      %v2860 = vadd.f32 %v2450, %v2815
      %v2861 = vadd.f32 %v2451, %v2818
      %v2862 = vadd.f32 %v2452, %v2820
      %v2863 = vadd.f32 %v2453, %v2823
      %v2864 = vadd.f32 %v2454, %v2825
      %v2865 = vadd.f32 %v2455, %v2828
      %v2866 = vadd.f32 %v2456, %v2830
      %v2867 = vadd.f32 %v2457, %v2833
      %v2868 = vadd.f32 %v2458, %v2835
      %s2869 = scalar_lea.vmem %s219, 24
      %v2870 = vld [vmem:[%s2869] sm:$0xf]
      %v2871 = vld [vmem:[%s2869 + $0x4] sm:$0xf]
      %v2872 = vld [vmem:[%s2869 + $0xc] sm:$0xf]
      %v2873 = vld [vmem:[%s2869 + $0x10] sm:$0xf]
      %v2874 = vld [vmem:[%s2869 + $0x18] sm:$0xf]
      %v2875 = vld [vmem:[%s2869 + $0x1c] sm:$0xf]
      %v2876 = vld [vmem:[%s2869 + $0x24] sm:$0xf]
      %v2877 = vld [vmem:[%s2869 + $0x28] sm:$0xf]
      %v2878 = vld [vmem:[%s2869 + $0x30] sm:$0xf]
      %v2879 = vld [vmem:[%s2869 + $0x34] sm:$0xf]
      %v2880 = vld [vmem:[%s2869 + $0x3c] sm:$0xf]
      %v2881 = vld [vmem:[%s2869 + $0x40] sm:$0xf]
      %v2882 = vld [vmem:[%s2869 + $0x48] sm:$0xf]
      %v2883 = vld [vmem:[%s2869 + $0x4c] sm:$0xf]
      %v2884 = vld [vmem:[%s2869 + $0x54] sm:$0xf]
      %v2885 = vld [vmem:[%s2869 + $0x58] sm:$0xf]
      %v2886 = vld [vmem:[%s2869 + $0x60] sm:$0xf]
      %v2887 = vld [vmem:[%s2869 + $0x64] sm:$0xf]
      %v2888 = vld [vmem:[%s2869 + $0x6c] sm:$0xf]
      %v2889 = vld [vmem:[%s2869 + $0x70] sm:$0xf]
      %v2890 = vld [vmem:[%s2869 + $0x78] sm:$0xf]
      %v2891 = vld [vmem:[%s2869 + $0x7c] sm:$0xf]
      %v2892 = vld [vmem:[%s2869 + $0x84] sm:$0xf]
      %v2893 = vld [vmem:[%s2869 + $0x88] sm:$0xf]
      %v2894 = vld [vmem:[%s2869 + $0x90] sm:$0xf]
      %v2895 = vld [vmem:[%s2869 + $0x94] sm:$0xf]
      %v2896 = vld [vmem:[%s2869 + $0x9c] sm:$0xf]
      %v2897 = vld [vmem:[%s2869 + $0xa0] sm:$0xf]
      %v2898 = vld [vmem:[%s2869 + $0xa8] sm:$0xf]
      %v2899 = vld [vmem:[%s2869 + $0xac] sm:$0xf]
      %v2900 = vld [vmem:[%s2869 + $0xb4] sm:$0xf]
      %v2901 = vld [vmem:[%s2869 + $0xb8] sm:$0xf]
      %s2902 = scalar_lea.vmem %s1, 96
      %v2903 = vld [vmem:[%s2902] sm:$0xf]
      %v2904 = vld [vmem:[%s2902 + $0x4] sm:$0xf]
      %v2905 = vld [vmem:[%s2902 + $0x8] sm:$0xf]
      %v2906 = vld [vmem:[%s2902 + $0xc] sm:$0xf]
      %v2939 = vunpack.c.l.b16 %v2870
      %v2940 = vunpack.c.l.b16 %v2871
      %v2941 = vunpack.c.l.b16 %v2872
      %v2942 = vunpack.c.l.b16 %v2873
      %v2943 = vunpack.c.l.b16 %v2874
      %v2944 = vunpack.c.l.b16 %v2875
      %v2945 = vunpack.c.l.b16 %v2876
      %v2946 = vunpack.c.l.b16 %v2877
      %v2947 = vunpack.c.l.b16 %v2878
      %v2948 = vunpack.c.l.b16 %v2879
      %v2949 = vunpack.c.l.b16 %v2880
      %v2950 = vunpack.c.l.b16 %v2881
      %v2951 = vunpack.c.l.b16 %v2882
      %v2952 = vunpack.c.l.b16 %v2883
      %v2953 = vunpack.c.l.b16 %v2884
      %v2954 = vunpack.c.l.b16 %v2885
      %v2955 = vunpack.c.l.b16 %v2886
      %v2956 = vunpack.c.l.b16 %v2887
      %v2957 = vunpack.c.l.b16 %v2888
      %v2958 = vunpack.c.l.b16 %v2889
      %v2959 = vunpack.c.l.b16 %v2890
      %v2960 = vunpack.c.l.b16 %v2891
      %v2961 = vunpack.c.l.b16 %v2892
      %v2962 = vunpack.c.l.b16 %v2893
      %v2963 = vunpack.c.l.b16 %v2894
      %v2964 = vunpack.c.l.b16 %v2895
      %v2965 = vunpack.c.l.b16 %v2896
      %v2966 = vunpack.c.l.b16 %v2897
      %v2967 = vunpack.c.l.b16 %v2898
      %v2968 = vunpack.c.l.b16 %v2899
      %v2969 = vunpack.c.l.b16 %v2900
      %v2970 = vunpack.c.l.b16 %v2901
      %v2971 = vpack.c.b16 %v2940, %v2939
      %v2972 = vpack.c.b16 %v2942, %v2941
      %v2973 = vpack.c.b16 %v2944, %v2943
      %v2974 = vpack.c.b16 %v2946, %v2945
      %v2975 = vpack.c.b16 %v2948, %v2947
      %v2976 = vpack.c.b16 %v2950, %v2949
      %v2977 = vpack.c.b16 %v2952, %v2951
      %v2978 = vpack.c.b16 %v2954, %v2953
      %v2979 = vpack.c.b16 %v2956, %v2955
      %v2980 = vpack.c.b16 %v2958, %v2957
      %v2981 = vpack.c.b16 %v2960, %v2959
      %v2982 = vpack.c.b16 %v2962, %v2961
      %v2983 = vpack.c.b16 %v2964, %v2963
      %v2984 = vpack.c.b16 %v2966, %v2965
      %v2985 = vpack.c.b16 %v2968, %v2967
      %v2986 = vpack.c.b16 %v2970, %v2969
      %v2991 = vunpack.c.l.b16 %v2903
      %v2992 = vunpack.c.l.b16 %v2904
      %v2993 = vunpack.c.l.b16 %v2905
      %v2994 = vunpack.c.l.b16 %v2906
      %v2995 = vpack.c.b16 %v2992, %v2991
      %v2996 = vpack.c.b16 %v2994, %v2993
      %v3000 = vsel %vm730, %v2971, 0
      %v3003 = vsel %vm730, %v2972, 0
      %v3006 = vsel %vm730, %v2973, 0
      %v3009 = vsel %vm730, %v2974, 0
      %v3012 = vsel %vm730, %v2975, 0
      %v3015 = vsel %vm730, %v2976, 0
      %v3018 = vsel %vm730, %v2977, 0
      %v3021 = vsel %vm730, %v2978, 0
      %v3024 = vsel %vm730, %v2979, 0
      %v3027 = vsel %vm730, %v2980, 0
      %v3030 = vsel %vm730, %v2981, 0
      %v3033 = vsel %vm730, %v2982, 0
      %v3036 = vsel %vm730, %v2983, 0
      %v3039 = vsel %vm730, %v2984, 0
      %v3042 = vsel %vm730, %v2985, 0
      %v3045 = vsel %vm730, %v2986, 0
      %3047 = vmatpush.bf16.msra.mxu0 0
      %3048 = vmatpush.bf16.msra.mxu0 0
      %3049 = vmatpush.bf16.msra.mxu0 0
      %3050 = vmatpush.bf16.msra.mxu0 0
      %3051 = vmatpush.bf16.msra.mxu0 0
      %3052 = vmatpush.bf16.msra.mxu0 0
      %3053 = vmatpush.bf16.msra.mxu0 %v2996
      %3054 = vmatpush.bf16.msra.mxu0 %v2995
      %3055 = vmatmul.bf16.gmra.mxu0 %v3000
      %v3056 = vpop.f32.mrf.mxu0
      %v3057 = vadd.f32 0.0, %v3056
      %v3058 = vpop.f32.mrf.mxu0
      %v3059 = vadd.f32 0.0, %v3058
      %3060 = vmatmul.bf16.gmra.mxu0 %v3003
      %v3061 = vpop.f32.mrf.mxu0
      %v3062 = vadd.f32 0.0, %v3061
      %v3063 = vpop.f32.mrf.mxu0
      %v3064 = vadd.f32 0.0, %v3063
      %3065 = vmatmul.bf16.gmra.mxu0 %v3006
      %v3066 = vpop.f32.mrf.mxu0
      %v3067 = vadd.f32 0.0, %v3066
      %v3068 = vpop.f32.mrf.mxu0
      %v3069 = vadd.f32 0.0, %v3068
      %3070 = vmatmul.bf16.gmra.mxu0 %v3009
      %v3071 = vpop.f32.mrf.mxu0
      %v3072 = vadd.f32 0.0, %v3071
      %v3073 = vpop.f32.mrf.mxu0
      %v3074 = vadd.f32 0.0, %v3073
      %3075 = vmatmul.bf16.gmra.mxu0 %v3012
      %v3076 = vpop.f32.mrf.mxu0
      %v3077 = vadd.f32 0.0, %v3076
      %v3078 = vpop.f32.mrf.mxu0
      %v3079 = vadd.f32 0.0, %v3078
      %3080 = vmatmul.bf16.gmra.mxu0 %v3015
      %v3081 = vpop.f32.mrf.mxu0
      %v3082 = vadd.f32 0.0, %v3081
      %v3083 = vpop.f32.mrf.mxu0
      %v3084 = vadd.f32 0.0, %v3083
      %3085 = vmatmul.bf16.gmra.mxu0 %v3018
      %v3086 = vpop.f32.mrf.mxu0
      %v3087 = vadd.f32 0.0, %v3086
      %v3088 = vpop.f32.mrf.mxu0
      %v3089 = vadd.f32 0.0, %v3088
      %3090 = vmatmul.bf16.gmra.mxu0 %v3021
      %v3091 = vpop.f32.mrf.mxu0
      %v3092 = vadd.f32 0.0, %v3091
      %v3093 = vpop.f32.mrf.mxu0
      %v3094 = vadd.f32 0.0, %v3093
      %3095 = vmatmul.bf16.gmra.mxu0 %v3024
      %v3096 = vpop.f32.mrf.mxu0
      %v3097 = vadd.f32 0.0, %v3096
      %v3098 = vpop.f32.mrf.mxu0
      %v3099 = vadd.f32 0.0, %v3098
      %3100 = vmatmul.bf16.gmra.mxu0 %v3027
      %v3101 = vpop.f32.mrf.mxu0
      %v3102 = vadd.f32 0.0, %v3101
      %v3103 = vpop.f32.mrf.mxu0
      %v3104 = vadd.f32 0.0, %v3103
      %3105 = vmatmul.bf16.gmra.mxu0 %v3030
      %v3106 = vpop.f32.mrf.mxu0
      %v3107 = vadd.f32 0.0, %v3106
      %v3108 = vpop.f32.mrf.mxu0
      %v3109 = vadd.f32 0.0, %v3108
      %3110 = vmatmul.bf16.gmra.mxu0 %v3033
      %v3111 = vpop.f32.mrf.mxu0
      %v3112 = vadd.f32 0.0, %v3111
      %v3113 = vpop.f32.mrf.mxu0
      %v3114 = vadd.f32 0.0, %v3113
      %3115 = vmatmul.bf16.gmra.mxu0 %v3036
      %v3116 = vpop.f32.mrf.mxu0
      %v3117 = vadd.f32 0.0, %v3116
      %v3118 = vpop.f32.mrf.mxu0
      %v3119 = vadd.f32 0.0, %v3118
      %3120 = vmatmul.bf16.gmra.mxu0 %v3039
      %v3121 = vpop.f32.mrf.mxu0
      %v3122 = vadd.f32 0.0, %v3121
      %v3123 = vpop.f32.mrf.mxu0
      %v3124 = vadd.f32 0.0, %v3123
      %3125 = vmatmul.bf16.gmra.mxu0 %v3042
      %v3126 = vpop.f32.mrf.mxu0
      %v3127 = vadd.f32 0.0, %v3126
      %v3128 = vpop.f32.mrf.mxu0
      %v3129 = vadd.f32 0.0, %v3128
      %3130 = vmatmul.bf16.gmra.mxu0 %v3045
      %v3131 = vpop.f32.mrf.mxu0
      %v3132 = vadd.f32 0.0, %v3131
      %v3133 = vpop.f32.mrf.mxu0
      %v3134 = vadd.f32 0.0, %v3133
      %3135 = vdwg.mxu0
      %v3136 = vadd.f32 %v2837, %v3057
      %v3137 = vadd.f32 %v2838, %v3059
      %v3138 = vadd.f32 %v2839, %v3062
      %v3139 = vadd.f32 %v2840, %v3064
      %v3140 = vadd.f32 %v2841, %v3067
      %v3141 = vadd.f32 %v2842, %v3069
      %v3142 = vadd.f32 %v2843, %v3072
      %v3143 = vadd.f32 %v2844, %v3074
      %v3144 = vadd.f32 %v2845, %v3077
      %v3145 = vadd.f32 %v2846, %v3079
      %v3146 = vadd.f32 %v2847, %v3082
      %v3147 = vadd.f32 %v2848, %v3084
      %v3148 = vadd.f32 %v2849, %v3087
      %v3149 = vadd.f32 %v2850, %v3089
      %v3150 = vadd.f32 %v2851, %v3092
      %v3151 = vadd.f32 %v2852, %v3094
      %v3152 = vadd.f32 %v2853, %v3097
      %v3153 = vadd.f32 %v2854, %v3099
      %v3154 = vadd.f32 %v2855, %v3102
      %v3155 = vadd.f32 %v2856, %v3104
      %v3156 = vadd.f32 %v2857, %v3107
      %v3157 = vadd.f32 %v2858, %v3109
      %v3158 = vadd.f32 %v2859, %v3112
      %v3159 = vadd.f32 %v2860, %v3114
      %v3160 = vadd.f32 %v2861, %v3117
      %v3161 = vadd.f32 %v2862, %v3119
      %v3162 = vadd.f32 %v2863, %v3122
      %v3163 = vadd.f32 %v2864, %v3124
      %v3164 = vadd.f32 %v2865, %v3127
      %v3165 = vadd.f32 %v2866, %v3129
      %v3166 = vadd.f32 %v2867, %v3132
      %v3167 = vadd.f32 %v2868, %v3134
      %v3168 = vld [vmem:[%s2869] sm:$0xf]
      %v3169 = vld [vmem:[%s2869 + $0x4] sm:$0xf]
      %v3170 = vld [vmem:[%s2869 + $0x8] sm:$0x1]
      %v3171 = vld [vmem:[%s2869 + $0xc] sm:$0xf]
      %v3172 = vld [vmem:[%s2869 + $0x10] sm:$0xf]
      %v3173 = vld [vmem:[%s2869 + $0x14] sm:$0x1]
      %v3174 = vld [vmem:[%s2869 + $0x18] sm:$0xf]
      %v3175 = vld [vmem:[%s2869 + $0x1c] sm:$0xf]
      %v3176 = vld [vmem:[%s2869 + $0x20] sm:$0x1]
      %v3177 = vld [vmem:[%s2869 + $0x24] sm:$0xf]
      %v3178 = vld [vmem:[%s2869 + $0x28] sm:$0xf]
      %v3179 = vld [vmem:[%s2869 + $0x2c] sm:$0x1]
      %v3180 = vld [vmem:[%s2869 + $0x30] sm:$0xf]
      %v3181 = vld [vmem:[%s2869 + $0x34] sm:$0xf]
      %v3182 = vld [vmem:[%s2869 + $0x38] sm:$0x1]
      %v3183 = vld [vmem:[%s2869 + $0x3c] sm:$0xf]
      %v3184 = vld [vmem:[%s2869 + $0x40] sm:$0xf]
      %v3185 = vld [vmem:[%s2869 + $0x44] sm:$0x1]
      %v3186 = vld [vmem:[%s2869 + $0x48] sm:$0xf]
      %v3187 = vld [vmem:[%s2869 + $0x4c] sm:$0xf]
      %v3188 = vld [vmem:[%s2869 + $0x50] sm:$0x1]
      %v3189 = vld [vmem:[%s2869 + $0x54] sm:$0xf]
      %v3190 = vld [vmem:[%s2869 + $0x58] sm:$0xf]
      %v3191 = vld [vmem:[%s2869 + $0x5c] sm:$0x1]
      %v3192 = vld [vmem:[%s2869 + $0x60] sm:$0xf]
      %v3193 = vld [vmem:[%s2869 + $0x64] sm:$0xf]
      %v3194 = vld [vmem:[%s2869 + $0x68] sm:$0x1]
      %v3195 = vld [vmem:[%s2869 + $0x6c] sm:$0xf]
      %v3196 = vld [vmem:[%s2869 + $0x70] sm:$0xf]
      %v3197 = vld [vmem:[%s2869 + $0x74] sm:$0x1]
      %v3198 = vld [vmem:[%s2869 + $0x78] sm:$0xf]
      %v3199 = vld [vmem:[%s2869 + $0x7c] sm:$0xf]
      %v3200 = vld [vmem:[%s2869 + $0x80] sm:$0x1]
      %v3201 = vld [vmem:[%s2869 + $0x84] sm:$0xf]
      %v3202 = vld [vmem:[%s2869 + $0x88] sm:$0xf]
      %v3203 = vld [vmem:[%s2869 + $0x8c] sm:$0x1]
      %v3204 = vld [vmem:[%s2869 + $0x90] sm:$0xf]
      %v3205 = vld [vmem:[%s2869 + $0x94] sm:$0xf]
      %v3206 = vld [vmem:[%s2869 + $0x98] sm:$0x1]
      %v3207 = vld [vmem:[%s2869 + $0x9c] sm:$0xf]
      %v3208 = vld [vmem:[%s2869 + $0xa0] sm:$0xf]
      %v3209 = vld [vmem:[%s2869 + $0xa4] sm:$0x1]
      %v3210 = vld [vmem:[%s2869 + $0xa8] sm:$0xf]
      %v3211 = vld [vmem:[%s2869 + $0xac] sm:$0xf]
      %v3212 = vld [vmem:[%s2869 + $0xb0] sm:$0x1]
      %v3213 = vld [vmem:[%s2869 + $0xb4] sm:$0xf]
      %v3214 = vld [vmem:[%s2869 + $0xb8] sm:$0xf]
      %v3215 = vld [vmem:[%s2869 + $0xbc] sm:$0x1]
      %v3217 = vshrl.u32 %v3168, 16
      %v3219 = vrot.slane %v3217, 4
      %v3220 = vshll.u32 %v3168, 16
      %v3222 = vrot.slane %v3220, 5
      %v3223 = vor.u32 %v3219, %v3222
      %v3224 = vrot.slane %v3223, 4
      %v3226 = vshll.u32 %v3169, 16
      %v3228 = vrot.slane %v3226, 5
      %v3229 = vsel %vm280, %v3224, %v3228
      %v3230 = vshrl.u32 %v3169, 16
      %v3232 = vrot.slane %v3230, 4
      %v3233 = vor.u32 %v3232, %v3228
      %v3234 = vrot.slane %v3233, 4
      %v3236 = vshll.u32 %v3170, 16
      %v3238 = vrot.slane %v3236, 5
      %v3239 = vsel %vm280, %v3234, %v3238
      %v3241 = vshrl.u32 %v3171, 16
      %v3243 = vrot.slane %v3241, 4
      %v3244 = vshll.u32 %v3171, 16
      %v3246 = vrot.slane %v3244, 5
      %v3247 = vor.u32 %v3243, %v3246
      %v3248 = vrot.slane %v3247, 4
      %v3250 = vshll.u32 %v3172, 16
      %v3252 = vrot.slane %v3250, 5
      %v3253 = vsel %vm280, %v3248, %v3252
      %v3254 = vshrl.u32 %v3172, 16
      %v3256 = vrot.slane %v3254, 4
      %v3257 = vor.u32 %v3256, %v3252
      %v3258 = vrot.slane %v3257, 4
      %v3260 = vshll.u32 %v3173, 16
      %v3262 = vrot.slane %v3260, 5
      %v3263 = vsel %vm280, %v3258, %v3262
      %v3265 = vshrl.u32 %v3174, 16
      %v3267 = vrot.slane %v3265, 4
      %v3268 = vshll.u32 %v3174, 16
      %v3270 = vrot.slane %v3268, 5
      %v3271 = vor.u32 %v3267, %v3270
      %v3272 = vrot.slane %v3271, 4
      %v3274 = vshll.u32 %v3175, 16
      %v3276 = vrot.slane %v3274, 5
      %v3277 = vsel %vm280, %v3272, %v3276
      %v3278 = vshrl.u32 %v3175, 16
      %v3280 = vrot.slane %v3278, 4
      %v3281 = vor.u32 %v3280, %v3276
      %v3282 = vrot.slane %v3281, 4
      %v3284 = vshll.u32 %v3176, 16
      %v3286 = vrot.slane %v3284, 5
      %v3287 = vsel %vm280, %v3282, %v3286
      %v3289 = vshrl.u32 %v3177, 16
      %v3291 = vrot.slane %v3289, 4
      %v3292 = vshll.u32 %v3177, 16
      %v3294 = vrot.slane %v3292, 5
      %v3295 = vor.u32 %v3291, %v3294
      %v3296 = vrot.slane %v3295, 4
      %v3298 = vshll.u32 %v3178, 16
      %v3300 = vrot.slane %v3298, 5
      %v3301 = vsel %vm280, %v3296, %v3300
      %v3302 = vshrl.u32 %v3178, 16
      %v3304 = vrot.slane %v3302, 4
      %v3305 = vor.u32 %v3304, %v3300
      %v3306 = vrot.slane %v3305, 4
      %v3308 = vshll.u32 %v3179, 16
      %v3310 = vrot.slane %v3308, 5
      %v3311 = vsel %vm280, %v3306, %v3310
      %v3313 = vshrl.u32 %v3180, 16
      %v3315 = vrot.slane %v3313, 4
      %v3316 = vshll.u32 %v3180, 16
      %v3318 = vrot.slane %v3316, 5
      %v3319 = vor.u32 %v3315, %v3318
      %v3320 = vrot.slane %v3319, 4
      %v3322 = vshll.u32 %v3181, 16
      %v3324 = vrot.slane %v3322, 5
      %v3325 = vsel %vm280, %v3320, %v3324
      %v3326 = vshrl.u32 %v3181, 16
      %v3328 = vrot.slane %v3326, 4
      %v3329 = vor.u32 %v3328, %v3324
      %v3330 = vrot.slane %v3329, 4
      %v3332 = vshll.u32 %v3182, 16
      %v3334 = vrot.slane %v3332, 5
      %v3335 = vsel %vm280, %v3330, %v3334
      %v3337 = vshrl.u32 %v3183, 16
      %v3339 = vrot.slane %v3337, 4
      %v3340 = vshll.u32 %v3183, 16
      %v3342 = vrot.slane %v3340, 5
      %v3343 = vor.u32 %v3339, %v3342
      %v3344 = vrot.slane %v3343, 4
      %v3346 = vshll.u32 %v3184, 16
      %v3348 = vrot.slane %v3346, 5
      %v3349 = vsel %vm280, %v3344, %v3348
      %v3350 = vshrl.u32 %v3184, 16
      %v3352 = vrot.slane %v3350, 4
      %v3353 = vor.u32 %v3352, %v3348
      %v3354 = vrot.slane %v3353, 4
      %v3356 = vshll.u32 %v3185, 16
      %v3358 = vrot.slane %v3356, 5
      %v3359 = vsel %vm280, %v3354, %v3358
      %v3361 = vshrl.u32 %v3186, 16
      %v3363 = vrot.slane %v3361, 4
      %v3364 = vshll.u32 %v3186, 16
      %v3366 = vrot.slane %v3364, 5
      %v3367 = vor.u32 %v3363, %v3366
      %v3368 = vrot.slane %v3367, 4
      %v3370 = vshll.u32 %v3187, 16
      %v3372 = vrot.slane %v3370, 5
      %v3373 = vsel %vm280, %v3368, %v3372
      %v3374 = vshrl.u32 %v3187, 16
      %v3376 = vrot.slane %v3374, 4
      %v3377 = vor.u32 %v3376, %v3372
      %v3378 = vrot.slane %v3377, 4
      %v3380 = vshll.u32 %v3188, 16
      %v3382 = vrot.slane %v3380, 5
      %v3383 = vsel %vm280, %v3378, %v3382
      %v3385 = vshrl.u32 %v3189, 16
      %v3387 = vrot.slane %v3385, 4
      %v3388 = vshll.u32 %v3189, 16
      %v3390 = vrot.slane %v3388, 5
      %v3391 = vor.u32 %v3387, %v3390
      %v3392 = vrot.slane %v3391, 4
      %v3394 = vshll.u32 %v3190, 16
      %v3396 = vrot.slane %v3394, 5
      %v3397 = vsel %vm280, %v3392, %v3396
      %v3398 = vshrl.u32 %v3190, 16
      %v3400 = vrot.slane %v3398, 4
      %v3401 = vor.u32 %v3400, %v3396
      %v3402 = vrot.slane %v3401, 4
      %v3404 = vshll.u32 %v3191, 16
      %v3406 = vrot.slane %v3404, 5
      %v3407 = vsel %vm280, %v3402, %v3406
      %v3409 = vshrl.u32 %v3192, 16
      %v3411 = vrot.slane %v3409, 4
      %v3412 = vshll.u32 %v3192, 16
      %v3414 = vrot.slane %v3412, 5
      %v3415 = vor.u32 %v3411, %v3414
      %v3416 = vrot.slane %v3415, 4
      %v3418 = vshll.u32 %v3193, 16
      %v3420 = vrot.slane %v3418, 5
      %v3421 = vsel %vm280, %v3416, %v3420
      %v3422 = vshrl.u32 %v3193, 16
      %v3424 = vrot.slane %v3422, 4
      %v3425 = vor.u32 %v3424, %v3420
      %v3426 = vrot.slane %v3425, 4
      %v3428 = vshll.u32 %v3194, 16
      %v3430 = vrot.slane %v3428, 5
      %v3431 = vsel %vm280, %v3426, %v3430
      %v3433 = vshrl.u32 %v3195, 16
      %v3435 = vrot.slane %v3433, 4
      %v3436 = vshll.u32 %v3195, 16
      %v3438 = vrot.slane %v3436, 5
      %v3439 = vor.u32 %v3435, %v3438
      %v3440 = vrot.slane %v3439, 4
      %v3442 = vshll.u32 %v3196, 16
      %v3444 = vrot.slane %v3442, 5
      %v3445 = vsel %vm280, %v3440, %v3444
      %v3446 = vshrl.u32 %v3196, 16
      %v3448 = vrot.slane %v3446, 4
      %v3449 = vor.u32 %v3448, %v3444
      %v3450 = vrot.slane %v3449, 4
      %v3452 = vshll.u32 %v3197, 16
      %v3454 = vrot.slane %v3452, 5
      %v3455 = vsel %vm280, %v3450, %v3454
      %v3457 = vshrl.u32 %v3198, 16
      %v3459 = vrot.slane %v3457, 4
      %v3460 = vshll.u32 %v3198, 16
      %v3462 = vrot.slane %v3460, 5
      %v3463 = vor.u32 %v3459, %v3462
      %v3464 = vrot.slane %v3463, 4
      %v3466 = vshll.u32 %v3199, 16
      %v3468 = vrot.slane %v3466, 5
      %v3469 = vsel %vm280, %v3464, %v3468
      %v3470 = vshrl.u32 %v3199, 16
      %v3472 = vrot.slane %v3470, 4
      %v3473 = vor.u32 %v3472, %v3468
      %v3474 = vrot.slane %v3473, 4
      %v3476 = vshll.u32 %v3200, 16
      %v3478 = vrot.slane %v3476, 5
      %v3479 = vsel %vm280, %v3474, %v3478
      %v3481 = vshrl.u32 %v3201, 16
      %v3483 = vrot.slane %v3481, 4
      %v3484 = vshll.u32 %v3201, 16
      %v3486 = vrot.slane %v3484, 5
      %v3487 = vor.u32 %v3483, %v3486
      %v3488 = vrot.slane %v3487, 4
      %v3490 = vshll.u32 %v3202, 16
      %v3492 = vrot.slane %v3490, 5
      %v3493 = vsel %vm280, %v3488, %v3492
      %v3494 = vshrl.u32 %v3202, 16
      %v3496 = vrot.slane %v3494, 4
      %v3497 = vor.u32 %v3496, %v3492
      %v3498 = vrot.slane %v3497, 4
      %v3500 = vshll.u32 %v3203, 16
      %v3502 = vrot.slane %v3500, 5
      %v3503 = vsel %vm280, %v3498, %v3502
      %v3505 = vshrl.u32 %v3204, 16
      %v3507 = vrot.slane %v3505, 4
      %v3508 = vshll.u32 %v3204, 16
      %v3510 = vrot.slane %v3508, 5
      %v3511 = vor.u32 %v3507, %v3510
      %v3512 = vrot.slane %v3511, 4
      %v3514 = vshll.u32 %v3205, 16
      %v3516 = vrot.slane %v3514, 5
      %v3517 = vsel %vm280, %v3512, %v3516
      %v3518 = vshrl.u32 %v3205, 16
      %v3520 = vrot.slane %v3518, 4
      %v3521 = vor.u32 %v3520, %v3516
      %v3522 = vrot.slane %v3521, 4
      %v3524 = vshll.u32 %v3206, 16
      %v3526 = vrot.slane %v3524, 5
      %v3527 = vsel %vm280, %v3522, %v3526
      %v3529 = vshrl.u32 %v3207, 16
      %v3531 = vrot.slane %v3529, 4
      %v3532 = vshll.u32 %v3207, 16
      %v3534 = vrot.slane %v3532, 5
      %v3535 = vor.u32 %v3531, %v3534
      %v3536 = vrot.slane %v3535, 4
      %v3538 = vshll.u32 %v3208, 16
      %v3540 = vrot.slane %v3538, 5
      %v3541 = vsel %vm280, %v3536, %v3540
      %v3542 = vshrl.u32 %v3208, 16
      %v3544 = vrot.slane %v3542, 4
      %v3545 = vor.u32 %v3544, %v3540
      %v3546 = vrot.slane %v3545, 4
      %v3548 = vshll.u32 %v3209, 16
      %v3550 = vrot.slane %v3548, 5
      %v3551 = vsel %vm280, %v3546, %v3550
      %v3553 = vshrl.u32 %v3210, 16
      %v3555 = vrot.slane %v3553, 4
      %v3556 = vshll.u32 %v3210, 16
      %v3558 = vrot.slane %v3556, 5
      %v3559 = vor.u32 %v3555, %v3558
      %v3560 = vrot.slane %v3559, 4
      %v3562 = vshll.u32 %v3211, 16
      %v3564 = vrot.slane %v3562, 5
      %v3565 = vsel %vm280, %v3560, %v3564
      %v3566 = vshrl.u32 %v3211, 16
      %v3568 = vrot.slane %v3566, 4
      %v3569 = vor.u32 %v3568, %v3564
      %v3570 = vrot.slane %v3569, 4
      %v3572 = vshll.u32 %v3212, 16
      %v3574 = vrot.slane %v3572, 5
      %v3575 = vsel %vm280, %v3570, %v3574
      %v3577 = vshrl.u32 %v3213, 16
      %v3579 = vrot.slane %v3577, 4
      %v3580 = vshll.u32 %v3213, 16
      %v3582 = vrot.slane %v3580, 5
      %v3583 = vor.u32 %v3579, %v3582
      %v3584 = vrot.slane %v3583, 4
      %v3586 = vshll.u32 %v3214, 16
      %v3588 = vrot.slane %v3586, 5
      %v3589 = vsel %vm280, %v3584, %v3588
      %v3590 = vshrl.u32 %v3214, 16
      %v3592 = vrot.slane %v3590, 4
      %v3593 = vor.u32 %v3592, %v3588
      %v3594 = vrot.slane %v3593, 4
      %v3596 = vshll.u32 %v3215, 16
      %v3598 = vrot.slane %v3596, 5
      %v3599 = vsel %vm280, %v3594, %v3598
      %s3600 = scalar_lea.vmem %s1, 112
      %v3601 = vld [vmem:[%s3600] sm:$0xf]
      %v3602 = vld [vmem:[%s3600 + $0x4] sm:$0xf]
      %v3603 = vld [vmem:[%s3600 + $0x8] sm:$0xf]
      %v3604 = vld [vmem:[%s3600 + $0xc] sm:$0xf]
      %v3605 = vunpack.c.l.b16 %v3229
      %v3606 = vunpack.c.l.b16 %v3239
      %v3607 = vunpack.c.l.b16 %v3253
      %v3608 = vunpack.c.l.b16 %v3263
      %v3609 = vunpack.c.l.b16 %v3277
      %v3610 = vunpack.c.l.b16 %v3287
      %v3611 = vunpack.c.l.b16 %v3301
      %v3612 = vunpack.c.l.b16 %v3311
      %v3613 = vunpack.c.l.b16 %v3325
      %v3614 = vunpack.c.l.b16 %v3335
      %v3615 = vunpack.c.l.b16 %v3349
      %v3616 = vunpack.c.l.b16 %v3359
      %v3617 = vunpack.c.l.b16 %v3373
      %v3618 = vunpack.c.l.b16 %v3383
      %v3619 = vunpack.c.l.b16 %v3397
      %v3620 = vunpack.c.l.b16 %v3407
      %v3621 = vunpack.c.l.b16 %v3421
      %v3622 = vunpack.c.l.b16 %v3431
      %v3623 = vunpack.c.l.b16 %v3445
      %v3624 = vunpack.c.l.b16 %v3455
      %v3625 = vunpack.c.l.b16 %v3469
      %v3626 = vunpack.c.l.b16 %v3479
      %v3627 = vunpack.c.l.b16 %v3493
      %v3628 = vunpack.c.l.b16 %v3503
      %v3629 = vunpack.c.l.b16 %v3517
      %v3630 = vunpack.c.l.b16 %v3527
      %v3631 = vunpack.c.l.b16 %v3541
      %v3632 = vunpack.c.l.b16 %v3551
      %v3633 = vunpack.c.l.b16 %v3565
      %v3634 = vunpack.c.l.b16 %v3575
      %v3635 = vunpack.c.l.b16 %v3589
      %v3636 = vunpack.c.l.b16 %v3599
      %v3637 = vpack.c.b16 %v3606, %v3605
      %v3638 = vpack.c.b16 %v3608, %v3607
      %v3639 = vpack.c.b16 %v3610, %v3609
      %v3640 = vpack.c.b16 %v3612, %v3611
      %v3641 = vpack.c.b16 %v3614, %v3613
      %v3642 = vpack.c.b16 %v3616, %v3615
      %v3643 = vpack.c.b16 %v3618, %v3617
      %v3644 = vpack.c.b16 %v3620, %v3619
      %v3645 = vpack.c.b16 %v3622, %v3621
      %v3646 = vpack.c.b16 %v3624, %v3623
      %v3647 = vpack.c.b16 %v3626, %v3625
      %v3648 = vpack.c.b16 %v3628, %v3627
      %v3649 = vpack.c.b16 %v3630, %v3629
      %v3650 = vpack.c.b16 %v3632, %v3631
      %v3651 = vpack.c.b16 %v3634, %v3633
      %v3652 = vpack.c.b16 %v3636, %v3635
      %v3657 = vunpack.c.l.b16 %v3601
      %v3658 = vunpack.c.l.b16 %v3602
      %v3659 = vunpack.c.l.b16 %v3603
      %v3660 = vunpack.c.l.b16 %v3604
      %v3661 = vpack.c.b16 %v3658, %v3657
      %v3662 = vpack.c.b16 %v3660, %v3659
      %v3666 = vsel %vm730, %v3637, 0
      %v3669 = vsel %vm730, %v3638, 0
      %v3672 = vsel %vm730, %v3639, 0
      %v3675 = vsel %vm730, %v3640, 0
      %v3678 = vsel %vm730, %v3641, 0
      %v3681 = vsel %vm730, %v3642, 0
      %v3684 = vsel %vm730, %v3643, 0
      %v3687 = vsel %vm730, %v3644, 0
      %v3690 = vsel %vm730, %v3645, 0
      %v3693 = vsel %vm730, %v3646, 0
      %v3696 = vsel %vm730, %v3647, 0
      %v3699 = vsel %vm730, %v3648, 0
      %v3702 = vsel %vm730, %v3649, 0
      %v3705 = vsel %vm730, %v3650, 0
      %v3708 = vsel %vm730, %v3651, 0
      %v3711 = vsel %vm730, %v3652, 0
      %3713 = vmatpush.bf16.msra.mxu0 0
      %3714 = vmatpush.bf16.msra.mxu0 0
      %3715 = vmatpush.bf16.msra.mxu0 0
      %3716 = vmatpush.bf16.msra.mxu0 0
      %3717 = vmatpush.bf16.msra.mxu0 0
      %3718 = vmatpush.bf16.msra.mxu0 0
      %3719 = vmatpush.bf16.msra.mxu0 %v3662
      %3720 = vmatpush.bf16.msra.mxu0 %v3661
      %3721 = vmatmul.bf16.gmra.mxu0 %v3666
      %v3722 = vpop.f32.mrf.mxu0
      %v3723 = vadd.f32 0.0, %v3722
      %v3724 = vpop.f32.mrf.mxu0
      %v3725 = vadd.f32 0.0, %v3724
      %3726 = vmatmul.bf16.gmra.mxu0 %v3669
      %v3727 = vpop.f32.mrf.mxu0
      %v3728 = vadd.f32 0.0, %v3727
      %v3729 = vpop.f32.mrf.mxu0
      %v3730 = vadd.f32 0.0, %v3729
      %3731 = vmatmul.bf16.gmra.mxu0 %v3672
      %v3732 = vpop.f32.mrf.mxu0
      %v3733 = vadd.f32 0.0, %v3732
      %v3734 = vpop.f32.mrf.mxu0
      %v3735 = vadd.f32 0.0, %v3734
      %3736 = vmatmul.bf16.gmra.mxu0 %v3675
      %v3737 = vpop.f32.mrf.mxu0
      %v3738 = vadd.f32 0.0, %v3737
      %v3739 = vpop.f32.mrf.mxu0
      %v3740 = vadd.f32 0.0, %v3739
      %3741 = vmatmul.bf16.gmra.mxu0 %v3678
      %v3742 = vpop.f32.mrf.mxu0
      %v3743 = vadd.f32 0.0, %v3742
      %v3744 = vpop.f32.mrf.mxu0
      %v3745 = vadd.f32 0.0, %v3744
      %3746 = vmatmul.bf16.gmra.mxu0 %v3681
      %v3747 = vpop.f32.mrf.mxu0
      %v3748 = vadd.f32 0.0, %v3747
      %v3749 = vpop.f32.mrf.mxu0
      %v3750 = vadd.f32 0.0, %v3749
      %3751 = vmatmul.bf16.gmra.mxu0 %v3684
      %v3752 = vpop.f32.mrf.mxu0
      %v3753 = vadd.f32 0.0, %v3752
      %v3754 = vpop.f32.mrf.mxu0
      %v3755 = vadd.f32 0.0, %v3754
      %3756 = vmatmul.bf16.gmra.mxu0 %v3687
      %v3757 = vpop.f32.mrf.mxu0
      %v3758 = vadd.f32 0.0, %v3757
      %v3759 = vpop.f32.mrf.mxu0
      %v3760 = vadd.f32 0.0, %v3759
      %3761 = vmatmul.bf16.gmra.mxu0 %v3690
      %v3762 = vpop.f32.mrf.mxu0
      %v3763 = vadd.f32 0.0, %v3762
      %v3764 = vpop.f32.mrf.mxu0
      %v3765 = vadd.f32 0.0, %v3764
      %3766 = vmatmul.bf16.gmra.mxu0 %v3693
      %v3767 = vpop.f32.mrf.mxu0
      %v3768 = vadd.f32 0.0, %v3767
      %v3769 = vpop.f32.mrf.mxu0
      %v3770 = vadd.f32 0.0, %v3769
      %3771 = vmatmul.bf16.gmra.mxu0 %v3696
      %v3772 = vpop.f32.mrf.mxu0
      %v3773 = vadd.f32 0.0, %v3772
      %v3774 = vpop.f32.mrf.mxu0
      %v3775 = vadd.f32 0.0, %v3774
      %3776 = vmatmul.bf16.gmra.mxu0 %v3699
      %v3777 = vpop.f32.mrf.mxu0
      %v3778 = vadd.f32 0.0, %v3777
      %v3779 = vpop.f32.mrf.mxu0
      %v3780 = vadd.f32 0.0, %v3779
      %3781 = vmatmul.bf16.gmra.mxu0 %v3702
      %v3782 = vpop.f32.mrf.mxu0
      %v3783 = vadd.f32 0.0, %v3782
      %v3784 = vpop.f32.mrf.mxu0
      %v3785 = vadd.f32 0.0, %v3784
      %3786 = vmatmul.bf16.gmra.mxu0 %v3705
      %v3787 = vpop.f32.mrf.mxu0
      %v3788 = vadd.f32 0.0, %v3787
      %v3789 = vpop.f32.mrf.mxu0
      %v3790 = vadd.f32 0.0, %v3789
      %3791 = vmatmul.bf16.gmra.mxu0 %v3708
      %v3792 = vpop.f32.mrf.mxu0
      %v3793 = vadd.f32 0.0, %v3792
      %v3794 = vpop.f32.mrf.mxu0
      %v3795 = vadd.f32 0.0, %v3794
      %3796 = vmatmul.bf16.gmra.mxu0 %v3711
      %v3797 = vpop.f32.mrf.mxu0
      %v3798 = vadd.f32 0.0, %v3797
      %v3799 = vpop.f32.mrf.mxu0
      %v3800 = vadd.f32 0.0, %v3799
      %3801 = vdwg.mxu0
      %v3802 = vadd.f32 %v3136, %v3723
      %v3803 = vadd.f32 %v3137, %v3725
      %v3804 = vadd.f32 %v3138, %v3728
      %v3805 = vadd.f32 %v3139, %v3730
      %v3806 = vadd.f32 %v3140, %v3733
      %v3807 = vadd.f32 %v3141, %v3735
      %v3808 = vadd.f32 %v3142, %v3738
      %v3809 = vadd.f32 %v3143, %v3740
      %v3810 = vadd.f32 %v3144, %v3743
      %v3811 = vadd.f32 %v3145, %v3745
      %v3812 = vadd.f32 %v3146, %v3748
      %v3813 = vadd.f32 %v3147, %v3750
      %v3814 = vadd.f32 %v3148, %v3753
      %v3815 = vadd.f32 %v3149, %v3755
      %v3816 = vadd.f32 %v3150, %v3758
      %v3817 = vadd.f32 %v3151, %v3760
      %v3818 = vadd.f32 %v3152, %v3763
      %v3819 = vadd.f32 %v3153, %v3765
      %v3820 = vadd.f32 %v3154, %v3768
      %v3821 = vadd.f32 %v3155, %v3770
      %v3822 = vadd.f32 %v3156, %v3773
      %v3823 = vadd.f32 %v3157, %v3775
      %v3824 = vadd.f32 %v3158, %v3778
      %v3825 = vadd.f32 %v3159, %v3780
      %v3826 = vadd.f32 %v3160, %v3783
      %v3827 = vadd.f32 %v3161, %v3785
      %v3828 = vadd.f32 %v3162, %v3788
      %v3829 = vadd.f32 %v3163, %v3790
      %v3830 = vadd.f32 %v3164, %v3793
      %v3831 = vadd.f32 %v3165, %v3795
      %v3832 = vadd.f32 %v3166, %v3798
      %v3833 = vadd.f32 %v3167, %v3800
      %v3834 = vld [vmem:[%s2869] sm:$0xe]
      %v3835 = vld [vmem:[%s2869 + $0xc] sm:$0xe]
      %v3836 = vld [vmem:[%s2869 + $0x18] sm:$0xe]
      %v3837 = vld [vmem:[%s2869 + $0x24] sm:$0xe]
      %v3838 = vld [vmem:[%s2869 + $0x30] sm:$0xe]
      %v3839 = vld [vmem:[%s2869 + $0x3c] sm:$0xe]
      %v3840 = vld [vmem:[%s2869 + $0x48] sm:$0xe]
      %v3841 = vld [vmem:[%s2869 + $0x54] sm:$0xe]
      %v3842 = vld [vmem:[%s2869 + $0x60] sm:$0xe]
      %v3843 = vld [vmem:[%s2869 + $0x6c] sm:$0xe]
      %v3844 = vld [vmem:[%s2869 + $0x78] sm:$0xe]
      %v3845 = vld [vmem:[%s2869 + $0x84] sm:$0xe]
      %v3846 = vld [vmem:[%s2869 + $0x90] sm:$0xe]
      %v3847 = vld [vmem:[%s2869 + $0x9c] sm:$0xe]
      %v3848 = vld [vmem:[%s2869 + $0xa8] sm:$0xe]
      %v3849 = vld [vmem:[%s2869 + $0xb4] sm:$0xe]
      %v3898 = vrot.slane %v3834, 5
      %v3899 = vrot.slane %v3898, 4
      %v3900 = vrot.slane %v3169, 5
      %v3901 = vsel %vm1147, %v3899, %v3900
      %v3902 = vrot.slane %v3900, 4
      %v3903 = vrot.slane %v3170, 5
      %v3904 = vsel %vm1147, %v3902, %v3903
      %v3905 = vrot.slane %v3835, 5
      %v3906 = vrot.slane %v3905, 4
      %v3907 = vrot.slane %v3172, 5
      %v3908 = vsel %vm1147, %v3906, %v3907
      %v3909 = vrot.slane %v3907, 4
      %v3910 = vrot.slane %v3173, 5
      %v3911 = vsel %vm1147, %v3909, %v3910
      %v3912 = vrot.slane %v3836, 5
      %v3913 = vrot.slane %v3912, 4
      %v3914 = vrot.slane %v3175, 5
      %v3915 = vsel %vm1147, %v3913, %v3914
      %v3916 = vrot.slane %v3914, 4
      %v3917 = vrot.slane %v3176, 5
      %v3918 = vsel %vm1147, %v3916, %v3917
      %v3919 = vrot.slane %v3837, 5
      %v3920 = vrot.slane %v3919, 4
      %v3921 = vrot.slane %v3178, 5
      %v3922 = vsel %vm1147, %v3920, %v3921
      %v3923 = vrot.slane %v3921, 4
      %v3924 = vrot.slane %v3179, 5
      %v3925 = vsel %vm1147, %v3923, %v3924
      %v3926 = vrot.slane %v3838, 5
      %v3927 = vrot.slane %v3926, 4
      %v3928 = vrot.slane %v3181, 5
      %v3929 = vsel %vm1147, %v3927, %v3928
      %v3930 = vrot.slane %v3928, 4
      %v3931 = vrot.slane %v3182, 5
      %v3932 = vsel %vm1147, %v3930, %v3931
      %v3933 = vrot.slane %v3839, 5
      %v3934 = vrot.slane %v3933, 4
      %v3935 = vrot.slane %v3184, 5
      %v3936 = vsel %vm1147, %v3934, %v3935
      %v3937 = vrot.slane %v3935, 4
      %v3938 = vrot.slane %v3185, 5
      %v3939 = vsel %vm1147, %v3937, %v3938
      %v3940 = vrot.slane %v3840, 5
      %v3941 = vrot.slane %v3940, 4
      %v3942 = vrot.slane %v3187, 5
      %v3943 = vsel %vm1147, %v3941, %v3942
      %v3944 = vrot.slane %v3942, 4
      %v3945 = vrot.slane %v3188, 5
      %v3946 = vsel %vm1147, %v3944, %v3945
      %v3947 = vrot.slane %v3841, 5
      %v3948 = vrot.slane %v3947, 4
      %v3949 = vrot.slane %v3190, 5
      %v3950 = vsel %vm1147, %v3948, %v3949
      %v3951 = vrot.slane %v3949, 4
      %v3952 = vrot.slane %v3191, 5
      %v3953 = vsel %vm1147, %v3951, %v3952
      %v3954 = vrot.slane %v3842, 5
      %v3955 = vrot.slane %v3954, 4
      %v3956 = vrot.slane %v3193, 5
      %v3957 = vsel %vm1147, %v3955, %v3956
      %v3958 = vrot.slane %v3956, 4
      %v3959 = vrot.slane %v3194, 5
      %v3960 = vsel %vm1147, %v3958, %v3959
      %v3961 = vrot.slane %v3843, 5
      %v3962 = vrot.slane %v3961, 4
      %v3963 = vrot.slane %v3196, 5
      %v3964 = vsel %vm1147, %v3962, %v3963
      %v3965 = vrot.slane %v3963, 4
      %v3966 = vrot.slane %v3197, 5
      %v3967 = vsel %vm1147, %v3965, %v3966
      %v3968 = vrot.slane %v3844, 5
      %v3969 = vrot.slane %v3968, 4
      %v3970 = vrot.slane %v3199, 5
      %v3971 = vsel %vm1147, %v3969, %v3970
      %v3972 = vrot.slane %v3970, 4
      %v3973 = vrot.slane %v3200, 5
      %v3974 = vsel %vm1147, %v3972, %v3973
      %v3975 = vrot.slane %v3845, 5
      %v3976 = vrot.slane %v3975, 4
      %v3977 = vrot.slane %v3202, 5
      %v3978 = vsel %vm1147, %v3976, %v3977
      %v3979 = vrot.slane %v3977, 4
      %v3980 = vrot.slane %v3203, 5
      %v3981 = vsel %vm1147, %v3979, %v3980
      %v3982 = vrot.slane %v3846, 5
      %v3983 = vrot.slane %v3982, 4
      %v3984 = vrot.slane %v3205, 5
      %v3985 = vsel %vm1147, %v3983, %v3984
      %v3986 = vrot.slane %v3984, 4
      %v3987 = vrot.slane %v3206, 5
      %v3988 = vsel %vm1147, %v3986, %v3987
      %v3989 = vrot.slane %v3847, 5
      %v3990 = vrot.slane %v3989, 4
      %v3991 = vrot.slane %v3208, 5
      %v3992 = vsel %vm1147, %v3990, %v3991
      %v3993 = vrot.slane %v3991, 4
      %v3994 = vrot.slane %v3209, 5
      %v3995 = vsel %vm1147, %v3993, %v3994
      %v3996 = vrot.slane %v3848, 5
      %v3997 = vrot.slane %v3996, 4
      %v3998 = vrot.slane %v3211, 5
      %v3999 = vsel %vm1147, %v3997, %v3998
      %v4000 = vrot.slane %v3998, 4
      %v4001 = vrot.slane %v3212, 5
      %v4002 = vsel %vm1147, %v4000, %v4001
      %v4003 = vrot.slane %v3849, 5
      %v4004 = vrot.slane %v4003, 4
      %v4005 = vrot.slane %v3214, 5
      %v4006 = vsel %vm1147, %v4004, %v4005
      %v4007 = vrot.slane %v4005, 4
      %v4008 = vrot.slane %v3215, 5
      %v4009 = vsel %vm1147, %v4007, %v4008
      %s4010 = scalar_lea.vmem %s1, 128
      %v4011 = vld [vmem:[%s4010] sm:$0xf]
      %v4012 = vld [vmem:[%s4010 + $0x4] sm:$0xf]
      %v4013 = vld [vmem:[%s4010 + $0x8] sm:$0xf]
      %v4014 = vld [vmem:[%s4010 + $0xc] sm:$0xf]
      %v4015 = vunpack.c.l.b16 %v3901
      %v4016 = vunpack.c.l.b16 %v3904
      %v4017 = vunpack.c.l.b16 %v3908
      %v4018 = vunpack.c.l.b16 %v3911
      %v4019 = vunpack.c.l.b16 %v3915
      %v4020 = vunpack.c.l.b16 %v3918
      %v4021 = vunpack.c.l.b16 %v3922
      %v4022 = vunpack.c.l.b16 %v3925
      %v4023 = vunpack.c.l.b16 %v3929
      %v4024 = vunpack.c.l.b16 %v3932
      %v4025 = vunpack.c.l.b16 %v3936
      %v4026 = vunpack.c.l.b16 %v3939
      %v4027 = vunpack.c.l.b16 %v3943
      %v4028 = vunpack.c.l.b16 %v3946
      %v4029 = vunpack.c.l.b16 %v3950
      %v4030 = vunpack.c.l.b16 %v3953
      %v4031 = vunpack.c.l.b16 %v3957
      %v4032 = vunpack.c.l.b16 %v3960
      %v4033 = vunpack.c.l.b16 %v3964
      %v4034 = vunpack.c.l.b16 %v3967
      %v4035 = vunpack.c.l.b16 %v3971
      %v4036 = vunpack.c.l.b16 %v3974
      %v4037 = vunpack.c.l.b16 %v3978
      %v4038 = vunpack.c.l.b16 %v3981
      %v4039 = vunpack.c.l.b16 %v3985
      %v4040 = vunpack.c.l.b16 %v3988
      %v4041 = vunpack.c.l.b16 %v3992
      %v4042 = vunpack.c.l.b16 %v3995
      %v4043 = vunpack.c.l.b16 %v3999
      %v4044 = vunpack.c.l.b16 %v4002
      %v4045 = vunpack.c.l.b16 %v4006
      %v4046 = vunpack.c.l.b16 %v4009
      %v4047 = vpack.c.b16 %v4016, %v4015
      %v4048 = vpack.c.b16 %v4018, %v4017
      %v4049 = vpack.c.b16 %v4020, %v4019
      %v4050 = vpack.c.b16 %v4022, %v4021
      %v4051 = vpack.c.b16 %v4024, %v4023
      %v4052 = vpack.c.b16 %v4026, %v4025
      %v4053 = vpack.c.b16 %v4028, %v4027
      %v4054 = vpack.c.b16 %v4030, %v4029
      %v4055 = vpack.c.b16 %v4032, %v4031
      %v4056 = vpack.c.b16 %v4034, %v4033
      %v4057 = vpack.c.b16 %v4036, %v4035
      %v4058 = vpack.c.b16 %v4038, %v4037
      %v4059 = vpack.c.b16 %v4040, %v4039
      %v4060 = vpack.c.b16 %v4042, %v4041
      %v4061 = vpack.c.b16 %v4044, %v4043
      %v4062 = vpack.c.b16 %v4046, %v4045
      %v4067 = vunpack.c.l.b16 %v4011
      %v4068 = vunpack.c.l.b16 %v4012
      %v4069 = vunpack.c.l.b16 %v4013
      %v4070 = vunpack.c.l.b16 %v4014
      %v4071 = vpack.c.b16 %v4068, %v4067
      %v4072 = vpack.c.b16 %v4070, %v4069
      %v4076 = vsel %vm730, %v4047, 0
      %v4079 = vsel %vm730, %v4048, 0
      %v4082 = vsel %vm730, %v4049, 0
      %v4085 = vsel %vm730, %v4050, 0
      %v4088 = vsel %vm730, %v4051, 0
      %v4091 = vsel %vm730, %v4052, 0
      %v4094 = vsel %vm730, %v4053, 0
      %v4097 = vsel %vm730, %v4054, 0
      %v4100 = vsel %vm730, %v4055, 0
      %v4103 = vsel %vm730, %v4056, 0
      %v4106 = vsel %vm730, %v4057, 0
      %v4109 = vsel %vm730, %v4058, 0
      %v4112 = vsel %vm730, %v4059, 0
      %v4115 = vsel %vm730, %v4060, 0
      %v4118 = vsel %vm730, %v4061, 0
      %v4121 = vsel %vm730, %v4062, 0
      %4123 = vmatpush.bf16.msra.mxu0 0
      %4124 = vmatpush.bf16.msra.mxu0 0
      %4125 = vmatpush.bf16.msra.mxu0 0
      %4126 = vmatpush.bf16.msra.mxu0 0
      %4127 = vmatpush.bf16.msra.mxu0 0
      %4128 = vmatpush.bf16.msra.mxu0 0
      %4129 = vmatpush.bf16.msra.mxu0 %v4072
      %4130 = vmatpush.bf16.msra.mxu0 %v4071
      %4131 = vmatmul.bf16.gmra.mxu0 %v4076
      %v4132 = vpop.f32.mrf.mxu0
      %v4133 = vadd.f32 0.0, %v4132
      %v4134 = vpop.f32.mrf.mxu0
      %v4135 = vadd.f32 0.0, %v4134
      %4136 = vmatmul.bf16.gmra.mxu0 %v4079
      %v4137 = vpop.f32.mrf.mxu0
      %v4138 = vadd.f32 0.0, %v4137
      %v4139 = vpop.f32.mrf.mxu0
      %v4140 = vadd.f32 0.0, %v4139
      %4141 = vmatmul.bf16.gmra.mxu0 %v4082
      %v4142 = vpop.f32.mrf.mxu0
      %v4143 = vadd.f32 0.0, %v4142
      %v4144 = vpop.f32.mrf.mxu0
      %v4145 = vadd.f32 0.0, %v4144
      %4146 = vmatmul.bf16.gmra.mxu0 %v4085
      %v4147 = vpop.f32.mrf.mxu0
      %v4148 = vadd.f32 0.0, %v4147
      %v4149 = vpop.f32.mrf.mxu0
      %v4150 = vadd.f32 0.0, %v4149
      %4151 = vmatmul.bf16.gmra.mxu0 %v4088
      %v4152 = vpop.f32.mrf.mxu0
      %v4153 = vadd.f32 0.0, %v4152
      %v4154 = vpop.f32.mrf.mxu0
      %v4155 = vadd.f32 0.0, %v4154
      %4156 = vmatmul.bf16.gmra.mxu0 %v4091
      %v4157 = vpop.f32.mrf.mxu0
      %v4158 = vadd.f32 0.0, %v4157
      %v4159 = vpop.f32.mrf.mxu0
      %v4160 = vadd.f32 0.0, %v4159
      %4161 = vmatmul.bf16.gmra.mxu0 %v4094
      %v4162 = vpop.f32.mrf.mxu0
      %v4163 = vadd.f32 0.0, %v4162
      %v4164 = vpop.f32.mrf.mxu0
      %v4165 = vadd.f32 0.0, %v4164
      %4166 = vmatmul.bf16.gmra.mxu0 %v4097
      %v4167 = vpop.f32.mrf.mxu0
      %v4168 = vadd.f32 0.0, %v4167
      %v4169 = vpop.f32.mrf.mxu0
      %v4170 = vadd.f32 0.0, %v4169
      %4171 = vmatmul.bf16.gmra.mxu0 %v4100
      %v4172 = vpop.f32.mrf.mxu0
      %v4173 = vadd.f32 0.0, %v4172
      %v4174 = vpop.f32.mrf.mxu0
      %v4175 = vadd.f32 0.0, %v4174
      %4176 = vmatmul.bf16.gmra.mxu0 %v4103
      %v4177 = vpop.f32.mrf.mxu0
      %v4178 = vadd.f32 0.0, %v4177
      %v4179 = vpop.f32.mrf.mxu0
      %v4180 = vadd.f32 0.0, %v4179
      %4181 = vmatmul.bf16.gmra.mxu0 %v4106
      %v4182 = vpop.f32.mrf.mxu0
      %v4183 = vadd.f32 0.0, %v4182
      %v4184 = vpop.f32.mrf.mxu0
      %v4185 = vadd.f32 0.0, %v4184
      %4186 = vmatmul.bf16.gmra.mxu0 %v4109
      %v4187 = vpop.f32.mrf.mxu0
      %v4188 = vadd.f32 0.0, %v4187
      %v4189 = vpop.f32.mrf.mxu0
      %v4190 = vadd.f32 0.0, %v4189
      %4191 = vmatmul.bf16.gmra.mxu0 %v4112
      %v4192 = vpop.f32.mrf.mxu0
      %v4193 = vadd.f32 0.0, %v4192
      %v4194 = vpop.f32.mrf.mxu0
      %v4195 = vadd.f32 0.0, %v4194
      %4196 = vmatmul.bf16.gmra.mxu0 %v4115
      %v4197 = vpop.f32.mrf.mxu0
      %v4198 = vadd.f32 0.0, %v4197
      %v4199 = vpop.f32.mrf.mxu0
      %v4200 = vadd.f32 0.0, %v4199
      %4201 = vmatmul.bf16.gmra.mxu0 %v4118
      %v4202 = vpop.f32.mrf.mxu0
      %v4203 = vadd.f32 0.0, %v4202
      %v4204 = vpop.f32.mrf.mxu0
      %v4205 = vadd.f32 0.0, %v4204
      %4206 = vmatmul.bf16.gmra.mxu0 %v4121
      %v4207 = vpop.f32.mrf.mxu0
      %v4208 = vadd.f32 0.0, %v4207
      %v4209 = vpop.f32.mrf.mxu0
      %v4210 = vadd.f32 0.0, %v4209
      %4211 = vdwg.mxu0
      %v4212 = vadd.f32 %v3802, %v4133
      %v4213 = vadd.f32 %v3803, %v4135
      %v4214 = vadd.f32 %v3804, %v4138
      %v4215 = vadd.f32 %v3805, %v4140
      %v4216 = vadd.f32 %v3806, %v4143
      %v4217 = vadd.f32 %v3807, %v4145
      %v4218 = vadd.f32 %v3808, %v4148
      %v4219 = vadd.f32 %v3809, %v4150
      %v4220 = vadd.f32 %v3810, %v4153
      %v4221 = vadd.f32 %v3811, %v4155
      %v4222 = vadd.f32 %v3812, %v4158
      %v4223 = vadd.f32 %v3813, %v4160
      %v4224 = vadd.f32 %v3814, %v4163
      %v4225 = vadd.f32 %v3815, %v4165
      %v4226 = vadd.f32 %v3816, %v4168
      %v4227 = vadd.f32 %v3817, %v4170
      %v4228 = vadd.f32 %v3818, %v4173
      %v4229 = vadd.f32 %v3819, %v4175
      %v4230 = vadd.f32 %v3820, %v4178
      %v4231 = vadd.f32 %v3821, %v4180
      %v4232 = vadd.f32 %v3822, %v4183
      %v4233 = vadd.f32 %v3823, %v4185
      %v4234 = vadd.f32 %v3824, %v4188
      %v4235 = vadd.f32 %v3825, %v4190
      %v4236 = vadd.f32 %v3826, %v4193
      %v4237 = vadd.f32 %v3827, %v4195
      %v4238 = vadd.f32 %v3828, %v4198
      %v4239 = vadd.f32 %v3829, %v4200
      %v4240 = vadd.f32 %v3830, %v4203
      %v4241 = vadd.f32 %v3831, %v4205
      %v4242 = vadd.f32 %v3832, %v4208
      %v4243 = vadd.f32 %v3833, %v4210
      %v4244 = vld [vmem:[%s2] sm:$0x1]
      %v4246 = vperm.slane %v4244, 0
      %v4248 = vadd.f32 %v4212, %v4246
      %v4249 = vadd.f32 %v4213, %v4246
      %v4250 = vadd.f32 %v4214, %v4246
      %v4251 = vadd.f32 %v4215, %v4246
      %v4252 = vadd.f32 %v4216, %v4246
      %v4253 = vadd.f32 %v4217, %v4246
      %v4254 = vadd.f32 %v4218, %v4246
      %v4255 = vadd.f32 %v4219, %v4246
      %v4256 = vadd.f32 %v4220, %v4246
      %v4257 = vadd.f32 %v4221, %v4246
      %v4258 = vadd.f32 %v4222, %v4246
      %v4259 = vadd.f32 %v4223, %v4246
      %v4260 = vadd.f32 %v4224, %v4246
      %v4261 = vadd.f32 %v4225, %v4246
      %v4262 = vadd.f32 %v4226, %v4246
      %v4263 = vadd.f32 %v4227, %v4246
      %v4264 = vadd.f32 %v4228, %v4246
      %v4265 = vadd.f32 %v4229, %v4246
      %v4266 = vadd.f32 %v4230, %v4246
      %v4267 = vadd.f32 %v4231, %v4246
      %v4268 = vadd.f32 %v4232, %v4246
      %v4269 = vadd.f32 %v4233, %v4246
      %v4270 = vadd.f32 %v4234, %v4246
      %v4271 = vadd.f32 %v4235, %v4246
      %v4272 = vadd.f32 %v4236, %v4246
      %v4273 = vadd.f32 %v4237, %v4246
      %v4274 = vadd.f32 %v4238, %v4246
      %v4275 = vadd.f32 %v4239, %v4246
      %v4276 = vadd.f32 %v4240, %v4246
      %v4277 = vadd.f32 %v4241, %v4246
      %v4278 = vadd.f32 %v4242, %v4246
      %v4279 = vadd.f32 %v4243, %v4246
      %v4280 = vmax.f32 %v4248, 0.0
      %v4281 = vmax.f32 %v4249, 0.0
      %v4282 = vmax.f32 %v4250, 0.0
      %v4283 = vmax.f32 %v4251, 0.0
      %v4284 = vmax.f32 %v4252, 0.0
      %v4285 = vmax.f32 %v4253, 0.0
      %v4286 = vmax.f32 %v4254, 0.0
      %v4287 = vmax.f32 %v4255, 0.0
      %v4288 = vmax.f32 %v4256, 0.0
      %v4289 = vmax.f32 %v4257, 0.0
      %v4290 = vmax.f32 %v4258, 0.0
      %v4291 = vmax.f32 %v4259, 0.0
      %v4292 = vmax.f32 %v4260, 0.0
      %v4293 = vmax.f32 %v4261, 0.0
      %v4294 = vmax.f32 %v4262, 0.0
      %v4295 = vmax.f32 %v4263, 0.0
      %v4296 = vmax.f32 %v4264, 0.0
      %v4297 = vmax.f32 %v4265, 0.0
      %v4298 = vmax.f32 %v4266, 0.0
      %v4299 = vmax.f32 %v4267, 0.0
      %v4300 = vmax.f32 %v4268, 0.0
      %v4301 = vmax.f32 %v4269, 0.0
      %v4302 = vmax.f32 %v4270, 0.0
      %v4303 = vmax.f32 %v4271, 0.0
      %v4304 = vmax.f32 %v4272, 0.0
      %v4305 = vmax.f32 %v4273, 0.0
      %v4306 = vmax.f32 %v4274, 0.0
      %v4307 = vmax.f32 %v4275, 0.0
      %v4308 = vmax.f32 %v4276, 0.0
      %v4309 = vmax.f32 %v4277, 0.0
      %v4310 = vmax.f32 %v4278, 0.0
      %v4311 = vmax.f32 %v4279, 0.0
      %v4312 = vpack.c.bf16 %v4281, %v4280
      %v4313 = vpack.c.bf16 %v4283, %v4282
      %v4314 = vpack.c.bf16 %v4285, %v4284
      %v4315 = vpack.c.bf16 %v4287, %v4286
      %v4316 = vpack.c.bf16 %v4289, %v4288
      %v4317 = vpack.c.bf16 %v4291, %v4290
      %v4318 = vpack.c.bf16 %v4293, %v4292
      %v4319 = vpack.c.bf16 %v4295, %v4294
      %v4320 = vpack.c.bf16 %v4297, %v4296
      %v4321 = vpack.c.bf16 %v4299, %v4298
      %v4322 = vpack.c.bf16 %v4301, %v4300
      %v4323 = vpack.c.bf16 %v4303, %v4302
      %v4324 = vpack.c.bf16 %v4305, %v4304
      %v4325 = vpack.c.bf16 %v4307, %v4306
      %v4326 = vpack.c.bf16 %v4309, %v4308
      %v4327 = vpack.c.bf16 %v4311, %v4310
      %v4328 = vld [vmem:[%s3] sm:$0xf]
      %v4329 = vld [vmem:[%s4] sm:$0xff]
      %4331 = vset.pattern.permute.xlu0 0
      %4332 = vperm.xlu0 %4331, %v4329
      %v4333 = vpop.permute.xlu0 %4332
      %4335 = vmatpush.bf16.xpose.msra.mxu0 %v4319
      %4336 = vmatpush.bf16.xpose.msra.mxu0 %v4318
      %4337 = vmatpush.bf16.xpose.msra.mxu0 %v4317
      %4338 = vmatpush.bf16.xpose.msra.mxu0 %v4316
      %4339 = vmatpush.bf16.xpose.msra.mxu0 %v4315
      %4340 = vmatpush.bf16.xpose.msra.mxu0 %v4314
      %4341 = vmatpush.bf16.xpose.msra.mxu0 %v4313
      %4342 = vmatpush.bf16.xpose.msra.mxu0 %v4312
      %4343 = vmatmul.bf16.gmra.mxu0 %v4328
      %v4344 = vpop.f32.mrf.mxu0
      %v4345 = vadd.f32 %v4333, %v4344
      %v4346 = vpop.f32.mrf.mxu0
      %4347 = vdwg.mxu0
      %4348 = vmatpush.bf16.xpose.msra.mxu0 %v4327
      %4349 = vmatpush.bf16.xpose.msra.mxu0 %v4326
      %4350 = vmatpush.bf16.xpose.msra.mxu0 %v4325
      %4351 = vmatpush.bf16.xpose.msra.mxu0 %v4324
      %4352 = vmatpush.bf16.xpose.msra.mxu0 %v4323
      %4353 = vmatpush.bf16.xpose.msra.mxu0 %v4322
      %4354 = vmatpush.bf16.xpose.msra.mxu0 %v4321
      %4355 = vmatpush.bf16.xpose.msra.mxu0 %v4320
      %4356 = vmatmul.bf16.gmra.mxu0 %v4328
      %v4357 = vpop.f32.mrf.mxu0
      %v4358 = vadd.f32 %v4333, %v4357
      %v4359 = vpop.f32.mrf.mxu0
      %4360 = vdwg.mxu0
      %4361 = vst [vmem:[%s224] sm:$0xff] %v4345
      %4362 = vst [vmem:[%s224 + $0x8] sm:$0xff] %v4358
      %p4363 = scmp.lt.s32.totalorder %s16, 1
      %s4364 = scalar_select %p4363, %s16, 1
      %s4365 = smul.addr %s4364, 2
      %s4366 = smul.addr %s4365, 8
      %s4367 = scalar_lea.vmem %s5, %s4366
      // Predicated region
      $region41: #{_lambda_.1} parent=39 // pred_check
        %p4368 = pneg %p144
      $region42: #{_lambda_.1} parent=39 // pred_check_branch
        %4370 = sbr.rel (%p4368) target = $region44
      $region43: #{_lambda_.1} parent=39 // pred_region
        _
      $region44: #{_lambda_.1} parent=39 // pred_fallthru
        _
    $region40: #{_lambda_.1} parent=5 // pred_fallthru
      _
    %p4371 = scmp.le.s32.totalorder 2, %s11
    // Predicated region
    $region45: #{_lambda_.1} parent=5 // pred_check
      %p4372 = pneg %p4371
    $region46: #{_lambda_.1} parent=5 // pred_check_branch
      %4374 = sbr.rel (%p4372) target = $region48
    $region47: #{_lambda_.1} parent=5 // pred_region
      %s4375 = ssub.s32 %s11, 2
      // Predicated region
      $region49: #{_lambda_.1} parent=47 // pred_check
        %p4376 = pneg %p150
      $region50: #{_lambda_.1} parent=47 // pred_check_branch
        %4378 = sbr.rel (%p4376) target = $region52
      $region51: #{_lambda_.1} parent=47 // pred_region
        %p4379 = scmp.lt.s32.totalorder %s17, 1
        %s4380 = scalar_select %p4379, %s17, 1
        %s4381 = smul.addr %s4380, 2
        %s4382 = smul.addr %s4381, 8
        %s4383 = scalar_lea.vmem %s5, %s4382
      $region52: #{_lambda_.1} parent=47 // pred_fallthru
        _
    $region48: #{_lambda_.1} parent=5 // pred_fallthru
      _
  $region6: #{_lambda_.1} parent=0 // loop_footer
    %s15 = sadd.s32 1, %s11
  $region7: #{_lambda_.1} parent=0 // loop_footer_branch
    %10 = sbr.rel target = $region3
  $region8: #{_lambda_.1} parent=0 // loop_exit
    _

</llo_original>
